<compile_context>
chip_gen: v6e
topology: v6e:2x2x1
jax: 0.10.0
libtpu: 0.0.40
codegen_flags: <defaults>
</compile_context>

<pallas_src>
import functools

import jax
import jax.numpy as jnp
from jax import lax
from jax.experimental import pallas as pl
from jax.experimental.pallas import tpu as pltpu


def _round_up(x, m):
    return (x + m - 1) // m * m


# ----------------------------------------------------------------------------
# Fused kernel: conv1 -> pixel_shuffle -> conv2 for one (batch, time-block).
# ----------------------------------------------------------------------------
def _make_fused_kernel(*, H, W, tw, p0, p1, C, C1p):
    Hext = H + 2          # conv1 evaluated rows: [-1, H+1)   (conv2 needs +-1 halo)
    Wt = tw + 8           # conv1 evaluated cols: [w0-4, w0+tw+4)  (8-aligned halo)
    K1 = 25 * C
    K2 = 9 * C

    def kernel(x_ref, w1_ref, b1_ref, w2_ref, b2_ref, o_ref):
        wb = pl.program_id(1)
        xb = x_ref[0, 0]                                   # (H+6, tw+12, C) bf16

        # ---- conv1: single folded-K im2col GEMM, assembled in VMEM ----------
        taps1 = [xb[kh:kh + Hext, kw:kw + Wt, :]
                 for kh in range(5) for kw in range(5)]
        lhs1 = jnp.concatenate(taps1, axis=-1).reshape(Hext * Wt, K1)
        z = jnp.dot(lhs1, w1_ref[...], preferred_element_type=jnp.float32)
        z = (z + b1_ref[...]).reshape(Hext, Wt, C1p)

        # Zero conv1 values outside the valid (H, W) grid: this implements
        # conv2's zero padding of the pixel-shuffled image and neutralises the
        # right-edge padding of a partial time block.
        row = lax.broadcasted_iota(jnp.int32, (Hext, Wt, 1), 0)
        col = lax.broadcasted_iota(jnp.int32, (Hext, Wt, 1), 1)
        colg = wb * tw - 4 + col
        valid = (row >= 1) & (row <= H) & (colg >= 0) & (colg < W)
        z = jnp.where(valid, z, 0.0).astype(jnp.bfloat16)

        # ---- conv2 with the pixel shuffle folded in --------------------------
        # For output sub-pixel class (i1, i2), 3x3 tap (dr, ds) reads the conv1
        # output at spatial offset (e1, e2) and channel block (j1, j2), where
        # the channel split is (p0, p1, C) as in the module's pixel_shuffle.
        for i1 in range(p0):
            for i2 in range(p1):
                taps2 = []
                for dr in (-1, 0, 1):
                    for ds in (-1, 0, 1):
                        a1, a2 = i1 + dr, i2 + ds
                        e1, j1 = a1 // p0, a1 % p0
                        e2, j2 = a2 // p1, a2 % p1
                        cb = (j1 * p1 + j2) * C
                        taps2.append(z[1 + e1:1 + e1 + H,
                                       4 + e2:4 + e2 + tw,
                                       cb:cb + C])
                lhs2 = jnp.concatenate(taps2, axis=-1).reshape(H * tw, K2)
                acc2 = jnp.dot(lhs2, w2_ref[...],
                               preferred_element_type=jnp.float32)
                o_ref[0, 0, i1 * p1 + i2] = acc2 + b2_ref[...]

    return kernel


# ----------------------------------------------------------------------------
# PatchDeEmbed forward (one fused pallas_call + cheap XLA prologue/epilogue)
# ----------------------------------------------------------------------------
def patch_de_embed_forward(x, params, *, H, patch_size, tw_max=16):
    """x: (B, H*W, embed_dim) -> (B, in_chans, H*p0, W*p1)  (NCHW, as in torch)."""
    p0, p1 = patch_size
    B, L, C = x.shape
    W = L // H
    w1, b1, w2, b2 = params["w1"], params["b1"], params["w2"], params["b2"]
    C1 = C * p0 * p1
    C2 = w2.shape[-1]
    C1p = _round_up(C1, 128)        # pad conv1 GEMM N dim -> unmasked MXU tiles

    # Time (W) blocking: multiples of 8 keep every in-kernel reshape layout
    # preserving; per-step VMEM scales with tw, not with total W (v7x-safe).
    tw = max(8, min(_round_up(tw_max, 8), _round_up(W, 8)))
    nwb = pl.cdiv(W, tw)
    Wp = nwb * tw

    # Halo'd, block-stacked input: block (b, wb) carries original rows
    # [-3, H+3) and columns [wb*tw - 6, wb*tw + tw + 6), zeros outside.
    xg = x.reshape(B, H, W, C)
    xp = jnp.pad(xg, ((0, 0), (3, 3), (6, 6 + Wp - W), (0, 0)))
    xin = jnp.stack([xp[:, :, wb * tw: wb * tw + tw + 12, :]
                     for wb in range(nwb)], axis=1).astype(jnp.bfloat16)

    # Resident GEMM weights (HWIO flattened to (K, N)), f32 biases.
    w1f = jnp.pad(w1.reshape(25 * C, C1),
                  ((0, 0), (0, C1p - C1))).astype(jnp.bfloat16)
    b1f = jnp.pad(b1, (0, C1p - C1)).reshape(1, C1p).astype(jnp.float32)
    w2f = w2.reshape(9 * C, C2).astype(jnp.bfloat16)
    b2f = b2.reshape(1, C2).astype(jnp.float32)

    kernel = _make_fused_kernel(H=H, W=W, tw=tw, p0=p0, p1=p1, C=C, C1p=C1p)
    out = pl.pallas_call(
        kernel,
        out_shape=jax.ShapeDtypeStruct((B, nwb, p0 * p1, H * tw, C2),
                                       jnp.float32),
        grid=(B, nwb),
        in_specs=[
            pl.BlockSpec((1, 1, H + 6, tw + 12, C),
                         lambda b, wb: (b, wb, 0, 0, 0)),
            pl.BlockSpec((25 * C, C1p), lambda b, wb: (0, 0)),
            pl.BlockSpec((1, C1p), lambda b, wb: (0, 0)),
            pl.BlockSpec((9 * C, C2), lambda b, wb: (0, 0)),
            pl.BlockSpec((1, C2), lambda b, wb: (0, 0)),
        ],
        out_specs=pl.BlockSpec((1, 1, p0 * p1, H * tw, C2),
                               lambda b, wb: (b, wb, 0, 0, 0)),
        compiler_params=pltpu.CompilerParams(
            dimension_semantics=("parallel", "parallel"),
            vmem_limit_bytes=32 * 1024 * 1024),
    )(xin, w1f, b1f, w2f, b2f)

    # Cheap epilogue on the small final output only: un-block (wb, w) and
    # interleave the sub-pixel classes into NCHW.
    out = out.reshape(B, nwb, p0, p1, H, tw, C2)
    out = out.transpose(0, 6, 4, 2, 1, 5, 3)       # (B, C2, H, p0, nwb, tw, p1)
    out = out.reshape(B, C2, H * p0, Wp * p1)[:, :, :, : W * p1]
    return out


# ----------------------------------------------------------------------------
# Pure-JAX f32 reference (for the correctness check)
# ----------------------------------------------------------------------------
def pixel_shuffle_nhwc(x, upscale):
    # Matches the module's custom pixel_shuffle: channel dim splits as
    # (s1, s2, C_) -- note this is NOT torch.nn.PixelShuffle's convention.
    s1, s2 = upscale
    B, H, W, C = x.shape
    C_ = C // (s1 * s2)
    x = x.reshape(B, H, W, s1, s2, C_).transpose(0, 1, 3, 2, 4, 5)
    return x.reshape(B, H * s1, W * s2, C_)


def _conv_ref(x, w, b):
    return lax.conv_general_dilated(
        x, w, window_strides=(1, 1), padding="SAME",
        dimension_numbers=("NHWC", "HWIO", "NHWC")) + b


def _forward_ref(x, params, *, H, patch_size):
    B, L, C = x.shape
    W = L // H
    xg = x.reshape(B, H, W, C)
    y = _conv_ref(xg, params["w1"], params["b1"])
    y = pixel_shuffle_nhwc(y, patch_size)
    y = _conv_ref(y, params["w2"], params["b2"])
    return y.transpose(0, 3, 1, 2)


# ----------------------------------------------------------------------------
# Deterministic parameter init (shapes from PatchDeEmbed.__init__, HWIO)
# ----------------------------------------------------------------------------
def init_params(key, *, embed_dim, in_chans, patch_size):
    p0, p1 = patch_size
    k1, k2, k3, k4 = jax.random.split(key, 4)
    c1_out = embed_dim * p0 * p1

    def uinit(k, shape, fan_in):
        bound = 1.0 / jnp.sqrt(fan_in)
        return jax.random.uniform(k, shape, jnp.float32, -bound, bound)

    return {
        "w1": uinit(k1, (5, 5, embed_dim, c1_out), 5 * 5 * embed_dim),
        "b1": uinit(k2, (c1_out,), 5 * 5 * embed_dim),
        "w2": uinit(k3, (3, 3, embed_dim, in_chans), 3 * 3 * embed_dim),
        "b2": uinit(k4, (in_chans,), 3 * 3 * embed_dim),
    }


if __name__ == "__main__":
    # Small, self-consistent config: freq=24, patch_size=(3,2) -> H = 8.
    freq = 24
    in_chans = 2
    patch_size = (3, 2)
    embed_dim = 16
    H = freq // patch_size[0]          # 8
    W_t = 12                           # time frames (not a multiple of the block)
    B = 2

    key = jax.random.PRNGKey(0)
    kx, kp = jax.random.split(key)
    x = jax.random.normal(kx, (B, H * W_t, embed_dim), jnp.float32)
    params = init_params(kp, embed_dim=embed_dim, in_chans=in_chans,
                         patch_size=patch_size)

    # tw_max=8 -> 2 time blocks: exercises multi-block halos, masking of the
    # padded tail block, and a 4-step (2x2) parallel grid.
    fwd = jax.jit(functools.partial(patch_de_embed_forward,
                                    H=H, patch_size=patch_size, tw_max=8))
    out = jax.block_until_ready(fwd(x, params))

    ref = _forward_ref(x, params, H=H, patch_size=patch_size)
    assert out.shape == (B, in_chans, H * patch_size[0], W_t * patch_size[1])
    # bf16 MXU operands with f32 accumulation -> loose tolerance vs f32 ref.
    assert jnp.allclose(out, ref, atol=5e-2, rtol=5e-2), "mismatch vs reference"

    print("KERNEL_OK")
</pallas_src>

<mosaic_0001>
module attributes {stable_mosaic.version = 11 : i64} {
  func.func @kernel(%arg0: i32, %arg1: i32, %arg2: memref<1x1x14x20x16xbf16, #tpu.memory_space<vmem>>, %arg3: memref<400x128xbf16, #tpu.memory_space<vmem>>, %arg4: memref<1x128xf32, #tpu.memory_space<vmem>>, %arg5: memref<144x2xbf16, #tpu.memory_space<vmem>>, %arg6: memref<1x2xf32, #tpu.memory_space<vmem>>, %arg7: memref<1x1x6x64x2xf32, #tpu.memory_space<vmem>>) attributes {dimension_semantics = [#tpu.dimension_semantics<parallel>, #tpu.dimension_semantics<parallel>], iteration_bounds = array<i64: 2, 2>, scalar_prefetch = 0 : i64, scratch_operands = 0 : i64, tpu.core_type = #tpu.core_type<tc>, window_params = [{transform_indices = @transform_0, window_bounds = array<i64: 1, 1, 14, 20, 16>}, {pipeline_mode = #tpu.pipeline_mode<synchronous>, transform_indices = @transform_1, window_bounds = array<i64: 400, 128>}, {pipeline_mode = #tpu.pipeline_mode<synchronous>, transform_indices = @transform_2, window_bounds = array<i64: 1, 128>}, {pipeline_mode = #tpu.pipeline_mode<synchronous>, transform_indices = @transform_3, window_bounds = array<i64: 144, 2>}, {pipeline_mode = #tpu.pipeline_mode<synchronous>, transform_indices = @transform_4, window_bounds = array<i64: 1, 2>}, {transform_indices = @transform_5, window_bounds = array<i64: 1, 1, 6, 64, 2>}]} {
    %c0 = arith.constant 0 : index
    %c0_0 = arith.constant 0 : index
    %c0_1 = arith.constant 0 : index
    %c0_2 = arith.constant 0 : index
    %c0_3 = arith.constant 0 : index
    %0 = vector.load %arg2[%c0, %c0_0, %c0_1, %c0_2, %c0_3] : memref<1x1x14x20x16xbf16, #tpu.memory_space<vmem>>, vector<1x1x14x20x16xbf16>
    %1 = vector.shape_cast %0 : vector<1x1x14x20x16xbf16> to vector<14x20x16xbf16>
    %2 = vector.extract_strided_slice %1 {offsets = [0, 0, 0], sizes = [10, 16, 16], strides = [1, 1, 1]} : vector<14x20x16xbf16> to vector<10x16x16xbf16>
    %3 = vector.extract_strided_slice %1 {offsets = [0, 1, 0], sizes = [10, 16, 16], strides = [1, 1, 1]} : vector<14x20x16xbf16> to vector<10x16x16xbf16>
    %4 = vector.extract_strided_slice %1 {offsets = [0, 2, 0], sizes = [10, 16, 16], strides = [1, 1, 1]} : vector<14x20x16xbf16> to vector<10x16x16xbf16>
    %5 = vector.extract_strided_slice %1 {offsets = [0, 3, 0], sizes = [10, 16, 16], strides = [1, 1, 1]} : vector<14x20x16xbf16> to vector<10x16x16xbf16>
    %6 = vector.extract_strided_slice %1 {offsets = [0, 4, 0], sizes = [10, 16, 16], strides = [1, 1, 1]} : vector<14x20x16xbf16> to vector<10x16x16xbf16>
    %7 = vector.extract_strided_slice %1 {offsets = [1, 0, 0], sizes = [10, 16, 16], strides = [1, 1, 1]} : vector<14x20x16xbf16> to vector<10x16x16xbf16>
    %8 = vector.extract_strided_slice %1 {offsets = [1, 1, 0], sizes = [10, 16, 16], strides = [1, 1, 1]} : vector<14x20x16xbf16> to vector<10x16x16xbf16>
    %9 = vector.extract_strided_slice %1 {offsets = [1, 2, 0], sizes = [10, 16, 16], strides = [1, 1, 1]} : vector<14x20x16xbf16> to vector<10x16x16xbf16>
    %10 = vector.extract_strided_slice %1 {offsets = [1, 3, 0], sizes = [10, 16, 16], strides = [1, 1, 1]} : vector<14x20x16xbf16> to vector<10x16x16xbf16>
    %11 = vector.extract_strided_slice %1 {offsets = [1, 4, 0], sizes = [10, 16, 16], strides = [1, 1, 1]} : vector<14x20x16xbf16> to vector<10x16x16xbf16>
    %12 = vector.extract_strided_slice %1 {offsets = [2, 0, 0], sizes = [10, 16, 16], strides = [1, 1, 1]} : vector<14x20x16xbf16> to vector<10x16x16xbf16>
    %13 = vector.extract_strided_slice %1 {offsets = [2, 1, 0], sizes = [10, 16, 16], strides = [1, 1, 1]} : vector<14x20x16xbf16> to vector<10x16x16xbf16>
    %14 = vector.extract_strided_slice %1 {offsets = [2, 2, 0], sizes = [10, 16, 16], strides = [1, 1, 1]} : vector<14x20x16xbf16> to vector<10x16x16xbf16>
    %15 = vector.extract_strided_slice %1 {offsets = [2, 3, 0], sizes = [10, 16, 16], strides = [1, 1, 1]} : vector<14x20x16xbf16> to vector<10x16x16xbf16>
    %16 = vector.extract_strided_slice %1 {offsets = [2, 4, 0], sizes = [10, 16, 16], strides = [1, 1, 1]} : vector<14x20x16xbf16> to vector<10x16x16xbf16>
    %17 = vector.extract_strided_slice %1 {offsets = [3, 0, 0], sizes = [10, 16, 16], strides = [1, 1, 1]} : vector<14x20x16xbf16> to vector<10x16x16xbf16>
    %18 = vector.extract_strided_slice %1 {offsets = [3, 1, 0], sizes = [10, 16, 16], strides = [1, 1, 1]} : vector<14x20x16xbf16> to vector<10x16x16xbf16>
    %19 = vector.extract_strided_slice %1 {offsets = [3, 2, 0], sizes = [10, 16, 16], strides = [1, 1, 1]} : vector<14x20x16xbf16> to vector<10x16x16xbf16>
    %20 = vector.extract_strided_slice %1 {offsets = [3, 3, 0], sizes = [10, 16, 16], strides = [1, 1, 1]} : vector<14x20x16xbf16> to vector<10x16x16xbf16>
    %21 = vector.extract_strided_slice %1 {offsets = [3, 4, 0], sizes = [10, 16, 16], strides = [1, 1, 1]} : vector<14x20x16xbf16> to vector<10x16x16xbf16>
    %22 = vector.extract_strided_slice %1 {offsets = [4, 0, 0], sizes = [10, 16, 16], strides = [1, 1, 1]} : vector<14x20x16xbf16> to vector<10x16x16xbf16>
    %23 = vector.extract_strided_slice %1 {offsets = [4, 1, 0], sizes = [10, 16, 16], strides = [1, 1, 1]} : vector<14x20x16xbf16> to vector<10x16x16xbf16>
    %24 = vector.extract_strided_slice %1 {offsets = [4, 2, 0], sizes = [10, 16, 16], strides = [1, 1, 1]} : vector<14x20x16xbf16> to vector<10x16x16xbf16>
    %25 = vector.extract_strided_slice %1 {offsets = [4, 3, 0], sizes = [10, 16, 16], strides = [1, 1, 1]} : vector<14x20x16xbf16> to vector<10x16x16xbf16>
    %26 = vector.extract_strided_slice %1 {offsets = [4, 4, 0], sizes = [10, 16, 16], strides = [1, 1, 1]} : vector<14x20x16xbf16> to vector<10x16x16xbf16>
    %27 = tpu.concatenate %2, %3, %4, %5, %6, %7, %8, %9, %10, %11, %12, %13, %14, %15, %16, %17 in 2 : vector<10x16x16xbf16>, vector<10x16x16xbf16>, vector<10x16x16xbf16>, vector<10x16x16xbf16>, vector<10x16x16xbf16>, vector<10x16x16xbf16>, vector<10x16x16xbf16>, vector<10x16x16xbf16>, vector<10x16x16xbf16>, vector<10x16x16xbf16>, vector<10x16x16xbf16>, vector<10x16x16xbf16>, vector<10x16x16xbf16>, vector<10x16x16xbf16>, vector<10x16x16xbf16>, vector<10x16x16xbf16> -> vector<10x16x256xbf16>
    %28 = tpu.concatenate %18, %19, %20, %21, %22, %23, %24, %25, %26 in 2 : vector<10x16x16xbf16>, vector<10x16x16xbf16>, vector<10x16x16xbf16>, vector<10x16x16xbf16>, vector<10x16x16xbf16>, vector<10x16x16xbf16>, vector<10x16x16xbf16>, vector<10x16x16xbf16>, vector<10x16x16xbf16> -> vector<10x16x144xbf16>
    %29 = tpu.concatenate %27, %28 in 2 : vector<10x16x256xbf16>, vector<10x16x144xbf16> -> vector<10x16x400xbf16>
    %30 = vector.shape_cast %29 : vector<10x16x400xbf16> to vector<160x400xbf16>
    %c0_4 = arith.constant 0 : index
    %c0_5 = arith.constant 0 : index
    %31 = vector.load %arg3[%c0_4, %c0_5] : memref<400x128xbf16, #tpu.memory_space<vmem>>, vector<400x128xbf16>
    %cst = arith.constant dense<0.000000e+00> : vector<160x128xf32>
    %32 = tpu.matmul %30, %31, %cst {dimension_numbers = #tpu.dot_dimension_numbers<[1], [0], [0], [1], [0, 0, 1, 1], [], []>} : vector<160x400xbf16>, vector<400x128xbf16>, vector<160x128xf32> -> vector<160x128xf32>
    %c0_6 = arith.constant 0 : index
    %c0_7 = arith.constant 0 : index
    %33 = vector.load %arg4[%c0_6, %c0_7] : memref<1x128xf32, #tpu.memory_space<vmem>>, vector<1x128xf32>
    %34 = vector.broadcast %33 : vector<1x128xf32> to vector<160x128xf32>
    %35 = arith.addf %32, %34 : vector<160x128xf32>
    %36 = vector.shape_cast %35 : vector<160x128xf32> to vector<10x16x128xf32>
    %37 = tpu.iota {dimensions = array<i32: 0>} : vector<10x16x1xi32>
    %38 = tpu.iota {dimensions = array<i32: 1>} : vector<10x16x1xi32>
    %c8_i32 = arith.constant 8 : i32
    %39 = arith.muli %arg1, %c8_i32 : i32
    %c4_i32 = arith.constant 4 : i32
    %40 = arith.subi %39, %c4_i32 : i32
    %41 = vector.broadcast %40 : i32 to vector<10x16x1xi32>
    %42 = arith.addi %41, %38 : vector<10x16x1xi32>
    %c1_i32 = arith.constant 1 : i32
    %43 = vector.broadcast %c1_i32 : i32 to vector<10x16x1xi32>
    %44 = arith.cmpi sge, %37, %43 : vector<10x16x1xi32>
    %c8_i32_8 = arith.constant 8 : i32
    %45 = vector.broadcast %c8_i32_8 : i32 to vector<10x16x1xi32>
    %46 = arith.cmpi sle, %37, %45 : vector<10x16x1xi32>
    %47 = arith.andi %44, %46 : vector<10x16x1xi1>
    %c0_i32 = arith.constant 0 : i32
    %48 = vector.broadcast %c0_i32 : i32 to vector<10x16x1xi32>
    %49 = arith.cmpi sge, %42, %48 : vector<10x16x1xi32>
    %50 = arith.andi %47, %49 : vector<10x16x1xi1>
    %c12_i32 = arith.constant 12 : i32
    %51 = vector.broadcast %c12_i32 : i32 to vector<10x16x1xi32>
    %52 = arith.cmpi slt, %42, %51 : vector<10x16x1xi32>
    %53 = arith.andi %50, %52 : vector<10x16x1xi1>
    %cst_9 = arith.constant 0.000000e+00 : f32
    %54 = vector.shape_cast %53 : vector<10x16x1xi1> to vector<10x16x1xi1>
    %55 = vector.broadcast %54 : vector<10x16x1xi1> to vector<10x16x128xi1>
    %56 = vector.broadcast %cst_9 : f32 to vector<10x16x128xf32>
    %57 = arith.select %55, %36, %56 : vector<10x16x128xi1>, vector<10x16x128xf32>
    %58 = arith.truncf %57 : vector<10x16x128xf32> to vector<10x16x128xbf16>
    %59 = vector.extract_strided_slice %58 {offsets = [0, 3, 80], sizes = [8, 8, 16], strides = [1, 1, 1]} : vector<10x16x128xbf16> to vector<8x8x16xbf16>
    %60 = vector.extract_strided_slice %58 {offsets = [0, 4, 64], sizes = [8, 8, 16], strides = [1, 1, 1]} : vector<10x16x128xbf16> to vector<8x8x16xbf16>
    %61 = vector.extract_strided_slice %58 {offsets = [0, 4, 80], sizes = [8, 8, 16], strides = [1, 1, 1]} : vector<10x16x128xbf16> to vector<8x8x16xbf16>
    %62 = vector.extract_strided_slice %58 {offsets = [1, 3, 16], sizes = [8, 8, 16], strides = [1, 1, 1]} : vector<10x16x128xbf16> to vector<8x8x16xbf16>
    %63 = vector.extract_strided_slice %58 {offsets = [1, 4, 0], sizes = [8, 8, 16], strides = [1, 1, 1]} : vector<10x16x128xbf16> to vector<8x8x16xbf16>
    %64 = vector.extract_strided_slice %58 {offsets = [1, 4, 16], sizes = [8, 8, 16], strides = [1, 1, 1]} : vector<10x16x128xbf16> to vector<8x8x16xbf16>
    %65 = vector.extract_strided_slice %58 {offsets = [1, 3, 48], sizes = [8, 8, 16], strides = [1, 1, 1]} : vector<10x16x128xbf16> to vector<8x8x16xbf16>
    %66 = vector.extract_strided_slice %58 {offsets = [1, 4, 32], sizes = [8, 8, 16], strides = [1, 1, 1]} : vector<10x16x128xbf16> to vector<8x8x16xbf16>
    %67 = vector.extract_strided_slice %58 {offsets = [1, 4, 48], sizes = [8, 8, 16], strides = [1, 1, 1]} : vector<10x16x128xbf16> to vector<8x8x16xbf16>
    %68 = tpu.concatenate %59, %60, %61, %62, %63, %64, %65, %66, %67 in 2 : vector<8x8x16xbf16>, vector<8x8x16xbf16>, vector<8x8x16xbf16>, vector<8x8x16xbf16>, vector<8x8x16xbf16>, vector<8x8x16xbf16>, vector<8x8x16xbf16>, vector<8x8x16xbf16>, vector<8x8x16xbf16> -> vector<8x8x144xbf16>
    %69 = vector.shape_cast %68 : vector<8x8x144xbf16> to vector<64x144xbf16>
    %c0_10 = arith.constant 0 : index
    %c0_11 = arith.constant 0 : index
    %70 = vector.load %arg5[%c0_10, %c0_11] : memref<144x2xbf16, #tpu.memory_space<vmem>>, vector<144x2xbf16>
    %cst_12 = arith.constant dense<0.000000e+00> : vector<64x2xf32>
    %71 = tpu.matmul %69, %70, %cst_12 {dimension_numbers = #tpu.dot_dimension_numbers<[1], [0], [0], [1], [0, 0, 1, 1], [], []>} : vector<64x144xbf16>, vector<144x2xbf16>, vector<64x2xf32> -> vector<64x2xf32>
    %c0_13 = arith.constant 0 : index
    %c0_14 = arith.constant 0 : index
    %72 = vector.load %arg6[%c0_13, %c0_14] : memref<1x2xf32, #tpu.memory_space<vmem>>, vector<1x2xf32>
    %73 = vector.broadcast %72 : vector<1x2xf32> to vector<64x2xf32>
    %74 = arith.addf %71, %73 : vector<64x2xf32>
    %c0_15 = arith.constant 0 : index
    %c0_16 = arith.constant 0 : index
    %c0_17 = arith.constant 0 : index
    %c0_18 = arith.constant 0 : index
    %c0_19 = arith.constant 0 : index
    %75 = vector.load %arg7[%c0_15, %c0_16, %c0_17, %c0_18, %c0_19] : memref<1x1x6x64x2xf32, #tpu.memory_space<vmem>>, vector<1x1x1x64x2xf32>
    %76 = vector.shape_cast %75 : vector<1x1x1x64x2xf32> to vector<64x2xf32>
    %77 = vector.shape_cast %74 : vector<64x2xf32> to vector<1x1x1x64x2xf32>
    tpu.vector_store %arg7[%c0_15, %c0_16, %c0_17, %c0_18, %c0_19], %77 {strides = array<i32>} : memref<1x1x6x64x2xf32, #tpu.memory_space<vmem>>, vector<1x1x1x64x2xf32>,
    %78 = vector.extract_strided_slice %58 {offsets = [0, 4, 64], sizes = [8, 8, 16], strides = [1, 1, 1]} : vector<10x16x128xbf16> to vector<8x8x16xbf16>
    %79 = vector.extract_strided_slice %58 {offsets = [0, 4, 80], sizes = [8, 8, 16], strides = [1, 1, 1]} : vector<10x16x128xbf16> to vector<8x8x16xbf16>
    %80 = vector.extract_strided_slice %58 {offsets = [0, 5, 64], sizes = [8, 8, 16], strides = [1, 1, 1]} : vector<10x16x128xbf16> to vector<8x8x16xbf16>
    %81 = vector.extract_strided_slice %58 {offsets = [1, 4, 0], sizes = [8, 8, 16], strides = [1, 1, 1]} : vector<10x16x128xbf16> to vector<8x8x16xbf16>
    %82 = vector.extract_strided_slice %58 {offsets = [1, 4, 16], sizes = [8, 8, 16], strides = [1, 1, 1]} : vector<10x16x128xbf16> to vector<8x8x16xbf16>
    %83 = vector.extract_strided_slice %58 {offsets = [1, 5, 0], sizes = [8, 8, 16], strides = [1, 1, 1]} : vector<10x16x128xbf16> to vector<8x8x16xbf16>
    %84 = vector.extract_strided_slice %58 {offsets = [1, 4, 32], sizes = [8, 8, 16], strides = [1, 1, 1]} : vector<10x16x128xbf16> to vector<8x8x16xbf16>
    %85 = vector.extract_strided_slice %58 {offsets = [1, 4, 48], sizes = [8, 8, 16], strides = [1, 1, 1]} : vector<10x16x128xbf16> to vector<8x8x16xbf16>
    %86 = vector.extract_strided_slice %58 {offsets = [1, 5, 32], sizes = [8, 8, 16], strides = [1, 1, 1]} : vector<10x16x128xbf16> to vector<8x8x16xbf16>
    %87 = tpu.concatenate %78, %79, %80, %81, %82, %83, %84, %85, %86 in 2 : vector<8x8x16xbf16>, vector<8x8x16xbf16>, vector<8x8x16xbf16>, vector<8x8x16xbf16>, vector<8x8x16xbf16>, vector<8x8x16xbf16>, vector<8x8x16xbf16>, vector<8x8x16xbf16>, vector<8x8x16xbf16> -> vector<8x8x144xbf16>
    %88 = vector.shape_cast %87 : vector<8x8x144xbf16> to vector<64x144xbf16>
    %c0_20 = arith.constant 0 : index
    %c0_21 = arith.constant 0 : index
    %89 = vector.load %arg5[%c0_20, %c0_21] : memref<144x2xbf16, #tpu.memory_space<vmem>>, vector<144x2xbf16>
    %cst_22 = arith.constant dense<0.000000e+00> : vector<64x2xf32>
    %90 = tpu.matmul %88, %89, %cst_22 {dimension_numbers = #tpu.dot_dimension_numbers<[1], [0], [0], [1], [0, 0, 1, 1], [], []>} : vector<64x144xbf16>, vector<144x2xbf16>, vector<64x2xf32> -> vector<64x2xf32>
    %c0_23 = arith.constant 0 : index
    %c0_24 = arith.constant 0 : index
    %91 = vector.load %arg6[%c0_23, %c0_24] : memref<1x2xf32, #tpu.memory_space<vmem>>, vector<1x2xf32>
    %92 = vector.broadcast %91 : vector<1x2xf32> to vector<64x2xf32>
    %93 = arith.addf %90, %92 : vector<64x2xf32>
    %c0_25 = arith.constant 0 : index
    %c0_26 = arith.constant 0 : index
    %c1 = arith.constant 1 : index
    %c0_27 = arith.constant 0 : index
    %c0_28 = arith.constant 0 : index
    %94 = vector.load %arg7[%c0_25, %c0_26, %c1, %c0_27, %c0_28] : memref<1x1x6x64x2xf32, #tpu.memory_space<vmem>>, vector<1x1x1x64x2xf32>
    %95 = vector.shape_cast %94 : vector<1x1x1x64x2xf32> to vector<64x2xf32>
    %96 = vector.shape_cast %93 : vector<64x2xf32> to vector<1x1x1x64x2xf32>
    tpu.vector_store %arg7[%c0_25, %c0_26, %c1, %c0_27, %c0_28], %96 {strides = array<i32>} : memref<1x1x6x64x2xf32, #tpu.memory_space<vmem>>, vector<1x1x1x64x2xf32>,
    %97 = vector.extract_strided_slice %58 {offsets = [1, 3, 16], sizes = [8, 8, 16], strides = [1, 1, 1]} : vector<10x16x128xbf16> to vector<8x8x16xbf16>
    %98 = vector.extract_strided_slice %58 {offsets = [1, 4, 0], sizes = [8, 8, 16], strides = [1, 1, 1]} : vector<10x16x128xbf16> to vector<8x8x16xbf16>
    %99 = vector.extract_strided_slice %58 {offsets = [1, 4, 16], sizes = [8, 8, 16], strides = [1, 1, 1]} : vector<10x16x128xbf16> to vector<8x8x16xbf16>
    %100 = vector.extract_strided_slice %58 {offsets = [1, 3, 48], sizes = [8, 8, 16], strides = [1, 1, 1]} : vector<10x16x128xbf16> to vector<8x8x16xbf16>
    %101 = vector.extract_strided_slice %58 {offsets = [1, 4, 32], sizes = [8, 8, 16], strides = [1, 1, 1]} : vector<10x16x128xbf16> to vector<8x8x16xbf16>
    %102 = vector.extract_strided_slice %58 {offsets = [1, 4, 48], sizes = [8, 8, 16], strides = [1, 1, 1]} : vector<10x16x128xbf16> to vector<8x8x16xbf16>
    %103 = vector.extract_strided_slice %58 {offsets = [1, 3, 80], sizes = [8, 8, 16], strides = [1, 1, 1]} : vector<10x16x128xbf16> to vector<8x8x16xbf16>
    %104 = vector.extract_strided_slice %58 {offsets = [1, 4, 64], sizes = [8, 8, 16], strides = [1, 1, 1]} : vector<10x16x128xbf16> to vector<8x8x16xbf16>
    %105 = vector.extract_strided_slice %58 {offsets = [1, 4, 80], sizes = [8, 8, 16], strides = [1, 1, 1]} : vector<10x16x128xbf16> to vector<8x8x16xbf16>
    %106 = tpu.concatenate %97, %98, %99, %100, %101, %102, %103, %104, %105 in 2 : vector<8x8x16xbf16>, vector<8x8x16xbf16>, vector<8x8x16xbf16>, vector<8x8x16xbf16>, vector<8x8x16xbf16>, vector<8x8x16xbf16>, vector<8x8x16xbf16>, vector<8x8x16xbf16>, vector<8x8x16xbf16> -> vector<8x8x144xbf16>
    %107 = vector.shape_cast %106 : vector<8x8x144xbf16> to vector<64x144xbf16>
    %c0_29 = arith.constant 0 : index
    %c0_30 = arith.constant 0 : index
    %108 = vector.load %arg5[%c0_29, %c0_30] : memref<144x2xbf16, #tpu.memory_space<vmem>>, vector<144x2xbf16>
    %cst_31 = arith.constant dense<0.000000e+00> : vector<64x2xf32>
    %109 = tpu.matmul %107, %108, %cst_31 {dimension_numbers = #tpu.dot_dimension_numbers<[1], [0], [0], [1], [0, 0, 1, 1], [], []>} : vector<64x144xbf16>, vector<144x2xbf16>, vector<64x2xf32> -> vector<64x2xf32>
    %c0_32 = arith.constant 0 : index
    %c0_33 = arith.constant 0 : index
    %110 = vector.load %arg6[%c0_32, %c0_33] : memref<1x2xf32, #tpu.memory_space<vmem>>, vector<1x2xf32>
    %111 = vector.broadcast %110 : vector<1x2xf32> to vector<64x2xf32>
    %112 = arith.addf %109, %111 : vector<64x2xf32>
    %c0_34 = arith.constant 0 : index
    %c0_35 = arith.constant 0 : index
    %c2 = arith.constant 2 : index
    %c0_36 = arith.constant 0 : index
    %c0_37 = arith.constant 0 : index
    %113 = vector.load %arg7[%c0_34, %c0_35, %c2, %c0_36, %c0_37] : memref<1x1x6x64x2xf32, #tpu.memory_space<vmem>>, vector<1x1x1x64x2xf32>
    %114 = vector.shape_cast %113 : vector<1x1x1x64x2xf32> to vector<64x2xf32>
    %115 = vector.shape_cast %112 : vector<64x2xf32> to vector<1x1x1x64x2xf32>
    tpu.vector_store %arg7[%c0_34, %c0_35, %c2, %c0_36, %c0_37], %115 {strides = array<i32>} : memref<1x1x6x64x2xf32, #tpu.memory_space<vmem>>, vector<1x1x1x64x2xf32>,
    %116 = vector.extract_strided_slice %58 {offsets = [1, 4, 0], sizes = [8, 8, 16], strides = [1, 1, 1]} : vector<10x16x128xbf16> to vector<8x8x16xbf16>
    %117 = vector.extract_strided_slice %58 {offsets = [1, 4, 16], sizes = [8, 8, 16], strides = [1, 1, 1]} : vector<10x16x128xbf16> to vector<8x8x16xbf16>
    %118 = vector.extract_strided_slice %58 {offsets = [1, 5, 0], sizes = [8, 8, 16], strides = [1, 1, 1]} : vector<10x16x128xbf16> to vector<8x8x16xbf16>
    %119 = vector.extract_strided_slice %58 {offsets = [1, 4, 32], sizes = [8, 8, 16], strides = [1, 1, 1]} : vector<10x16x128xbf16> to vector<8x8x16xbf16>
    %120 = vector.extract_strided_slice %58 {offsets = [1, 4, 48], sizes = [8, 8, 16], strides = [1, 1, 1]} : vector<10x16x128xbf16> to vector<8x8x16xbf16>
    %121 = vector.extract_strided_slice %58 {offsets = [1, 5, 32], sizes = [8, 8, 16], strides = [1, 1, 1]} : vector<10x16x128xbf16> to vector<8x8x16xbf16>
    %122 = vector.extract_strided_slice %58 {offsets = [1, 4, 64], sizes = [8, 8, 16], strides = [1, 1, 1]} : vector<10x16x128xbf16> to vector<8x8x16xbf16>
    %123 = vector.extract_strided_slice %58 {offsets = [1, 4, 80], sizes = [8, 8, 16], strides = [1, 1, 1]} : vector<10x16x128xbf16> to vector<8x8x16xbf16>
    %124 = vector.extract_strided_slice %58 {offsets = [1, 5, 64], sizes = [8, 8, 16], strides = [1, 1, 1]} : vector<10x16x128xbf16> to vector<8x8x16xbf16>
    %125 = tpu.concatenate %116, %117, %118, %119, %120, %121, %122, %123, %124 in 2 : vector<8x8x16xbf16>, vector<8x8x16xbf16>, vector<8x8x16xbf16>, vector<8x8x16xbf16>, vector<8x8x16xbf16>, vector<8x8x16xbf16>, vector<8x8x16xbf16>, vector<8x8x16xbf16>, vector<8x8x16xbf16> -> vector<8x8x144xbf16>
    %126 = vector.shape_cast %125 : vector<8x8x144xbf16> to vector<64x144xbf16>
    %c0_38 = arith.constant 0 : index
    %c0_39 = arith.constant 0 : index
    %127 = vector.load %arg5[%c0_38, %c0_39] : memref<144x2xbf16, #tpu.memory_space<vmem>>, vector<144x2xbf16>
    %cst_40 = arith.constant dense<0.000000e+00> : vector<64x2xf32>
    %128 = tpu.matmul %126, %127, %cst_40 {dimension_numbers = #tpu.dot_dimension_numbers<[1], [0], [0], [1], [0, 0, 1, 1], [], []>} : vector<64x144xbf16>, vector<144x2xbf16>, vector<64x2xf32> -> vector<64x2xf32>
    %c0_41 = arith.constant 0 : index
    %c0_42 = arith.constant 0 : index
    %129 = vector.load %arg6[%c0_41, %c0_42] : memref<1x2xf32, #tpu.memory_space<vmem>>, vector<1x2xf32>
    %130 = vector.broadcast %129 : vector<1x2xf32> to vector<64x2xf32>
    %131 = arith.addf %128, %130 : vector<64x2xf32>
    %c0_43 = arith.constant 0 : index
    %c0_44 = arith.constant 0 : index
    %c3 = arith.constant 3 : index
    %c0_45 = arith.constant 0 : index
    %c0_46 = arith.constant 0 : index
    %132 = vector.load %arg7[%c0_43, %c0_44, %c3, %c0_45, %c0_46] : memref<1x1x6x64x2xf32, #tpu.memory_space<vmem>>, vector<1x1x1x64x2xf32>
    %133 = vector.shape_cast %132 : vector<1x1x1x64x2xf32> to vector<64x2xf32>
    %134 = vector.shape_cast %131 : vector<64x2xf32> to vector<1x1x1x64x2xf32>
    tpu.vector_store %arg7[%c0_43, %c0_44, %c3, %c0_45, %c0_46], %134 {strides = array<i32>} : memref<1x1x6x64x2xf32, #tpu.memory_space<vmem>>, vector<1x1x1x64x2xf32>,
    %135 = vector.extract_strided_slice %58 {offsets = [1, 3, 48], sizes = [8, 8, 16], strides = [1, 1, 1]} : vector<10x16x128xbf16> to vector<8x8x16xbf16>
    %136 = vector.extract_strided_slice %58 {offsets = [1, 4, 32], sizes = [8, 8, 16], strides = [1, 1, 1]} : vector<10x16x128xbf16> to vector<8x8x16xbf16>
    %137 = vector.extract_strided_slice %58 {offsets = [1, 4, 48], sizes = [8, 8, 16], strides = [1, 1, 1]} : vector<10x16x128xbf16> to vector<8x8x16xbf16>
    %138 = vector.extract_strided_slice %58 {offsets = [1, 3, 80], sizes = [8, 8, 16], strides = [1, 1, 1]} : vector<10x16x128xbf16> to vector<8x8x16xbf16>
    %139 = vector.extract_strided_slice %58 {offsets = [1, 4, 64], sizes = [8, 8, 16], strides = [1, 1, 1]} : vector<10x16x128xbf16> to vector<8x8x16xbf16>
    %140 = vector.extract_strided_slice %58 {offsets = [1, 4, 80], sizes = [8, 8, 16], strides = [1, 1, 1]} : vector<10x16x128xbf16> to vector<8x8x16xbf16>
    %141 = vector.extract_strided_slice %58 {offsets = [2, 3, 16], sizes = [8, 8, 16], strides = [1, 1, 1]} : vector<10x16x128xbf16> to vector<8x8x16xbf16>
    %142 = vector.extract_strided_slice %58 {offsets = [2, 4, 0], sizes = [8, 8, 16], strides = [1, 1, 1]} : vector<10x16x128xbf16> to vector<8x8x16xbf16>
    %143 = vector.extract_strided_slice %58 {offsets = [2, 4, 16], sizes = [8, 8, 16], strides = [1, 1, 1]} : vector<10x16x128xbf16> to vector<8x8x16xbf16>
    %144 = tpu.concatenate %135, %136, %137, %138, %139, %140, %141, %142, %143 in 2 : vector<8x8x16xbf16>, vector<8x8x16xbf16>, vector<8x8x16xbf16>, vector<8x8x16xbf16>, vector<8x8x16xbf16>, vector<8x8x16xbf16>, vector<8x8x16xbf16>, vector<8x8x16xbf16>, vector<8x8x16xbf16> -> vector<8x8x144xbf16>
    %145 = vector.shape_cast %144 : vector<8x8x144xbf16> to vector<64x144xbf16>
    %c0_47 = arith.constant 0 : index
    %c0_48 = arith.constant 0 : index
    %146 = vector.load %arg5[%c0_47, %c0_48] : memref<144x2xbf16, #tpu.memory_space<vmem>>, vector<144x2xbf16>
    %cst_49 = arith.constant dense<0.000000e+00> : vector<64x2xf32>
    %147 = tpu.matmul %145, %146, %cst_49 {dimension_numbers = #tpu.dot_dimension_numbers<[1], [0], [0], [1], [0, 0, 1, 1], [], []>} : vector<64x144xbf16>, vector<144x2xbf16>, vector<64x2xf32> -> vector<64x2xf32>
    %c0_50 = arith.constant 0 : index
    %c0_51 = arith.constant 0 : index
    %148 = vector.load %arg6[%c0_50, %c0_51] : memref<1x2xf32, #tpu.memory_space<vmem>>, vector<1x2xf32>
    %149 = vector.broadcast %148 : vector<1x2xf32> to vector<64x2xf32>
    %150 = arith.addf %147, %149 : vector<64x2xf32>
    %c0_52 = arith.constant 0 : index
    %c0_53 = arith.constant 0 : index
    %c4 = arith.constant 4 : index
    %c0_54 = arith.constant 0 : index
    %c0_55 = arith.constant 0 : index
    %151 = vector.load %arg7[%c0_52, %c0_53, %c4, %c0_54, %c0_55] : memref<1x1x6x64x2xf32, #tpu.memory_space<vmem>>, vector<1x1x1x64x2xf32>
    %152 = vector.shape_cast %151 : vector<1x1x1x64x2xf32> to vector<64x2xf32>
    %153 = vector.shape_cast %150 : vector<64x2xf32> to vector<1x1x1x64x2xf32>
    tpu.vector_store %arg7[%c0_52, %c0_53, %c4, %c0_54, %c0_55], %153 {strides = array<i32>} : memref<1x1x6x64x2xf32, #tpu.memory_space<vmem>>, vector<1x1x1x64x2xf32>,
    %154 = vector.extract_strided_slice %58 {offsets = [1, 4, 32], sizes = [8, 8, 16], strides = [1, 1, 1]} : vector<10x16x128xbf16> to vector<8x8x16xbf16>
    %155 = vector.extract_strided_slice %58 {offsets = [1, 4, 48], sizes = [8, 8, 16], strides = [1, 1, 1]} : vector<10x16x128xbf16> to vector<8x8x16xbf16>
    %156 = vector.extract_strided_slice %58 {offsets = [1, 5, 32], sizes = [8, 8, 16], strides = [1, 1, 1]} : vector<10x16x128xbf16> to vector<8x8x16xbf16>
    %157 = vector.extract_strided_slice %58 {offsets = [1, 4, 64], sizes = [8, 8, 16], strides = [1, 1, 1]} : vector<10x16x128xbf16> to vector<8x8x16xbf16>
    %158 = vector.extract_strided_slice %58 {offsets = [1, 4, 80], sizes = [8, 8, 16], strides = [1, 1, 1]} : vector<10x16x128xbf16> to vector<8x8x16xbf16>
    %159 = vector.extract_strided_slice %58 {offsets = [1, 5, 64], sizes = [8, 8, 16], strides = [1, 1, 1]} : vector<10x16x128xbf16> to vector<8x8x16xbf16>
    %160 = vector.extract_strided_slice %58 {offsets = [2, 4, 0], sizes = [8, 8, 16], strides = [1, 1, 1]} : vector<10x16x128xbf16> to vector<8x8x16xbf16>
    %161 = vector.extract_strided_slice %58 {offsets = [2, 4, 16], sizes = [8, 8, 16], strides = [1, 1, 1]} : vector<10x16x128xbf16> to vector<8x8x16xbf16>
    %162 = vector.extract_strided_slice %58 {offsets = [2, 5, 0], sizes = [8, 8, 16], strides = [1, 1, 1]} : vector<10x16x128xbf16> to vector<8x8x16xbf16>
    %163 = tpu.concatenate %154, %155, %156, %157, %158, %159, %160, %161, %162 in 2 : vector<8x8x16xbf16>, vector<8x8x16xbf16>, vector<8x8x16xbf16>, vector<8x8x16xbf16>, vector<8x8x16xbf16>, vector<8x8x16xbf16>, vector<8x8x16xbf16>, vector<8x8x16xbf16>, vector<8x8x16xbf16> -> vector<8x8x144xbf16>
    %164 = vector.shape_cast %163 : vector<8x8x144xbf16> to vector<64x144xbf16>
    %c0_56 = arith.constant 0 : index
    %c0_57 = arith.constant 0 : index
    %165 = vector.load %arg5[%c0_56, %c0_57] : memref<144x2xbf16, #tpu.memory_space<vmem>>, vector<144x2xbf16>
    %cst_58 = arith.constant dense<0.000000e+00> : vector<64x2xf32>
    %166 = tpu.matmul %164, %165, %cst_58 {dimension_numbers = #tpu.dot_dimension_numbers<[1], [0], [0], [1], [0, 0, 1, 1], [], []>} : vector<64x144xbf16>, vector<144x2xbf16>, vector<64x2xf32> -> vector<64x2xf32>
    %c0_59 = arith.constant 0 : index
    %c0_60 = arith.constant 0 : index
    %167 = vector.load %arg6[%c0_59, %c0_60] : memref<1x2xf32, #tpu.memory_space<vmem>>, vector<1x2xf32>
    %168 = vector.broadcast %167 : vector<1x2xf32> to vector<64x2xf32>
    %169 = arith.addf %166, %168 : vector<64x2xf32>
    %c0_61 = arith.constant 0 : index
    %c0_62 = arith.constant 0 : index
    %c5 = arith.constant 5 : index
    %c0_63 = arith.constant 0 : index
    %c0_64 = arith.constant 0 : index
    %170 = vector.load %arg7[%c0_61, %c0_62, %c5, %c0_63, %c0_64] : memref<1x1x6x64x2xf32, #tpu.memory_space<vmem>>, vector<1x1x1x64x2xf32>
    %171 = vector.shape_cast %170 : vector<1x1x1x64x2xf32> to vector<64x2xf32>
    %172 = vector.shape_cast %169 : vector<64x2xf32> to vector<1x1x1x64x2xf32>
    tpu.vector_store %arg7[%c0_61, %c0_62, %c5, %c0_63, %c0_64], %172 {strides = array<i32>} : memref<1x1x6x64x2xf32, #tpu.memory_space<vmem>>, vector<1x1x1x64x2xf32>,
    return
  }
  func.func @transform_0(%arg0: i32, %arg1: i32) -> (i32, i32, i32, i32, i32) {
    %c0_i32 = arith.constant 0 : i32
    %c0_i32_0 = arith.constant 0 : i32
    %c0_i32_1 = arith.constant 0 : i32
    %c0_i32_2 = arith.constant 0 : i32
    return %arg0, %arg1, %c0_i32, %c0_i32_0, %c0_i32_1 : i32, i32, i32, i32, i32
  }
  func.func @transform_1(%arg0: i32, %arg1: i32) -> (i32, i32) {
    %c0_i32 = arith.constant 0 : i32
    %c0_i32_0 = arith.constant 0 : i32
    %c0_i32_1 = arith.constant 0 : i32
    return %c0_i32, %c0_i32_0 : i32, i32
  }
  func.func @transform_2(%arg0: i32, %arg1: i32) -> (i32, i32) {
    %c0_i32 = arith.constant 0 : i32
    %c0_i32_0 = arith.constant 0 : i32
    %c0_i32_1 = arith.constant 0 : i32
    return %c0_i32, %c0_i32_0 : i32, i32
  }
  func.func @transform_3(%arg0: i32, %arg1: i32) -> (i32, i32) {
    %c0_i32 = arith.constant 0 : i32
    %c0_i32_0 = arith.constant 0 : i32
    %c0_i32_1 = arith.constant 0 : i32
    return %c0_i32, %c0_i32_0 : i32, i32
  }
  func.func @transform_4(%arg0: i32, %arg1: i32) -> (i32, i32) {
    %c0_i32 = arith.constant 0 : i32
    %c0_i32_0 = arith.constant 0 : i32
    %c0_i32_1 = arith.constant 0 : i32
    return %c0_i32, %c0_i32_0 : i32, i32
  }
  func.func @transform_5(%arg0: i32, %arg1: i32) -> (i32, i32, i32, i32, i32) {
    %c0_i32 = arith.constant 0 : i32
    %c0_i32_0 = arith.constant 0 : i32
    %c0_i32_1 = arith.constant 0 : i32
    %c0_i32_2 = arith.constant 0 : i32
    return %arg0, %arg1, %c0_i32, %c0_i32_0, %c0_i32_1 : i32, i32, i32, i32, i32
  }
}

</mosaic_0001>

<llo_original>
// kernel: patch_de_embed_forward.1
$region0: #{patch_de_embed_forward.1}
  #allocation0 [shape = 'u32[]', space=smem, size = 0x4, offset = 0x4, fixed_abs, tag = 'smem constant byte address 0x4 - core index']
  #allocation1 [shape = 'u32[144,128]{1,0:T(1,128)}', space=vmem, size = 0x12000, scoped, tag = 'internal scratch']
  %s0 = inlined_call_operand.vmem [shape: bf16[2,2,14,20,16], index: 0, kind: input, shape index: {}]
  %s1 = inlined_call_operand.vmem [shape: bf16[400,128], index: 1, kind: input, shape index: {}]
  %s2 = inlined_call_operand.vmem [shape: f32[1,128], index: 2, kind: input, shape index: {}]
  %s3 = inlined_call_operand.vmem [shape: bf16[144,2], index: 3, kind: input, shape index: {}]
  %s4 = inlined_call_operand.vmem [shape: f32[1,2], index: 4, kind: input, shape index: {}]
  %s5 = inlined_call_operand.vmem [shape: f32[2,2,6,64,2], index: 5, kind: output, shape index: {}]
  %s6 = sld [smem:[#allocation0]]
  $region53: #{patch_de_embed_forward.1} parent=0
    _
  %s8 = ssub.s32 1, %s6
  %s9 = scalar_select 0, %s8, %s6
  loop: start=0, step=1, limit=6
  $region2: #{patch_de_embed_forward.1} parent=0 // loop_pre_header
    _
  $region3: #{patch_de_embed_forward.1} parent=0 // loop_header
    %s11 = sphi 0, %s15
    %p12 = scmp.ge.s32.totalorder %s11, 6
    %s18 = sphi 0, %s30
    %s19 = sphi 0, %s26
    %s20 = sphi 0, %s18
    %s21 = sphi 0, %s19
    %s22 = sphi 0, %s20
    %s23 = sphi 0, %s21
    %s35 = sphi 0, %s37
    %s38 = sphi 0, %s35
    %s39 = sphi 0, %s38
    %s55 = sphi 0, %s39
    %s59 = sphi 0, %s59
    %s61 = sphi 0, %s59
    %s62 = sphi 0, %s61
    %s76 = sphi 0, %s62
    %s80 = sphi 0, %s80
    %s82 = sphi 0, %s80
    %s83 = sphi 0, %s82
    %s97 = sphi 0, %s83
    %s101 = sphi 0, %s101
    %s103 = sphi 0, %s101
    %s104 = sphi 0, %s103
    %s118 = sphi 0, %s104
    %s122 = sphi 0, %s122
    %s124 = sphi 0, %s122
    %s125 = sphi 0, %s124
    %s139 = sphi 0, %s125
    %s147 = sphi 0, %s149
    %s150 = sphi 0, %s147
    %s151 = sphi 0, %s150
    %s167 = sphi 0, %s151
  $region4: #{patch_de_embed_forward.1} parent=0 // loop_header_branch
    %14 = sbr.rel (%p12) target = $region8
  $region5: #{patch_de_embed_forward.1} parent=0 // loop_body
    %s16 = ssub.s32 %s11, 1
    %s17 = ssub.s32 %s11, 2
    %s24 = sadd.s32 1, %s19
    %p25 = scmp.ge.s32.totalorder %s24, 2
    %s26 = scalar_select %p25, 0, %s24
    %s27 = sadd.s32 1, %s18
    %s28 = scalar_select %p25, %s27, %s18
    %p29 = scmp.ge.s32.totalorder %s28, 2
    %s30 = scalar_select %p29, 0, %s28
    %s31 = ssub.s32 %s18, %s30
    %s32 = ssub.s32 %s19, %s26
    %s33 = sor.u32 %s31, %s32
    %p34 = scmp.eq.s32.totalorder %s33, 0
    %s36 = sadd.s32 %s35, 1
    %s37 = scalar_select %p34, %s35, %s36
    %p40 = pneg %p34
    %p41 = scmp.eq.s32.totalorder %s11, 3
    %p42 = por %p40, %p41
    %p43 = scmp.ne.s32.totalorder %s35, %s38
    %p44 = scmp.eq.s32.totalorder %s11, 0
    %p45 = por %p43, %p44
    %p46 = scmp.ne.s32.totalorder %s35, %s38
    %p47 = scmp.eq.s32.totalorder %s16, 3
    %p48 = por %p46, %p47
    %p49 = scmp.ne.s32.totalorder %s38, %s39
    %p50 = scmp.eq.s32.totalorder %s16, 0
    %p51 = por %p49, %p50
    %p52 = scmp.ne.s32.totalorder %s38, %s39
    %p53 = scmp.eq.s32.totalorder %s17, 3
    %p54 = por %p52, %p53
    %p56 = scmp.ne.s32.totalorder %s39, %s55
    %p57 = scmp.eq.s32.totalorder %s17, 0
    %p58 = por %p56, %p57
    %s60 = sadd.s32 %s59, 1
    %p63 = scmp.eq.s32.totalorder %s11, 3
    %p64 = scmp.ne.s32.totalorder %s59, %s61
    %p65 = scmp.eq.s32.totalorder %s11, 0
    %p66 = por %p64, %p65
    %p67 = scmp.ne.s32.totalorder %s59, %s61
    %p68 = scmp.eq.s32.totalorder %s16, 3
    %p69 = por %p67, %p68
    %p70 = scmp.ne.s32.totalorder %s61, %s62
    %p71 = scmp.eq.s32.totalorder %s16, 0
    %p72 = por %p70, %p71
    %p73 = scmp.ne.s32.totalorder %s61, %s62
    %p74 = scmp.eq.s32.totalorder %s17, 3
    %p75 = por %p73, %p74
    %p77 = scmp.ne.s32.totalorder %s62, %s76
    %p78 = scmp.eq.s32.totalorder %s17, 0
    %p79 = por %p77, %p78
    %s81 = sadd.s32 %s80, 1
    %p84 = scmp.eq.s32.totalorder %s11, 3
    %p85 = scmp.ne.s32.totalorder %s80, %s82
    %p86 = scmp.eq.s32.totalorder %s11, 0
    %p87 = por %p85, %p86
    %p88 = scmp.ne.s32.totalorder %s80, %s82
    %p89 = scmp.eq.s32.totalorder %s16, 3
    %p90 = por %p88, %p89
    %p91 = scmp.ne.s32.totalorder %s82, %s83
    %p92 = scmp.eq.s32.totalorder %s16, 0
    %p93 = por %p91, %p92
    %p94 = scmp.ne.s32.totalorder %s82, %s83
    %p95 = scmp.eq.s32.totalorder %s17, 3
    %p96 = por %p94, %p95
    %p98 = scmp.ne.s32.totalorder %s83, %s97
    %p99 = scmp.eq.s32.totalorder %s17, 0
    %p100 = por %p98, %p99
    %s102 = sadd.s32 %s101, 1
    %p105 = scmp.eq.s32.totalorder %s11, 3
    %p106 = scmp.ne.s32.totalorder %s101, %s103
    %p107 = scmp.eq.s32.totalorder %s11, 0
    %p108 = por %p106, %p107
    %p109 = scmp.ne.s32.totalorder %s101, %s103
    %p110 = scmp.eq.s32.totalorder %s16, 3
    %p111 = por %p109, %p110
    %p112 = scmp.ne.s32.totalorder %s103, %s104
    %p113 = scmp.eq.s32.totalorder %s16, 0
    %p114 = por %p112, %p113
    %p115 = scmp.ne.s32.totalorder %s103, %s104
    %p116 = scmp.eq.s32.totalorder %s17, 3
    %p117 = por %p115, %p116
    %p119 = scmp.ne.s32.totalorder %s104, %s118
    %p120 = scmp.eq.s32.totalorder %s17, 0
    %p121 = por %p119, %p120
    %s123 = sadd.s32 %s122, 1
    %p126 = scmp.eq.s32.totalorder %s11, 3
    %p127 = scmp.ne.s32.totalorder %s122, %s124
    %p128 = scmp.eq.s32.totalorder %s11, 0
    %p129 = por %p127, %p128
    %p130 = scmp.ne.s32.totalorder %s122, %s124
    %p131 = scmp.eq.s32.totalorder %s16, 3
    %p132 = por %p130, %p131
    %p133 = scmp.ne.s32.totalorder %s124, %s125
    %p134 = scmp.eq.s32.totalorder %s16, 0
    %p135 = por %p133, %p134
    %p136 = scmp.ne.s32.totalorder %s124, %s125
    %p137 = scmp.eq.s32.totalorder %s17, 3
    %p138 = por %p136, %p137
    %p140 = scmp.ne.s32.totalorder %s125, %s139
    %p141 = scmp.eq.s32.totalorder %s17, 0
    %p142 = por %p140, %p141
    %s143 = ssub.s32 %s18, %s30
    %s144 = ssub.s32 %s19, %s26
    %s145 = sor.u32 %s143, %s144
    %p146 = scmp.eq.s32.totalorder %s145, 0
    %s148 = sadd.s32 %s147, 1
    %s149 = scalar_select %p146, %s147, %s148
    %p152 = pneg %p146
    %p153 = scmp.eq.s32.totalorder %s11, 3
    %p154 = por %p152, %p153
    %p155 = scmp.ne.s32.totalorder %s147, %s150
    %p156 = scmp.eq.s32.totalorder %s11, 0
    %p157 = por %p155, %p156
    %p158 = scmp.ne.s32.totalorder %s147, %s150
    %p159 = scmp.eq.s32.totalorder %s16, 3
    %p160 = por %p158, %p159
    %p161 = scmp.ne.s32.totalorder %s150, %s151
    %p162 = scmp.eq.s32.totalorder %s16, 0
    %p163 = por %p161, %p162
    %p164 = scmp.ne.s32.totalorder %s150, %s151
    %p165 = scmp.eq.s32.totalorder %s17, 3
    %p166 = por %p164, %p165
    %p168 = scmp.ne.s32.totalorder %s151, %s167
    %p169 = scmp.eq.s32.totalorder %s17, 0
    %p170 = por %p168, %p169
    %p171 = scmp.le.s32.totalorder 1, %s11
    %p172 = scmp.lt.s32.totalorder %s11, 5
    %p173 = pnand %p171, %p172
    %p174 = pneg %p173
    // Predicated region
    $region9: #{patch_de_embed_forward.1} parent=5 // pred_check
      _
    $region10: #{patch_de_embed_forward.1} parent=5 // pred_check_branch
      %176 = sbr.rel (%p173) target = $region12
    $region11: #{patch_de_embed_forward.1} parent=5 // pred_region
      %s177 = ssub.s32 %s11, 1
      // Predicated region
      $region13: #{patch_de_embed_forward.1} parent=11 // pred_check
        %p178 = pneg %p72
      $region14: #{patch_de_embed_forward.1} parent=11 // pred_check_branch
        %180 = sbr.rel (%p178) target = $region16
      $region15: #{patch_de_embed_forward.1} parent=11 // pred_region
        _
      $region16: #{patch_de_embed_forward.1} parent=11 // pred_fallthru
        _
      // Predicated region
      $region17: #{patch_de_embed_forward.1} parent=11 // pred_check
        %p181 = pneg %p93
      $region18: #{patch_de_embed_forward.1} parent=11 // pred_check_branch
        %183 = sbr.rel (%p181) target = $region20
      $region19: #{patch_de_embed_forward.1} parent=11 // pred_region
        _
      $region20: #{patch_de_embed_forward.1} parent=11 // pred_fallthru
        _
      // Predicated region
      $region21: #{patch_de_embed_forward.1} parent=11 // pred_check
        %p184 = pneg %p114
      $region22: #{patch_de_embed_forward.1} parent=11 // pred_check_branch
        %186 = sbr.rel (%p184) target = $region24
      $region23: #{patch_de_embed_forward.1} parent=11 // pred_region
        _
      $region24: #{patch_de_embed_forward.1} parent=11 // pred_fallthru
        _
      // Predicated region
      $region25: #{patch_de_embed_forward.1} parent=11 // pred_check
        %p187 = pneg %p135
      $region26: #{patch_de_embed_forward.1} parent=11 // pred_check_branch
        %189 = sbr.rel (%p187) target = $region28
      $region27: #{patch_de_embed_forward.1} parent=11 // pred_region
        _
      $region28: #{patch_de_embed_forward.1} parent=11 // pred_fallthru
        _
    $region12: #{patch_de_embed_forward.1} parent=5 // pred_fallthru
      _
    %p190 = scmp.lt.s32.totalorder %s11, 4
    // Predicated region
    $region29: #{patch_de_embed_forward.1} parent=5 // pred_check
      %p191 = pneg %p190
    $region30: #{patch_de_embed_forward.1} parent=5 // pred_check_branch
      %193 = sbr.rel (%p191) target = $region32
    $region31: #{patch_de_embed_forward.1} parent=5 // pred_region
      // Predicated region
      $region33: #{patch_de_embed_forward.1} parent=31 // pred_check
        %p194 = pneg %p45
      $region34: #{patch_de_embed_forward.1} parent=31 // pred_check_branch
        %196 = sbr.rel (%p194) target = $region36
      $region35: #{patch_de_embed_forward.1} parent=31 // pred_region
        %p197 = scmp.lt.s32.totalorder %s18, 1
        %s198 = scalar_select %p197, %s18, 1
        %p199 = scmp.lt.s32.totalorder %s19, 1
        %s200 = scalar_select %p199, %s19, 1
        %s201 = smul.addr %s200, 42
        %s202 = smul.addr %s198, 84
        %s203 = sadd.s32 %s201, %s202
        %s204 = smul.addr %s203, 4
        %s205 = scalar_lea.vmem %s0, %s204
      $region36: #{patch_de_embed_forward.1} parent=31 // pred_fallthru
        _
    $region32: #{patch_de_embed_forward.1} parent=5 // pred_fallthru
      _
    %p206 = scmp.le.s32.totalorder 1, %s11
    %p207 = scmp.lt.s32.totalorder %s11, 5
    %p208 = pnand %p206, %p207
    %p209 = pneg %p208
    // Predicated region
    $region37: #{patch_de_embed_forward.1} parent=5 // pred_check
      _
    $region38: #{patch_de_embed_forward.1} parent=5 // pred_check_branch
      %211 = sbr.rel (%p208) target = $region40
    $region39: #{patch_de_embed_forward.1} parent=5 // pred_region
      %s212 = ssub.s32 %s11, 1
      %p213 = scmp.lt.s32.totalorder %s20, 1
      %s214 = scalar_select %p213, %s20, 1
      %p215 = scmp.lt.s32.totalorder %s21, 1
      %s216 = scalar_select %p215, %s21, 1
      %s217 = smul.addr %s216, 42
      %s218 = smul.addr %s214, 84
      %s219 = sadd.s32 %s217, %s218
      %s220 = smul.addr %s219, 4
      %s221 = scalar_lea.vmem %s0, %s220
      %p222 = pneg %p51
      %p223 = pneg %p48
      %p224 = pneg %p72
      %p225 = pneg %p69
      %p226 = pneg %p93
      %p227 = pneg %p90
      %p228 = pneg %p114
      %p229 = pneg %p111
      %p230 = pneg %p135
      %p231 = pneg %p132
      %p232 = pneg %p163
      %p233 = pneg %p160
      %p234 = scmp.lt.s32.totalorder %s20, 1
      %s235 = scalar_select %p234, %s20, 1
      %p236 = scmp.lt.s32.totalorder %s21, 1
      %s237 = scalar_select %p236, %s21, 1
      %s238 = smul.addr %s237, 48
      %s239 = smul.addr %s235, 96
      %s240 = sadd.s32 %s238, %s239
      %s241 = smul.addr %s240, 8
      %s242 = scalar_lea.vmem %s5, %s241
      %p243 = scmp.lt.s32.totalorder %s20, 1
      %s244 = scalar_select %p243, %s20, 1
      %p245 = scmp.lt.s32.totalorder %s21, 1
      %s246 = scalar_select %p245, %s21, 1
      %s247 = smul.addr %s246, 42
      %s248 = smul.addr %s244, 84
      %s249 = sadd.s32 %s247, %s248
      %s250 = smul.addr %s249, 4
      %s251 = scalar_lea.vmem %s0, %s250
      %p252 = scmp.lt.s32.totalorder %s20, 1
      %s253 = scalar_select %p252, %s20, 1
      %p254 = scmp.lt.s32.totalorder %s21, 1
      %s255 = scalar_select %p254, %s21, 1
      %s256 = smul.addr %s255, 48
      %s257 = smul.addr %s253, 96
      %s258 = sadd.s32 %s256, %s257
      %s259 = smul.addr %s258, 8
      %s260 = scalar_lea.vmem %s5, %s259
      %v262 = vld [vmem:[%s251] sm:$0xf]
      %v263 = vld [vmem:[%s251 + $0x4] sm:$0xf]
      %v264 = vld [vmem:[%s251 + $0x8] sm:$0x3]
      %v265 = vld [vmem:[%s251 + $0xc] sm:$0xf]
      %v266 = vld [vmem:[%s251 + $0x10] sm:$0xf]
      %v267 = vld [vmem:[%s251 + $0x14] sm:$0x3]
      %v268 = vld [vmem:[%s251 + $0x18] sm:$0xf]
      %v269 = vld [vmem:[%s251 + $0x1c] sm:$0xf]
      %v270 = vld [vmem:[%s251 + $0x20] sm:$0x3]
      %v271 = vld [vmem:[%s251 + $0x24] sm:$0xf]
      %v272 = vld [vmem:[%s251 + $0x28] sm:$0xf]
      %v273 = vld [vmem:[%s251 + $0x2c] sm:$0x3]
      %v274 = vld [vmem:[%s251 + $0x30] sm:$0xf]
      %v275 = vld [vmem:[%s251 + $0x34] sm:$0xf]
      %v276 = vld [vmem:[%s251 + $0x38] sm:$0x3]
      %v277 = vld [vmem:[%s251 + $0x3c] sm:$0xf]
      %v278 = vld [vmem:[%s251 + $0x40] sm:$0xf]
      %v279 = vld [vmem:[%s251 + $0x44] sm:$0x3]
      %v280 = vld [vmem:[%s251 + $0x48] sm:$0xf]
      %v281 = vld [vmem:[%s251 + $0x4c] sm:$0xf]
      %v282 = vld [vmem:[%s251 + $0x50] sm:$0x3]
      %v283 = vld [vmem:[%s251 + $0x54] sm:$0xf]
      %v284 = vld [vmem:[%s251 + $0x58] sm:$0xf]
      %v285 = vld [vmem:[%s251 + $0x5c] sm:$0x3]
      %v286 = vld [vmem:[%s251 + $0x60] sm:$0xf]
      %v287 = vld [vmem:[%s251 + $0x64] sm:$0xf]
      %v288 = vld [vmem:[%s251 + $0x68] sm:$0x3]
      %v289 = vld [vmem:[%s251 + $0x6c] sm:$0xf]
      %v290 = vld [vmem:[%s251 + $0x70] sm:$0xf]
      %v291 = vld [vmem:[%s251 + $0x74] sm:$0x3]
      %v292 = vld [vmem:[%s251 + $0x78] sm:$0xf]
      %v293 = vld [vmem:[%s251 + $0x7c] sm:$0xf]
      %v294 = vld [vmem:[%s251 + $0x80] sm:$0x3]
      %v295 = vld [vmem:[%s251 + $0x84] sm:$0xf]
      %v296 = vld [vmem:[%s251 + $0x88] sm:$0xf]
      %v297 = vld [vmem:[%s251 + $0x8c] sm:$0x3]
      %v298 = vld [vmem:[%s251 + $0x90] sm:$0xf]
      %v299 = vld [vmem:[%s251 + $0x94] sm:$0xf]
      %v300 = vld [vmem:[%s251 + $0x98] sm:$0x3]
      %v301 = vld [vmem:[%s251 + $0x9c] sm:$0xf]
      %v302 = vld [vmem:[%s251 + $0xa0] sm:$0xf]
      %v303 = vld [vmem:[%s251 + $0xa4] sm:$0x3]
      %v324 = vunpack.c.l.b16 %v262
      %v325 = vunpack.c.l.b16 %v263
      %v326 = vunpack.c.l.b16 %v265
      %v327 = vunpack.c.l.b16 %v266
      %v328 = vunpack.c.l.b16 %v268
      %v329 = vunpack.c.l.b16 %v269
      %v330 = vunpack.c.l.b16 %v271
      %v331 = vunpack.c.l.b16 %v272
      %v332 = vunpack.c.l.b16 %v274
      %v333 = vunpack.c.l.b16 %v275
      %v334 = vunpack.c.l.b16 %v277
      %v335 = vunpack.c.l.b16 %v278
      %v336 = vunpack.c.l.b16 %v280
      %v337 = vunpack.c.l.b16 %v281
      %v338 = vunpack.c.l.b16 %v283
      %v339 = vunpack.c.l.b16 %v284
      %v340 = vunpack.c.l.b16 %v286
      %v341 = vunpack.c.l.b16 %v287
      %v342 = vunpack.c.l.b16 %v289
      %v343 = vunpack.c.l.b16 %v290
      %v344 = vpack.c.b16 %v325, %v324
      %v345 = vpack.c.b16 %v327, %v326
      %v346 = vpack.c.b16 %v329, %v328
      %v347 = vpack.c.b16 %v331, %v330
      %v348 = vpack.c.b16 %v333, %v332
      %v349 = vpack.c.b16 %v335, %v334
      %v350 = vpack.c.b16 %v337, %v336
      %v351 = vpack.c.b16 %v339, %v338
      %v352 = vpack.c.b16 %v341, %v340
      %v353 = vpack.c.b16 %v343, %v342
      %v364 = vunpack.c.l.b16 %v264
      %v365 = vunpack.c.l.b16 %v267
      %v366 = vunpack.c.l.b16 %v270
      %v367 = vunpack.c.l.b16 %v273
      %v368 = vunpack.c.l.b16 %v276
      %v369 = vunpack.c.l.b16 %v279
      %v370 = vunpack.c.l.b16 %v282
      %v371 = vunpack.c.l.b16 %v285
      %v372 = vunpack.c.l.b16 %v288
      %v373 = vunpack.c.l.b16 %v291
      %v374 = vpack.c.b16 %v364, %v364
      %v375 = vpack.c.b16 %v365, %v365
      %v376 = vpack.c.b16 %v366, %v366
      %v377 = vpack.c.b16 %v367, %v367
      %v378 = vpack.c.b16 %v368, %v368
      %v379 = vpack.c.b16 %v369, %v369
      %v380 = vpack.c.b16 %v370, %v370
      %v381 = vpack.c.b16 %v371, %v371
      %v382 = vpack.c.b16 %v372, %v372
      %v383 = vpack.c.b16 %v373, %v373
      %vm384 = vsmask.f32 7424
      %v386 = vshrl.u32 %v344, 16
      %v388 = vshll.u32 %v344, 16
      %v390 = vrot.slane %v388, 1
      %v391 = vor.u32 %v386, %v390
      %v393 = vshll.u32 %v374, 16
      %v395 = vrot.slane %v393, 1
      %v396 = vsel %vm384, %v391, %v395
      %v398 = vshrl.u32 %v345, 16
      %v400 = vshll.u32 %v345, 16
      %v402 = vrot.slane %v400, 1
      %v403 = vor.u32 %v398, %v402
      %v405 = vshll.u32 %v375, 16
      %v407 = vrot.slane %v405, 1
      %v408 = vsel %vm384, %v403, %v407
      %v410 = vshrl.u32 %v346, 16
      %v412 = vshll.u32 %v346, 16
      %v414 = vrot.slane %v412, 1
      %v415 = vor.u32 %v410, %v414
      %v417 = vshll.u32 %v376, 16
      %v419 = vrot.slane %v417, 1
      %v420 = vsel %vm384, %v415, %v419
      %v422 = vshrl.u32 %v347, 16
      %v424 = vshll.u32 %v347, 16
      %v426 = vrot.slane %v424, 1
      %v427 = vor.u32 %v422, %v426
      %v429 = vshll.u32 %v377, 16
      %v431 = vrot.slane %v429, 1
      %v432 = vsel %vm384, %v427, %v431
      %v434 = vshrl.u32 %v348, 16
      %v436 = vshll.u32 %v348, 16
      %v438 = vrot.slane %v436, 1
      %v439 = vor.u32 %v434, %v438
      %v441 = vshll.u32 %v378, 16
      %v443 = vrot.slane %v441, 1
      %v444 = vsel %vm384, %v439, %v443
      %v446 = vshrl.u32 %v349, 16
      %v448 = vshll.u32 %v349, 16
      %v450 = vrot.slane %v448, 1
      %v451 = vor.u32 %v446, %v450
      %v453 = vshll.u32 %v379, 16
      %v455 = vrot.slane %v453, 1
      %v456 = vsel %vm384, %v451, %v455
      %v458 = vshrl.u32 %v350, 16
      %v460 = vshll.u32 %v350, 16
      %v462 = vrot.slane %v460, 1
      %v463 = vor.u32 %v458, %v462
      %v465 = vshll.u32 %v380, 16
      %v467 = vrot.slane %v465, 1
      %v468 = vsel %vm384, %v463, %v467
      %v470 = vshrl.u32 %v351, 16
      %v472 = vshll.u32 %v351, 16
      %v474 = vrot.slane %v472, 1
      %v475 = vor.u32 %v470, %v474
      %v477 = vshll.u32 %v381, 16
      %v479 = vrot.slane %v477, 1
      %v480 = vsel %vm384, %v475, %v479
      %v482 = vshrl.u32 %v352, 16
      %v484 = vshll.u32 %v352, 16
      %v486 = vrot.slane %v484, 1
      %v487 = vor.u32 %v482, %v486
      %v489 = vshll.u32 %v382, 16
      %v491 = vrot.slane %v489, 1
      %v492 = vsel %vm384, %v487, %v491
      %v494 = vshrl.u32 %v353, 16
      %v496 = vshll.u32 %v353, 16
      %v498 = vrot.slane %v496, 1
      %v499 = vor.u32 %v494, %v498
      %v501 = vshll.u32 %v383, 16
      %v503 = vrot.slane %v501, 1
      %v504 = vsel %vm384, %v499, %v503
      %505 = vrot.lane.b32.xlu0 %v396, 16
      %v506 = vpop.permute.xlu0 %505
      %507 = vrot.lane.b32.xlu0 %v408, 16
      %v508 = vpop.permute.xlu0 %507
      %509 = vrot.lane.b32.xlu0 %v420, 16
      %v510 = vpop.permute.xlu0 %509
      %511 = vrot.lane.b32.xlu0 %v432, 16
      %v512 = vpop.permute.xlu0 %511
      %513 = vrot.lane.b32.xlu0 %v444, 16
      %v514 = vpop.permute.xlu0 %513
      %515 = vrot.lane.b32.xlu0 %v456, 16
      %v516 = vpop.permute.xlu0 %515
      %517 = vrot.lane.b32.xlu0 %v468, 16
      %v518 = vpop.permute.xlu0 %517
      %519 = vrot.lane.b32.xlu0 %v480, 16
      %v520 = vpop.permute.xlu0 %519
      %521 = vrot.lane.b32.xlu0 %v492, 16
      %v522 = vpop.permute.xlu0 %521
      %523 = vrot.lane.b32.xlu0 %v504, 16
      %v524 = vpop.permute.xlu0 %523
      %vm525 = vcmask 1046528
      %v526 = vrot.slane %v344, 1
      %v527 = vrot.slane %v374, 1
      %v528 = vsel %vm525, %v526, %v527
      %v529 = vrot.slane %v345, 1
      %v530 = vrot.slane %v375, 1
      %v531 = vsel %vm525, %v529, %v530
      %v532 = vrot.slane %v346, 1
      %v533 = vrot.slane %v376, 1
      %v534 = vsel %vm525, %v532, %v533
      %v535 = vrot.slane %v347, 1
      %v536 = vrot.slane %v377, 1
      %v537 = vsel %vm525, %v535, %v536
      %v538 = vrot.slane %v348, 1
      %v539 = vrot.slane %v378, 1
      %v540 = vsel %vm525, %v538, %v539
      %v541 = vrot.slane %v349, 1
      %v542 = vrot.slane %v379, 1
      %v543 = vsel %vm525, %v541, %v542
      %v544 = vrot.slane %v350, 1
      %v545 = vrot.slane %v380, 1
      %v546 = vsel %vm525, %v544, %v545
      %v547 = vrot.slane %v351, 1
      %v548 = vrot.slane %v381, 1
      %v549 = vsel %vm525, %v547, %v548
      %v550 = vrot.slane %v352, 1
      %v551 = vrot.slane %v382, 1
      %v552 = vsel %vm525, %v550, %v551
      %v553 = vrot.slane %v353, 1
      %v554 = vrot.slane %v383, 1
      %v555 = vsel %vm525, %v553, %v554
      %556 = vrot.lane.b32.xlu0 %v528, 32
      %v557 = vpop.permute.xlu0 %556
      %558 = vrot.lane.b32.xlu0 %v531, 32
      %v559 = vpop.permute.xlu0 %558
      %560 = vrot.lane.b32.xlu0 %v534, 32
      %v561 = vpop.permute.xlu0 %560
      %562 = vrot.lane.b32.xlu0 %v537, 32
      %v563 = vpop.permute.xlu0 %562
      %564 = vrot.lane.b32.xlu0 %v540, 32
      %v565 = vpop.permute.xlu0 %564
      %566 = vrot.lane.b32.xlu0 %v543, 32
      %v567 = vpop.permute.xlu0 %566
      %568 = vrot.lane.b32.xlu0 %v546, 32
      %v569 = vpop.permute.xlu0 %568
      %570 = vrot.lane.b32.xlu0 %v549, 32
      %v571 = vpop.permute.xlu0 %570
      %572 = vrot.lane.b32.xlu0 %v552, 32
      %v573 = vpop.permute.xlu0 %572
      %574 = vrot.lane.b32.xlu0 %v555, 32
      %v575 = vpop.permute.xlu0 %574
      %vm576 = vsmask.f32 6400
      %v577 = vrot.slane %v386, 1
      %v578 = vrot.slane %v388, 2
      %v579 = vor.u32 %v577, %v578
      %v580 = vshrl.u32 %v374, 16
      %v582 = vrot.slane %v580, 1
      %v583 = vrot.slane %v393, 2
      %v584 = vor.u32 %v582, %v583
      %v585 = vsel %vm576, %v579, %v584
      %v586 = vrot.slane %v398, 1
      %v587 = vrot.slane %v400, 2
      %v588 = vor.u32 %v586, %v587
      %v589 = vshrl.u32 %v375, 16
      %v591 = vrot.slane %v589, 1
      %v592 = vrot.slane %v405, 2
      %v593 = vor.u32 %v591, %v592
      %v594 = vsel %vm576, %v588, %v593
      %v595 = vrot.slane %v410, 1
      %v596 = vrot.slane %v412, 2
      %v597 = vor.u32 %v595, %v596
      %v598 = vshrl.u32 %v376, 16
      %v600 = vrot.slane %v598, 1
      %v601 = vrot.slane %v417, 2
      %v602 = vor.u32 %v600, %v601
      %v603 = vsel %vm576, %v597, %v602
      %v604 = vrot.slane %v422, 1
      %v605 = vrot.slane %v424, 2
      %v606 = vor.u32 %v604, %v605
      %v607 = vshrl.u32 %v377, 16
      %v609 = vrot.slane %v607, 1
      %v610 = vrot.slane %v429, 2
      %v611 = vor.u32 %v609, %v610
      %v612 = vsel %vm576, %v606, %v611
      %v613 = vrot.slane %v434, 1
      %v614 = vrot.slane %v436, 2
      %v615 = vor.u32 %v613, %v614
      %v616 = vshrl.u32 %v378, 16
      %v618 = vrot.slane %v616, 1
      %v619 = vrot.slane %v441, 2
      %v620 = vor.u32 %v618, %v619
      %v621 = vsel %vm576, %v615, %v620
      %v622 = vrot.slane %v446, 1
      %v623 = vrot.slane %v448, 2
      %v624 = vor.u32 %v622, %v623
      %v625 = vshrl.u32 %v379, 16
      %v627 = vrot.slane %v625, 1
      %v628 = vrot.slane %v453, 2
      %v629 = vor.u32 %v627, %v628
      %v630 = vsel %vm576, %v624, %v629
      %v631 = vrot.slane %v458, 1
      %v632 = vrot.slane %v460, 2
      %v633 = vor.u32 %v631, %v632
      %v634 = vshrl.u32 %v380, 16
      %v636 = vrot.slane %v634, 1
      %v637 = vrot.slane %v465, 2
      %v638 = vor.u32 %v636, %v637
      %v639 = vsel %vm576, %v633, %v638
      %v640 = vrot.slane %v470, 1
      %v641 = vrot.slane %v472, 2
      %v642 = vor.u32 %v640, %v641
      %v643 = vshrl.u32 %v381, 16
      %v645 = vrot.slane %v643, 1
      %v646 = vrot.slane %v477, 2
      %v647 = vor.u32 %v645, %v646
      %v648 = vsel %vm576, %v642, %v647
      %v649 = vrot.slane %v482, 1
      %v650 = vrot.slane %v484, 2
      %v651 = vor.u32 %v649, %v650
      %v652 = vshrl.u32 %v382, 16
      %v654 = vrot.slane %v652, 1
      %v655 = vrot.slane %v489, 2
      %v656 = vor.u32 %v654, %v655
      %v657 = vsel %vm576, %v651, %v656
      %v658 = vrot.slane %v494, 1
      %v659 = vrot.slane %v496, 2
      %v660 = vor.u32 %v658, %v659
      %v661 = vshrl.u32 %v383, 16
      %v663 = vrot.slane %v661, 1
      %v664 = vrot.slane %v501, 2
      %v665 = vor.u32 %v663, %v664
      %v666 = vsel %vm576, %v660, %v665
      %667 = vrot.lane.b32.xlu0 %v585, 48
      %v668 = vpop.permute.xlu0 %667
      %669 = vrot.lane.b32.xlu0 %v594, 48
      %v670 = vpop.permute.xlu0 %669
      %671 = vrot.lane.b32.xlu0 %v603, 48
      %v672 = vpop.permute.xlu0 %671
      %673 = vrot.lane.b32.xlu0 %v612, 48
      %v674 = vpop.permute.xlu0 %673
      %675 = vrot.lane.b32.xlu0 %v621, 48
      %v676 = vpop.permute.xlu0 %675
      %677 = vrot.lane.b32.xlu0 %v630, 48
      %v678 = vpop.permute.xlu0 %677
      %679 = vrot.lane.b32.xlu0 %v639, 48
      %v680 = vpop.permute.xlu0 %679
      %681 = vrot.lane.b32.xlu0 %v648, 48
      %v682 = vpop.permute.xlu0 %681
      %683 = vrot.lane.b32.xlu0 %v657, 48
      %v684 = vpop.permute.xlu0 %683
      %685 = vrot.lane.b32.xlu0 %v666, 48
      %v686 = vpop.permute.xlu0 %685
      %vm687 = vcmask 1045504
      %v688 = vrot.slane %v344, 2
      %v689 = vrot.slane %v374, 2
      %v690 = vsel %vm687, %v688, %v689
      %v691 = vrot.slane %v345, 2
      %v692 = vrot.slane %v375, 2
      %v693 = vsel %vm687, %v691, %v692
      %v694 = vrot.slane %v346, 2
      %v695 = vrot.slane %v376, 2
      %v696 = vsel %vm687, %v694, %v695
      %v697 = vrot.slane %v347, 2
      %v698 = vrot.slane %v377, 2
      %v699 = vsel %vm687, %v697, %v698
      %v700 = vrot.slane %v348, 2
      %v701 = vrot.slane %v378, 2
      %v702 = vsel %vm687, %v700, %v701
      %v703 = vrot.slane %v349, 2
      %v704 = vrot.slane %v379, 2
      %v705 = vsel %vm687, %v703, %v704
      %v706 = vrot.slane %v350, 2
      %v707 = vrot.slane %v380, 2
      %v708 = vsel %vm687, %v706, %v707
      %v709 = vrot.slane %v351, 2
      %v710 = vrot.slane %v381, 2
      %v711 = vsel %vm687, %v709, %v710
      %v712 = vrot.slane %v352, 2
      %v713 = vrot.slane %v382, 2
      %v714 = vsel %vm687, %v712, %v713
      %v715 = vrot.slane %v353, 2
      %v716 = vrot.slane %v383, 2
      %v717 = vsel %vm687, %v715, %v716
      %718 = vrot.lane.b32.xlu0 %v690, 64
      %v719 = vpop.permute.xlu0 %718
      %720 = vrot.lane.b32.xlu0 %v693, 64
      %v721 = vpop.permute.xlu0 %720
      %722 = vrot.lane.b32.xlu0 %v696, 64
      %v723 = vpop.permute.xlu0 %722
      %724 = vrot.lane.b32.xlu0 %v699, 64
      %v725 = vpop.permute.xlu0 %724
      %726 = vrot.lane.b32.xlu0 %v702, 64
      %v727 = vpop.permute.xlu0 %726
      %728 = vrot.lane.b32.xlu0 %v705, 64
      %v729 = vpop.permute.xlu0 %728
      %730 = vrot.lane.b32.xlu0 %v708, 64
      %v731 = vpop.permute.xlu0 %730
      %732 = vrot.lane.b32.xlu0 %v711, 64
      %v733 = vpop.permute.xlu0 %732
      %734 = vrot.lane.b32.xlu0 %v714, 64
      %v735 = vpop.permute.xlu0 %734
      %736 = vrot.lane.b32.xlu0 %v717, 64
      %v737 = vpop.permute.xlu0 %736
      %v740 = vunpack.c.l.b16 %v292
      %v741 = vunpack.c.l.b16 %v293
      %v742 = vpack.c.b16 %v741, %v740
      %743 = vrot.lane.b32.xlu0 %v345, 80
      %v744 = vpop.permute.xlu0 %743
      %745 = vrot.lane.b32.xlu0 %v346, 80
      %v746 = vpop.permute.xlu0 %745
      %747 = vrot.lane.b32.xlu0 %v347, 80
      %v748 = vpop.permute.xlu0 %747
      %749 = vrot.lane.b32.xlu0 %v348, 80
      %v750 = vpop.permute.xlu0 %749
      %751 = vrot.lane.b32.xlu0 %v349, 80
      %v752 = vpop.permute.xlu0 %751
      %753 = vrot.lane.b32.xlu0 %v350, 80
      %v754 = vpop.permute.xlu0 %753
      %755 = vrot.lane.b32.xlu0 %v351, 80
      %v756 = vpop.permute.xlu0 %755
      %757 = vrot.lane.b32.xlu0 %v352, 80
      %v758 = vpop.permute.xlu0 %757
      %759 = vrot.lane.b32.xlu0 %v353, 80
      %v760 = vpop.permute.xlu0 %759
      %761 = vrot.lane.b32.xlu0 %v742, 80
      %v762 = vpop.permute.xlu0 %761
      %v764 = vunpack.c.l.b16 %v294
      %v765 = vpack.c.b16 %v764, %v764
      %v767 = vshrl.u32 %v742, 16
      %v769 = vshll.u32 %v742, 16
      %v771 = vrot.slane %v769, 1
      %v772 = vor.u32 %v767, %v771
      %v774 = vshll.u32 %v765, 16
      %v776 = vrot.slane %v774, 1
      %v777 = vsel %vm384, %v772, %v776
      %778 = vrot.lane.b32.xlu0 %v408, 96
      %v779 = vpop.permute.xlu0 %778
      %780 = vrot.lane.b32.xlu0 %v420, 96
      %v781 = vpop.permute.xlu0 %780
      %782 = vrot.lane.b32.xlu0 %v432, 96
      %v783 = vpop.permute.xlu0 %782
      %784 = vrot.lane.b32.xlu0 %v444, 96
      %v785 = vpop.permute.xlu0 %784
      %786 = vrot.lane.b32.xlu0 %v456, 96
      %v787 = vpop.permute.xlu0 %786
      %788 = vrot.lane.b32.xlu0 %v468, 96
      %v789 = vpop.permute.xlu0 %788
      %790 = vrot.lane.b32.xlu0 %v480, 96
      %v791 = vpop.permute.xlu0 %790
      %792 = vrot.lane.b32.xlu0 %v492, 96
      %v793 = vpop.permute.xlu0 %792
      %794 = vrot.lane.b32.xlu0 %v504, 96
      %v795 = vpop.permute.xlu0 %794
      %796 = vrot.lane.b32.xlu0 %v777, 96
      %v797 = vpop.permute.xlu0 %796
      %v798 = vrot.slane %v742, 1
      %v799 = vrot.slane %v765, 1
      %v800 = vsel %vm525, %v798, %v799
      %801 = vrot.lane.b32.xlu0 %v531, 112
      %v802 = vpop.permute.xlu0 %801
      %803 = vrot.lane.b32.xlu0 %v534, 112
      %v804 = vpop.permute.xlu0 %803
      %805 = vrot.lane.b32.xlu0 %v537, 112
      %v806 = vpop.permute.xlu0 %805
      %807 = vrot.lane.b32.xlu0 %v540, 112
      %v808 = vpop.permute.xlu0 %807
      %809 = vrot.lane.b32.xlu0 %v543, 112
      %v810 = vpop.permute.xlu0 %809
      %811 = vrot.lane.b32.xlu0 %v546, 112
      %v812 = vpop.permute.xlu0 %811
      %813 = vrot.lane.b32.xlu0 %v549, 112
      %v814 = vpop.permute.xlu0 %813
      %815 = vrot.lane.b32.xlu0 %v552, 112
      %v816 = vpop.permute.xlu0 %815
      %817 = vrot.lane.b32.xlu0 %v555, 112
      %v818 = vpop.permute.xlu0 %817
      %819 = vrot.lane.b32.xlu0 %v800, 112
      %v820 = vpop.permute.xlu0 %819
      %v821 = vrot.slane %v767, 1
      %v822 = vrot.slane %v769, 2
      %v823 = vor.u32 %v821, %v822
      %v824 = vshrl.u32 %v765, 16
      %v826 = vrot.slane %v824, 1
      %v827 = vrot.slane %v774, 2
      %v828 = vor.u32 %v826, %v827
      %v829 = vsel %vm576, %v823, %v828
      %v830 = vrot.slane %v742, 2
      %v831 = vrot.slane %v765, 2
      %v832 = vsel %vm687, %v830, %v831
      %833 = vrot.lane.b32.xlu0 %v693, 16
      %v834 = vpop.permute.xlu0 %833
      %835 = vrot.lane.b32.xlu0 %v696, 16
      %v836 = vpop.permute.xlu0 %835
      %837 = vrot.lane.b32.xlu0 %v699, 16
      %v838 = vpop.permute.xlu0 %837
      %839 = vrot.lane.b32.xlu0 %v702, 16
      %v840 = vpop.permute.xlu0 %839
      %841 = vrot.lane.b32.xlu0 %v705, 16
      %v842 = vpop.permute.xlu0 %841
      %843 = vrot.lane.b32.xlu0 %v708, 16
      %v844 = vpop.permute.xlu0 %843
      %845 = vrot.lane.b32.xlu0 %v711, 16
      %v846 = vpop.permute.xlu0 %845
      %847 = vrot.lane.b32.xlu0 %v714, 16
      %v848 = vpop.permute.xlu0 %847
      %849 = vrot.lane.b32.xlu0 %v717, 16
      %v850 = vpop.permute.xlu0 %849
      %851 = vrot.lane.b32.xlu0 %v832, 16
      %v852 = vpop.permute.xlu0 %851
      %v855 = vunpack.c.l.b16 %v295
      %v856 = vunpack.c.l.b16 %v296
      %v857 = vpack.c.b16 %v856, %v855
      %858 = vrot.lane.b32.xlu0 %v346, 32
      %v859 = vpop.permute.xlu0 %858
      %860 = vrot.lane.b32.xlu0 %v347, 32
      %v861 = vpop.permute.xlu0 %860
      %862 = vrot.lane.b32.xlu0 %v348, 32
      %v863 = vpop.permute.xlu0 %862
      %864 = vrot.lane.b32.xlu0 %v349, 32
      %v865 = vpop.permute.xlu0 %864
      %866 = vrot.lane.b32.xlu0 %v350, 32
      %v867 = vpop.permute.xlu0 %866
      %868 = vrot.lane.b32.xlu0 %v351, 32
      %v869 = vpop.permute.xlu0 %868
      %870 = vrot.lane.b32.xlu0 %v352, 32
      %v871 = vpop.permute.xlu0 %870
      %872 = vrot.lane.b32.xlu0 %v353, 32
      %v873 = vpop.permute.xlu0 %872
      %874 = vrot.lane.b32.xlu0 %v742, 32
      %v875 = vpop.permute.xlu0 %874
      %876 = vrot.lane.b32.xlu0 %v857, 32
      %v877 = vpop.permute.xlu0 %876
      %v879 = vunpack.c.l.b16 %v297
      %v880 = vpack.c.b16 %v879, %v879
      %v882 = vshrl.u32 %v857, 16
      %v884 = vshll.u32 %v857, 16
      %v886 = vrot.slane %v884, 1
      %v887 = vor.u32 %v882, %v886
      %v889 = vshll.u32 %v880, 16
      %v891 = vrot.slane %v889, 1
      %v892 = vsel %vm384, %v887, %v891
      %893 = vrot.lane.b32.xlu0 %v420, 48
      %v894 = vpop.permute.xlu0 %893
      %895 = vrot.lane.b32.xlu0 %v432, 48
      %v896 = vpop.permute.xlu0 %895
      %897 = vrot.lane.b32.xlu0 %v444, 48
      %v898 = vpop.permute.xlu0 %897
      %899 = vrot.lane.b32.xlu0 %v456, 48
      %v900 = vpop.permute.xlu0 %899
      %901 = vrot.lane.b32.xlu0 %v468, 48
      %v902 = vpop.permute.xlu0 %901
      %903 = vrot.lane.b32.xlu0 %v480, 48
      %v904 = vpop.permute.xlu0 %903
      %905 = vrot.lane.b32.xlu0 %v492, 48
      %v906 = vpop.permute.xlu0 %905
      %907 = vrot.lane.b32.xlu0 %v504, 48
      %v908 = vpop.permute.xlu0 %907
      %909 = vrot.lane.b32.xlu0 %v777, 48
      %v910 = vpop.permute.xlu0 %909
      %911 = vrot.lane.b32.xlu0 %v892, 48
      %v912 = vpop.permute.xlu0 %911
      %v913 = vrot.slane %v857, 1
      %v914 = vrot.slane %v880, 1
      %v915 = vsel %vm525, %v913, %v914
      %916 = vrot.lane.b32.xlu0 %v534, 64
      %v917 = vpop.permute.xlu0 %916
      %918 = vrot.lane.b32.xlu0 %v537, 64
      %v919 = vpop.permute.xlu0 %918
      %920 = vrot.lane.b32.xlu0 %v540, 64
      %v921 = vpop.permute.xlu0 %920
      %922 = vrot.lane.b32.xlu0 %v543, 64
      %v923 = vpop.permute.xlu0 %922
      %924 = vrot.lane.b32.xlu0 %v546, 64
      %v925 = vpop.permute.xlu0 %924
      %926 = vrot.lane.b32.xlu0 %v549, 64
      %v927 = vpop.permute.xlu0 %926
      %928 = vrot.lane.b32.xlu0 %v552, 64
      %v929 = vpop.permute.xlu0 %928
      %930 = vrot.lane.b32.xlu0 %v555, 64
      %v931 = vpop.permute.xlu0 %930
      %932 = vrot.lane.b32.xlu0 %v800, 64
      %v933 = vpop.permute.xlu0 %932
      %934 = vrot.lane.b32.xlu0 %v915, 64
      %v935 = vpop.permute.xlu0 %934
      %v936 = vrot.slane %v882, 1
      %v937 = vrot.slane %v884, 2
      %v938 = vor.u32 %v936, %v937
      %v939 = vshrl.u32 %v880, 16
      %v941 = vrot.slane %v939, 1
      %v942 = vrot.slane %v889, 2
      %v943 = vor.u32 %v941, %v942
      %v944 = vsel %vm576, %v938, %v943
      %945 = vrot.lane.b32.xlu0 %v603, 80
      %v946 = vpop.permute.xlu0 %945
      %947 = vrot.lane.b32.xlu0 %v612, 80
      %v948 = vpop.permute.xlu0 %947
      %949 = vrot.lane.b32.xlu0 %v621, 80
      %v950 = vpop.permute.xlu0 %949
      %951 = vrot.lane.b32.xlu0 %v630, 80
      %v952 = vpop.permute.xlu0 %951
      %953 = vrot.lane.b32.xlu0 %v639, 80
      %v954 = vpop.permute.xlu0 %953
      %955 = vrot.lane.b32.xlu0 %v648, 80
      %v956 = vpop.permute.xlu0 %955
      %957 = vrot.lane.b32.xlu0 %v657, 80
      %v958 = vpop.permute.xlu0 %957
      %959 = vrot.lane.b32.xlu0 %v666, 80
      %v960 = vpop.permute.xlu0 %959
      %961 = vrot.lane.b32.xlu0 %v829, 80
      %v962 = vpop.permute.xlu0 %961
      %963 = vrot.lane.b32.xlu0 %v944, 80
      %v964 = vpop.permute.xlu0 %963
      %v965 = vrot.slane %v857, 2
      %v966 = vrot.slane %v880, 2
      %v967 = vsel %vm687, %v965, %v966
      %968 = vrot.lane.b32.xlu0 %v696, 96
      %v969 = vpop.permute.xlu0 %968
      %970 = vrot.lane.b32.xlu0 %v699, 96
      %v971 = vpop.permute.xlu0 %970
      %972 = vrot.lane.b32.xlu0 %v702, 96
      %v973 = vpop.permute.xlu0 %972
      %974 = vrot.lane.b32.xlu0 %v705, 96
      %v975 = vpop.permute.xlu0 %974
      %976 = vrot.lane.b32.xlu0 %v708, 96
      %v977 = vpop.permute.xlu0 %976
      %978 = vrot.lane.b32.xlu0 %v711, 96
      %v979 = vpop.permute.xlu0 %978
      %980 = vrot.lane.b32.xlu0 %v714, 96
      %v981 = vpop.permute.xlu0 %980
      %982 = vrot.lane.b32.xlu0 %v717, 96
      %v983 = vpop.permute.xlu0 %982
      %984 = vrot.lane.b32.xlu0 %v832, 96
      %v985 = vpop.permute.xlu0 %984
      %986 = vrot.lane.b32.xlu0 %v967, 96
      %v987 = vpop.permute.xlu0 %986
      %v990 = vunpack.c.l.b16 %v298
      %v991 = vunpack.c.l.b16 %v299
      %v992 = vpack.c.b16 %v991, %v990
      %993 = vrot.lane.b32.xlu0 %v347, 112
      %v994 = vpop.permute.xlu0 %993
      %995 = vrot.lane.b32.xlu0 %v348, 112
      %v996 = vpop.permute.xlu0 %995
      %997 = vrot.lane.b32.xlu0 %v349, 112
      %v998 = vpop.permute.xlu0 %997
      %999 = vrot.lane.b32.xlu0 %v350, 112
      %v1000 = vpop.permute.xlu0 %999
      %1001 = vrot.lane.b32.xlu0 %v351, 112
      %v1002 = vpop.permute.xlu0 %1001
      %1003 = vrot.lane.b32.xlu0 %v352, 112
      %v1004 = vpop.permute.xlu0 %1003
      %1005 = vrot.lane.b32.xlu0 %v353, 112
      %v1006 = vpop.permute.xlu0 %1005
      %1007 = vrot.lane.b32.xlu0 %v742, 112
      %v1008 = vpop.permute.xlu0 %1007
      %1009 = vrot.lane.b32.xlu0 %v857, 112
      %v1010 = vpop.permute.xlu0 %1009
      %1011 = vrot.lane.b32.xlu0 %v992, 112
      %v1012 = vpop.permute.xlu0 %1011
      %vm1013 = vcmask 130048
      %v1015 = vsel %vm1013, %v344, %v506
      %v1017 = vsel %vm1013, %v345, %v508
      %v1019 = vsel %vm1013, %v346, %v510
      %v1021 = vsel %vm1013, %v347, %v512
      %v1023 = vsel %vm1013, %v348, %v514
      %v1025 = vsel %vm1013, %v349, %v516
      %v1027 = vsel %vm1013, %v350, %v518
      %v1029 = vsel %vm1013, %v351, %v520
      %v1031 = vsel %vm1013, %v352, %v522
      %v1033 = vsel %vm1013, %v353, %v524
      %vm1034 = vcmask 261120
      %v1036 = vsel %vm1034, %v1015, %v557
      %v1038 = vsel %vm1034, %v1017, %v559
      %v1040 = vsel %vm1034, %v1019, %v561
      %v1042 = vsel %vm1034, %v1021, %v563
      %v1044 = vsel %vm1034, %v1023, %v565
      %v1046 = vsel %vm1034, %v1025, %v567
      %v1048 = vsel %vm1034, %v1027, %v569
      %v1050 = vsel %vm1034, %v1029, %v571
      %v1052 = vsel %vm1034, %v1031, %v573
      %v1054 = vsel %vm1034, %v1033, %v575
      %vm1055 = vcmask 392192
      %v1057 = vsel %vm1055, %v1036, %v668
      %v1059 = vsel %vm1055, %v1038, %v670
      %v1061 = vsel %vm1055, %v1040, %v672
      %v1063 = vsel %vm1055, %v1042, %v674
      %v1065 = vsel %vm1055, %v1044, %v676
      %v1067 = vsel %vm1055, %v1046, %v678
      %v1069 = vsel %vm1055, %v1048, %v680
      %v1071 = vsel %vm1055, %v1050, %v682
      %v1073 = vsel %vm1055, %v1052, %v684
      %v1075 = vsel %vm1055, %v1054, %v686
      %vm1076 = vcmask 523264
      %v1078 = vsel %vm1076, %v1057, %v719
      %v1080 = vsel %vm1076, %v1059, %v721
      %v1082 = vsel %vm1076, %v1061, %v723
      %v1084 = vsel %vm1076, %v1063, %v725
      %v1086 = vsel %vm1076, %v1065, %v727
      %v1088 = vsel %vm1076, %v1067, %v729
      %v1090 = vsel %vm1076, %v1069, %v731
      %v1092 = vsel %vm1076, %v1071, %v733
      %v1094 = vsel %vm1076, %v1073, %v735
      %v1096 = vsel %vm1076, %v1075, %v737
      %vm1097 = vcmask 654336
      %v1099 = vsel %vm1097, %v1078, %v744
      %v1101 = vsel %vm1097, %v1080, %v746
      %v1103 = vsel %vm1097, %v1082, %v748
      %v1105 = vsel %vm1097, %v1084, %v750
      %v1107 = vsel %vm1097, %v1086, %v752
      %v1109 = vsel %vm1097, %v1088, %v754
      %v1111 = vsel %vm1097, %v1090, %v756
      %v1113 = vsel %vm1097, %v1092, %v758
      %v1115 = vsel %vm1097, %v1094, %v760
      %v1117 = vsel %vm1097, %v1096, %v762
      %vm1118 = vcmask 785408
      %v1120 = vsel %vm1118, %v1099, %v779
      %v1122 = vsel %vm1118, %v1101, %v781
      %v1124 = vsel %vm1118, %v1103, %v783
      %v1126 = vsel %vm1118, %v1105, %v785
      %v1128 = vsel %vm1118, %v1107, %v787
      %v1130 = vsel %vm1118, %v1109, %v789
      %v1132 = vsel %vm1118, %v1111, %v791
      %v1134 = vsel %vm1118, %v1113, %v793
      %v1136 = vsel %vm1118, %v1115, %v795
      %v1138 = vsel %vm1118, %v1117, %v797
      %vm1139 = vcmask 916480
      %v1141 = vsel %vm1139, %v1120, %v802
      %v1144 = vsel %vm1139, %v1122, %v804
      %v1147 = vsel %vm1139, %v1124, %v806
      %v1150 = vsel %vm1139, %v1126, %v808
      %v1153 = vsel %vm1139, %v1128, %v810
      %v1156 = vsel %vm1139, %v1130, %v812
      %v1159 = vsel %vm1139, %v1132, %v814
      %v1162 = vsel %vm1139, %v1134, %v816
      %v1165 = vsel %vm1139, %v1136, %v818
      %v1168 = vsel %vm1139, %v1138, %v820
      %v1172 = vsel %vm1013, %v594, %v834
      %v1175 = vsel %vm1013, %v603, %v836
      %v1178 = vsel %vm1013, %v612, %v838
      %v1181 = vsel %vm1013, %v621, %v840
      %v1184 = vsel %vm1013, %v630, %v842
      %v1187 = vsel %vm1013, %v639, %v844
      %v1190 = vsel %vm1013, %v648, %v846
      %v1193 = vsel %vm1013, %v657, %v848
      %v1196 = vsel %vm1013, %v666, %v850
      %v1199 = vsel %vm1013, %v829, %v852
      %v1201 = vsel %vm1034, %v1172, %v859
      %v1203 = vsel %vm1034, %v1175, %v861
      %v1205 = vsel %vm1034, %v1178, %v863
      %v1207 = vsel %vm1034, %v1181, %v865
      %v1209 = vsel %vm1034, %v1184, %v867
      %v1211 = vsel %vm1034, %v1187, %v869
      %v1213 = vsel %vm1034, %v1190, %v871
      %v1215 = vsel %vm1034, %v1193, %v873
      %v1217 = vsel %vm1034, %v1196, %v875
      %v1219 = vsel %vm1034, %v1199, %v877
      %v1221 = vsel %vm1055, %v1201, %v894
      %v1223 = vsel %vm1055, %v1203, %v896
      %v1225 = vsel %vm1055, %v1205, %v898
      %v1227 = vsel %vm1055, %v1207, %v900
      %v1229 = vsel %vm1055, %v1209, %v902
      %v1231 = vsel %vm1055, %v1211, %v904
      %v1233 = vsel %vm1055, %v1213, %v906
      %v1235 = vsel %vm1055, %v1215, %v908
      %v1237 = vsel %vm1055, %v1217, %v910
      %v1239 = vsel %vm1055, %v1219, %v912
      %v1241 = vsel %vm1076, %v1221, %v917
      %v1243 = vsel %vm1076, %v1223, %v919
      %v1245 = vsel %vm1076, %v1225, %v921
      %v1247 = vsel %vm1076, %v1227, %v923
      %v1249 = vsel %vm1076, %v1229, %v925
      %v1251 = vsel %vm1076, %v1231, %v927
      %v1253 = vsel %vm1076, %v1233, %v929
      %v1255 = vsel %vm1076, %v1235, %v931
      %v1257 = vsel %vm1076, %v1237, %v933
      %v1259 = vsel %vm1076, %v1239, %v935
      %v1261 = vsel %vm1097, %v1241, %v946
      %v1263 = vsel %vm1097, %v1243, %v948
      %v1265 = vsel %vm1097, %v1245, %v950
      %v1267 = vsel %vm1097, %v1247, %v952
      %v1269 = vsel %vm1097, %v1249, %v954
      %v1271 = vsel %vm1097, %v1251, %v956
      %v1273 = vsel %vm1097, %v1253, %v958
      %v1275 = vsel %vm1097, %v1255, %v960
      %v1277 = vsel %vm1097, %v1257, %v962
      %v1279 = vsel %vm1097, %v1259, %v964
      %v1281 = vsel %vm1118, %v1261, %v969
      %v1283 = vsel %vm1118, %v1263, %v971
      %v1285 = vsel %vm1118, %v1265, %v973
      %v1287 = vsel %vm1118, %v1267, %v975
      %v1289 = vsel %vm1118, %v1269, %v977
      %v1291 = vsel %vm1118, %v1271, %v979
      %v1293 = vsel %vm1118, %v1273, %v981
      %v1295 = vsel %vm1118, %v1275, %v983
      %v1297 = vsel %vm1118, %v1277, %v985
      %v1299 = vsel %vm1118, %v1279, %v987
      %v1301 = vsel %vm1139, %v1281, %v994
      %v1304 = vsel %vm1139, %v1283, %v996
      %v1307 = vsel %vm1139, %v1285, %v998
      %v1310 = vsel %vm1139, %v1287, %v1000
      %v1313 = vsel %vm1139, %v1289, %v1002
      %v1316 = vsel %vm1139, %v1291, %v1004
      %v1319 = vsel %vm1139, %v1293, %v1006
      %v1322 = vsel %vm1139, %v1295, %v1008
      %v1325 = vsel %vm1139, %v1297, %v1010
      %v1328 = vsel %vm1139, %v1299, %v1012
      %v1331 = vunpack.c.l.b16 %v300
      %v1332 = vpack.c.b16 %v1331, %v1331
      %v1334 = vshrl.u32 %v992, 16
      %v1336 = vshll.u32 %v992, 16
      %v1338 = vrot.slane %v1336, 1
      %v1339 = vor.u32 %v1334, %v1338
      %v1341 = vshll.u32 %v1332, 16
      %v1343 = vrot.slane %v1341, 1
      %v1344 = vsel %vm384, %v1339, %v1343
      %v1345 = vshrl.u32 %v1332, 16
      %1347 = vrot.lane.b32.xlu0 %v607, 16
      %v1348 = vpop.permute.xlu0 %1347
      %1349 = vrot.lane.b32.xlu0 %v616, 16
      %v1350 = vpop.permute.xlu0 %1349
      %1351 = vrot.lane.b32.xlu0 %v625, 16
      %v1352 = vpop.permute.xlu0 %1351
      %1353 = vrot.lane.b32.xlu0 %v634, 16
      %v1354 = vpop.permute.xlu0 %1353
      %1355 = vrot.lane.b32.xlu0 %v643, 16
      %v1356 = vpop.permute.xlu0 %1355
      %1357 = vrot.lane.b32.xlu0 %v652, 16
      %v1358 = vpop.permute.xlu0 %1357
      %1359 = vrot.lane.b32.xlu0 %v661, 16
      %v1360 = vpop.permute.xlu0 %1359
      %1361 = vrot.lane.b32.xlu0 %v777, 16
      %v1362 = vpop.permute.xlu0 %1361
      %1363 = vrot.lane.b32.xlu0 %v824, 16
      %v1364 = vpop.permute.xlu0 %1363
      %1365 = vrot.lane.b32.xlu0 %v892, 16
      %v1366 = vpop.permute.xlu0 %1365
      %1367 = vrot.lane.b32.xlu0 %v939, 16
      %v1368 = vpop.permute.xlu0 %1367
      %1369 = vrot.lane.b32.xlu0 %v1344, 16
      %v1370 = vpop.permute.xlu0 %1369
      %1371 = vrot.lane.b32.xlu0 %v1345, 16
      %v1372 = vpop.permute.xlu0 %1371
      %v1373 = vrot.slane %v992, 1
      %v1374 = vrot.slane %v1332, 1
      %v1375 = vsel %vm525, %v1373, %v1374
      %1376 = vrot.lane.b32.xlu0 %v536, 32
      %v1377 = vpop.permute.xlu0 %1376
      %1378 = vrot.lane.b32.xlu0 %v539, 32
      %v1379 = vpop.permute.xlu0 %1378
      %1380 = vrot.lane.b32.xlu0 %v542, 32
      %v1381 = vpop.permute.xlu0 %1380
      %1382 = vrot.lane.b32.xlu0 %v545, 32
      %v1383 = vpop.permute.xlu0 %1382
      %1384 = vrot.lane.b32.xlu0 %v548, 32
      %v1385 = vpop.permute.xlu0 %1384
      %1386 = vrot.lane.b32.xlu0 %v551, 32
      %v1387 = vpop.permute.xlu0 %1386
      %1388 = vrot.lane.b32.xlu0 %v554, 32
      %v1389 = vpop.permute.xlu0 %1388
      %1390 = vrot.lane.b32.xlu0 %v800, 32
      %v1391 = vpop.permute.xlu0 %1390
      %1392 = vrot.lane.b32.xlu0 %v799, 32
      %v1393 = vpop.permute.xlu0 %1392
      %1394 = vrot.lane.b32.xlu0 %v915, 32
      %v1395 = vpop.permute.xlu0 %1394
      %1396 = vrot.lane.b32.xlu0 %v914, 32
      %v1397 = vpop.permute.xlu0 %1396
      %1398 = vrot.lane.b32.xlu0 %v1375, 32
      %v1399 = vpop.permute.xlu0 %1398
      %1400 = vrot.lane.b32.xlu0 %v1374, 32
      %v1401 = vpop.permute.xlu0 %1400
      %v1402 = vrot.slane %v1334, 1
      %v1403 = vrot.slane %v1336, 2
      %v1404 = vor.u32 %v1402, %v1403
      %v1405 = vrot.slane %v1345, 1
      %v1406 = vrot.slane %v1341, 2
      %v1407 = vor.u32 %v1405, %v1406
      %v1408 = vsel %vm576, %v1404, %v1407
      %1409 = vrot.lane.b32.xlu0 %v609, 48
      %v1410 = vpop.permute.xlu0 %1409
      %1411 = vrot.lane.b32.xlu0 %v618, 48
      %v1412 = vpop.permute.xlu0 %1411
      %1413 = vrot.lane.b32.xlu0 %v627, 48
      %v1414 = vpop.permute.xlu0 %1413
      %1415 = vrot.lane.b32.xlu0 %v636, 48
      %v1416 = vpop.permute.xlu0 %1415
      %1417 = vrot.lane.b32.xlu0 %v645, 48
      %v1418 = vpop.permute.xlu0 %1417
      %1419 = vrot.lane.b32.xlu0 %v654, 48
      %v1420 = vpop.permute.xlu0 %1419
      %1421 = vrot.lane.b32.xlu0 %v663, 48
      %v1422 = vpop.permute.xlu0 %1421
      %1423 = vrot.lane.b32.xlu0 %v829, 48
      %v1424 = vpop.permute.xlu0 %1423
      %1425 = vrot.lane.b32.xlu0 %v826, 48
      %v1426 = vpop.permute.xlu0 %1425
      %1427 = vrot.lane.b32.xlu0 %v944, 48
      %v1428 = vpop.permute.xlu0 %1427
      %1429 = vrot.lane.b32.xlu0 %v941, 48
      %v1430 = vpop.permute.xlu0 %1429
      %1431 = vrot.lane.b32.xlu0 %v1408, 48
      %v1432 = vpop.permute.xlu0 %1431
      %1433 = vrot.lane.b32.xlu0 %v1405, 48
      %v1434 = vpop.permute.xlu0 %1433
      %v1437 = vunpack.c.l.b16 %v301
      %v1438 = vunpack.c.l.b16 %v302
      %v1439 = vpack.c.b16 %v1438, %v1437
      %v1440 = vrot.slane %v434, 7
      %v1441 = vor.u32 %v1440, %v436
      %v1442 = vrot.slane %v446, 7
      %v1443 = vor.u32 %v1442, %v448
      %v1444 = vrot.slane %v458, 7
      %v1445 = vor.u32 %v1444, %v460
      %v1446 = vrot.slane %v470, 7
      %v1447 = vor.u32 %v1446, %v472
      %v1448 = vrot.slane %v482, 7
      %v1449 = vor.u32 %v1448, %v484
      %v1450 = vrot.slane %v494, 7
      %v1451 = vor.u32 %v1450, %v496
      %v1452 = vrot.slane %v767, 7
      %v1453 = vor.u32 %v1452, %v769
      %v1454 = vrot.slane %v882, 7
      %v1455 = vor.u32 %v1454, %v884
      %v1456 = vrot.slane %v1334, 7
      %v1457 = vor.u32 %v1456, %v1336
      %v1459 = vshrl.u32 %v1439, 16
      %v1461 = vrot.slane %v1459, 7
      %v1462 = vshll.u32 %v1439, 16
      %v1464 = vor.u32 %v1461, %v1462
      %1465 = vrot.lane.b32.xlu0 %v1441, 64
      %v1466 = vpop.permute.xlu0 %1465
      %1467 = vrot.lane.b32.xlu0 %v1440, 64
      %v1468 = vpop.permute.xlu0 %1467
      %1469 = vrot.lane.b32.xlu0 %v1443, 64
      %v1470 = vpop.permute.xlu0 %1469
      %1471 = vrot.lane.b32.xlu0 %v1442, 64
      %v1472 = vpop.permute.xlu0 %1471
      %1473 = vrot.lane.b32.xlu0 %v1445, 64
      %v1474 = vpop.permute.xlu0 %1473
      %1475 = vrot.lane.b32.xlu0 %v1444, 64
      %v1476 = vpop.permute.xlu0 %1475
      %1477 = vrot.lane.b32.xlu0 %v1447, 64
      %v1478 = vpop.permute.xlu0 %1477
      %1479 = vrot.lane.b32.xlu0 %v1446, 64
      %v1480 = vpop.permute.xlu0 %1479
      %1481 = vrot.lane.b32.xlu0 %v1449, 64
      %v1482 = vpop.permute.xlu0 %1481
      %1483 = vrot.lane.b32.xlu0 %v1448, 64
      %v1484 = vpop.permute.xlu0 %1483
      %1485 = vrot.lane.b32.xlu0 %v1451, 64
      %v1486 = vpop.permute.xlu0 %1485
      %1487 = vrot.lane.b32.xlu0 %v1450, 64
      %v1488 = vpop.permute.xlu0 %1487
      %1489 = vrot.lane.b32.xlu0 %v1453, 64
      %v1490 = vpop.permute.xlu0 %1489
      %1491 = vrot.lane.b32.xlu0 %v1452, 64
      %v1492 = vpop.permute.xlu0 %1491
      %1493 = vrot.lane.b32.xlu0 %v1455, 64
      %v1494 = vpop.permute.xlu0 %1493
      %1495 = vrot.lane.b32.xlu0 %v1454, 64
      %v1496 = vpop.permute.xlu0 %1495
      %1497 = vrot.lane.b32.xlu0 %v1457, 64
      %v1498 = vpop.permute.xlu0 %1497
      %1499 = vrot.lane.b32.xlu0 %v1456, 64
      %v1500 = vpop.permute.xlu0 %1499
      %1501 = vrot.lane.b32.xlu0 %v1464, 64
      %v1502 = vpop.permute.xlu0 %1501
      %1503 = vrot.lane.b32.xlu0 %v1461, 64
      %v1504 = vpop.permute.xlu0 %1503
      %v1506 = vunpack.c.l.b16 %v303
      %v1507 = vpack.c.b16 %v1506, %v1506
      %1508 = vrot.lane.b32.xlu0 %v378, 80
      %v1509 = vpop.permute.xlu0 %1508
      %1510 = vrot.lane.b32.xlu0 %v379, 80
      %v1511 = vpop.permute.xlu0 %1510
      %1512 = vrot.lane.b32.xlu0 %v380, 80
      %v1513 = vpop.permute.xlu0 %1512
      %1514 = vrot.lane.b32.xlu0 %v381, 80
      %v1515 = vpop.permute.xlu0 %1514
      %1516 = vrot.lane.b32.xlu0 %v382, 80
      %v1517 = vpop.permute.xlu0 %1516
      %1518 = vrot.lane.b32.xlu0 %v383, 80
      %v1519 = vpop.permute.xlu0 %1518
      %1520 = vrot.lane.b32.xlu0 %v765, 80
      %v1521 = vpop.permute.xlu0 %1520
      %1522 = vrot.lane.b32.xlu0 %v857, 80
      %v1523 = vpop.permute.xlu0 %1522
      %1524 = vrot.lane.b32.xlu0 %v880, 80
      %v1525 = vpop.permute.xlu0 %1524
      %1526 = vrot.lane.b32.xlu0 %v992, 80
      %v1527 = vpop.permute.xlu0 %1526
      %1528 = vrot.lane.b32.xlu0 %v1332, 80
      %v1529 = vpop.permute.xlu0 %1528
      %1530 = vrot.lane.b32.xlu0 %v1439, 80
      %v1531 = vpop.permute.xlu0 %1530
      %1532 = vrot.lane.b32.xlu0 %v1507, 80
      %v1533 = vpop.permute.xlu0 %1532
      %v1534 = vrot.slane %v1462, 1
      %v1535 = vor.u32 %v1459, %v1534
      %v1537 = vshll.u32 %v1507, 16
      %v1539 = vrot.slane %v1537, 1
      %v1540 = vsel %vm384, %v1535, %v1539
      %v1541 = vshrl.u32 %v1507, 16
      %1543 = vrot.lane.b32.xlu0 %v616, 96
      %v1544 = vpop.permute.xlu0 %1543
      %1545 = vrot.lane.b32.xlu0 %v625, 96
      %v1546 = vpop.permute.xlu0 %1545
      %1547 = vrot.lane.b32.xlu0 %v634, 96
      %v1548 = vpop.permute.xlu0 %1547
      %1549 = vrot.lane.b32.xlu0 %v643, 96
      %v1550 = vpop.permute.xlu0 %1549
      %1551 = vrot.lane.b32.xlu0 %v652, 96
      %v1552 = vpop.permute.xlu0 %1551
      %1553 = vrot.lane.b32.xlu0 %v661, 96
      %v1554 = vpop.permute.xlu0 %1553
      %1555 = vrot.lane.b32.xlu0 %v824, 96
      %v1556 = vpop.permute.xlu0 %1555
      %1557 = vrot.lane.b32.xlu0 %v892, 96
      %v1558 = vpop.permute.xlu0 %1557
      %1559 = vrot.lane.b32.xlu0 %v939, 96
      %v1560 = vpop.permute.xlu0 %1559
      %1561 = vrot.lane.b32.xlu0 %v1344, 96
      %v1562 = vpop.permute.xlu0 %1561
      %1563 = vrot.lane.b32.xlu0 %v1345, 96
      %v1564 = vpop.permute.xlu0 %1563
      %1565 = vrot.lane.b32.xlu0 %v1540, 96
      %v1566 = vpop.permute.xlu0 %1565
      %1567 = vrot.lane.b32.xlu0 %v1541, 96
      %v1568 = vpop.permute.xlu0 %1567
      %v1569 = vrot.slane %v1439, 1
      %v1570 = vrot.slane %v1507, 1
      %v1571 = vsel %vm525, %v1569, %v1570
      %1572 = vrot.lane.b32.xlu0 %v539, 112
      %v1573 = vpop.permute.xlu0 %1572
      %1574 = vrot.lane.b32.xlu0 %v542, 112
      %v1575 = vpop.permute.xlu0 %1574
      %1576 = vrot.lane.b32.xlu0 %v545, 112
      %v1577 = vpop.permute.xlu0 %1576
      %1578 = vrot.lane.b32.xlu0 %v548, 112
      %v1579 = vpop.permute.xlu0 %1578
      %1580 = vrot.lane.b32.xlu0 %v551, 112
      %v1581 = vpop.permute.xlu0 %1580
      %1582 = vrot.lane.b32.xlu0 %v554, 112
      %v1583 = vpop.permute.xlu0 %1582
      %1584 = vrot.lane.b32.xlu0 %v799, 112
      %v1585 = vpop.permute.xlu0 %1584
      %1586 = vrot.lane.b32.xlu0 %v915, 112
      %v1587 = vpop.permute.xlu0 %1586
      %1588 = vrot.lane.b32.xlu0 %v914, 112
      %v1589 = vpop.permute.xlu0 %1588
      %1590 = vrot.lane.b32.xlu0 %v1375, 112
      %v1591 = vpop.permute.xlu0 %1590
      %1592 = vrot.lane.b32.xlu0 %v1374, 112
      %v1593 = vpop.permute.xlu0 %1592
      %1594 = vrot.lane.b32.xlu0 %v1571, 112
      %v1595 = vpop.permute.xlu0 %1594
      %1596 = vrot.lane.b32.xlu0 %v1570, 112
      %v1597 = vpop.permute.xlu0 %1596
      %v1598 = vrot.slane %v1459, 1
      %v1599 = vrot.slane %v1462, 2
      %v1600 = vor.u32 %v1598, %v1599
      %v1601 = vrot.slane %v1541, 1
      %v1602 = vrot.slane %v1537, 2
      %v1603 = vor.u32 %v1601, %v1602
      %v1604 = vsel %vm576, %v1600, %v1603
      %v1606 = vsel %vm1013, %v377, %v1348
      %v1608 = vsel %vm1013, %v378, %v1350
      %v1610 = vsel %vm1013, %v379, %v1352
      %v1612 = vsel %vm1013, %v380, %v1354
      %v1614 = vsel %vm1013, %v381, %v1356
      %v1616 = vsel %vm1013, %v382, %v1358
      %v1618 = vsel %vm1013, %v383, %v1360
      %v1620 = vsel %vm1013, %v742, %v1362
      %v1622 = vsel %vm1013, %v765, %v1364
      %v1624 = vsel %vm1013, %v857, %v1366
      %v1626 = vsel %vm1013, %v880, %v1368
      %v1628 = vsel %vm1013, %v992, %v1370
      %v1630 = vsel %vm1013, %v1332, %v1372
      %v1632 = vsel %vm1034, %v1606, %v1377
      %v1634 = vsel %vm1034, %v1608, %v1379
      %v1636 = vsel %vm1034, %v1610, %v1381
      %v1638 = vsel %vm1034, %v1612, %v1383
      %v1640 = vsel %vm1034, %v1614, %v1385
      %v1642 = vsel %vm1034, %v1616, %v1387
      %v1644 = vsel %vm1034, %v1618, %v1389
      %v1646 = vsel %vm1034, %v1620, %v1391
      %v1648 = vsel %vm1034, %v1622, %v1393
      %v1650 = vsel %vm1034, %v1624, %v1395
      %v1652 = vsel %vm1034, %v1626, %v1397
      %v1654 = vsel %vm1034, %v1628, %v1399
      %v1656 = vsel %vm1034, %v1630, %v1401
      %v1658 = vsel %vm1055, %v1632, %v1410
      %v1660 = vsel %vm1055, %v1634, %v1412
      %v1662 = vsel %vm1055, %v1636, %v1414
      %v1664 = vsel %vm1055, %v1638, %v1416
      %v1666 = vsel %vm1055, %v1640, %v1418
      %v1668 = vsel %vm1055, %v1642, %v1420
      %v1670 = vsel %vm1055, %v1644, %v1422
      %v1672 = vsel %vm1055, %v1646, %v1424
      %v1674 = vsel %vm1055, %v1648, %v1426
      %v1676 = vsel %vm1055, %v1650, %v1428
      %v1678 = vsel %vm1055, %v1652, %v1430
      %v1680 = vsel %vm1055, %v1654, %v1432
      %v1682 = vsel %vm1055, %v1656, %v1434
      %v1684 = vsel %vm1076, %v1063, %v1466
      %v1686 = vsel %vm1076, %v1658, %v1468
      %v1688 = vsel %vm1076, %v1065, %v1470
      %v1690 = vsel %vm1076, %v1660, %v1472
      %v1692 = vsel %vm1076, %v1067, %v1474
      %v1694 = vsel %vm1076, %v1662, %v1476
      %v1696 = vsel %vm1076, %v1069, %v1478
      %v1698 = vsel %vm1076, %v1664, %v1480
      %v1700 = vsel %vm1076, %v1071, %v1482
      %v1702 = vsel %vm1076, %v1666, %v1484
      %v1704 = vsel %vm1076, %v1073, %v1486
      %v1706 = vsel %vm1076, %v1668, %v1488
      %v1708 = vsel %vm1076, %v1075, %v1490
      %v1710 = vsel %vm1076, %v1670, %v1492
      %v1712 = vsel %vm1076, %v1672, %v1494
      %v1714 = vsel %vm1076, %v1674, %v1496
      %v1716 = vsel %vm1076, %v1676, %v1498
      %v1718 = vsel %vm1076, %v1678, %v1500
      %v1720 = vsel %vm1076, %v1680, %v1502
      %v1722 = vsel %vm1076, %v1682, %v1504
      %v1723 = vsel %vm1097, %v1684, %v750
      %v1725 = vsel %vm1097, %v1686, %v1509
      %v1726 = vsel %vm1097, %v1688, %v752
      %v1728 = vsel %vm1097, %v1690, %v1511
      %v1729 = vsel %vm1097, %v1692, %v754
      %v1731 = vsel %vm1097, %v1694, %v1513
      %v1732 = vsel %vm1097, %v1696, %v756
      %v1734 = vsel %vm1097, %v1698, %v1515
      %v1735 = vsel %vm1097, %v1700, %v758
      %v1737 = vsel %vm1097, %v1702, %v1517
      %v1738 = vsel %vm1097, %v1704, %v760
      %v1740 = vsel %vm1097, %v1706, %v1519
      %v1741 = vsel %vm1097, %v1708, %v762
      %v1743 = vsel %vm1097, %v1710, %v1521
      %v1745 = vsel %vm1097, %v1712, %v1523
      %v1747 = vsel %vm1097, %v1714, %v1525
      %v1749 = vsel %vm1097, %v1716, %v1527
      %v1751 = vsel %vm1097, %v1718, %v1529
      %v1753 = vsel %vm1097, %v1720, %v1531
      %v1755 = vsel %vm1097, %v1722, %v1533
      %v1756 = vsel %vm1118, %v1723, %v785
      %v1758 = vsel %vm1118, %v1725, %v1544
      %v1759 = vsel %vm1118, %v1726, %v787
      %v1761 = vsel %vm1118, %v1728, %v1546
      %v1762 = vsel %vm1118, %v1729, %v789
      %v1764 = vsel %vm1118, %v1731, %v1548
      %v1765 = vsel %vm1118, %v1732, %v791
      %v1767 = vsel %vm1118, %v1734, %v1550
      %v1768 = vsel %vm1118, %v1735, %v793
      %v1770 = vsel %vm1118, %v1737, %v1552
      %v1771 = vsel %vm1118, %v1738, %v795
      %v1773 = vsel %vm1118, %v1740, %v1554
      %v1774 = vsel %vm1118, %v1741, %v797
      %v1776 = vsel %vm1118, %v1743, %v1556
      %v1778 = vsel %vm1118, %v1745, %v1558
      %v1780 = vsel %vm1118, %v1747, %v1560
      %v1782 = vsel %vm1118, %v1749, %v1562
      %v1784 = vsel %vm1118, %v1751, %v1564
      %v1786 = vsel %vm1118, %v1753, %v1566
      %v1788 = vsel %vm1118, %v1755, %v1568
      %v1789 = vsel %vm1139, %v1756, %v808
      %v1791 = vsel %vm1139, %v1758, %v1573
      %v1792 = vsel %vm1139, %v1759, %v810
      %v1794 = vsel %vm1139, %v1761, %v1575
      %v1795 = vsel %vm1139, %v1762, %v812
      %v1797 = vsel %vm1139, %v1764, %v1577
      %v1798 = vsel %vm1139, %v1765, %v814
      %v1800 = vsel %vm1139, %v1767, %v1579
      %v1801 = vsel %vm1139, %v1768, %v816
      %v1803 = vsel %vm1139, %v1770, %v1581
      %v1804 = vsel %vm1139, %v1771, %v818
      %v1806 = vsel %vm1139, %v1773, %v1583
      %v1807 = vsel %vm1139, %v1774, %v820
      %v1809 = vsel %vm1139, %v1776, %v1585
      %v1811 = vsel %vm1139, %v1778, %v1587
      %v1813 = vsel %vm1139, %v1780, %v1589
      %v1815 = vsel %vm1139, %v1782, %v1591
      %v1817 = vsel %vm1139, %v1784, %v1593
      %v1819 = vsel %vm1139, %v1786, %v1595
      %v1821 = vsel %vm1139, %v1788, %v1597
      %v1822 = vshrl.u32 %v1789, 16
      %v1824 = vshll.u32 %v1789, 16
      %v1826 = vrot.slane %v1824, 1
      %v1827 = vor.u32 %v1822, %v1826
      %v1828 = vshll.u32 %v1791, 16
      %v1830 = vrot.slane %v1828, 1
      %v1831 = vsel %vm384, %v1827, %v1830
      %v1832 = vshrl.u32 %v621, 16
      %v1834 = vshll.u32 %v621, 16
      %v1836 = vrot.slane %v1834, 1
      %v1837 = vor.u32 %v1832, %v1836
      %v1839 = vshll.u32 %v618, 16
      %v1841 = vrot.slane %v1839, 1
      %v1842 = vsel %vm384, %v1837, %v1841
      %v1843 = vshrl.u32 %v1792, 16
      %v1845 = vshll.u32 %v1792, 16
      %v1847 = vrot.slane %v1845, 1
      %v1848 = vor.u32 %v1843, %v1847
      %v1849 = vshll.u32 %v1794, 16
      %v1851 = vrot.slane %v1849, 1
      %v1852 = vsel %vm384, %v1848, %v1851
      %v1853 = vshrl.u32 %v630, 16
      %v1855 = vshll.u32 %v630, 16
      %v1857 = vrot.slane %v1855, 1
      %v1858 = vor.u32 %v1853, %v1857
      %v1860 = vshll.u32 %v627, 16
      %v1862 = vrot.slane %v1860, 1
      %v1863 = vsel %vm384, %v1858, %v1862
      %v1864 = vshrl.u32 %v1795, 16
      %v1866 = vshll.u32 %v1795, 16
      %v1868 = vrot.slane %v1866, 1
      %v1869 = vor.u32 %v1864, %v1868
      %v1870 = vshll.u32 %v1797, 16
      %v1872 = vrot.slane %v1870, 1
      %v1873 = vsel %vm384, %v1869, %v1872
      %v1874 = vshrl.u32 %v639, 16
      %v1876 = vshll.u32 %v639, 16
      %v1878 = vrot.slane %v1876, 1
      %v1879 = vor.u32 %v1874, %v1878
      %v1881 = vshll.u32 %v636, 16
      %v1883 = vrot.slane %v1881, 1
      %v1884 = vsel %vm384, %v1879, %v1883
      %v1885 = vshrl.u32 %v1798, 16
      %v1887 = vshll.u32 %v1798, 16
      %v1889 = vrot.slane %v1887, 1
      %v1890 = vor.u32 %v1885, %v1889
      %v1891 = vshll.u32 %v1800, 16
      %v1893 = vrot.slane %v1891, 1
      %v1894 = vsel %vm384, %v1890, %v1893
      %v1895 = vshrl.u32 %v648, 16
      %v1897 = vshll.u32 %v648, 16
      %v1899 = vrot.slane %v1897, 1
      %v1900 = vor.u32 %v1895, %v1899
      %v1902 = vshll.u32 %v645, 16
      %v1904 = vrot.slane %v1902, 1
      %v1905 = vsel %vm384, %v1900, %v1904
      %v1906 = vshrl.u32 %v1801, 16
      %v1908 = vshll.u32 %v1801, 16
      %v1910 = vrot.slane %v1908, 1
      %v1911 = vor.u32 %v1906, %v1910
      %v1912 = vshll.u32 %v1803, 16
      %v1914 = vrot.slane %v1912, 1
      %v1915 = vsel %vm384, %v1911, %v1914
      %v1916 = vshrl.u32 %v657, 16
      %v1918 = vshll.u32 %v657, 16
      %v1920 = vrot.slane %v1918, 1
      %v1921 = vor.u32 %v1916, %v1920
      %v1923 = vshll.u32 %v654, 16
      %v1925 = vrot.slane %v1923, 1
      %v1926 = vsel %vm384, %v1921, %v1925
      %v1927 = vshrl.u32 %v1804, 16
      %v1929 = vshll.u32 %v1804, 16
      %v1931 = vrot.slane %v1929, 1
      %v1932 = vor.u32 %v1927, %v1931
      %v1933 = vshll.u32 %v1806, 16
      %v1935 = vrot.slane %v1933, 1
      %v1936 = vsel %vm384, %v1932, %v1935
      %v1937 = vshrl.u32 %v666, 16
      %v1939 = vshll.u32 %v666, 16
      %v1941 = vrot.slane %v1939, 1
      %v1942 = vor.u32 %v1937, %v1941
      %v1944 = vshll.u32 %v663, 16
      %v1946 = vrot.slane %v1944, 1
      %v1947 = vsel %vm384, %v1942, %v1946
      %v1948 = vshrl.u32 %v1807, 16
      %v1950 = vshll.u32 %v1807, 16
      %v1952 = vrot.slane %v1950, 1
      %v1953 = vor.u32 %v1948, %v1952
      %v1954 = vshll.u32 %v1809, 16
      %v1956 = vrot.slane %v1954, 1
      %v1957 = vsel %vm384, %v1953, %v1956
      %v1958 = vshrl.u32 %v829, 16
      %v1960 = vshll.u32 %v829, 16
      %v1962 = vrot.slane %v1960, 1
      %v1963 = vor.u32 %v1958, %v1962
      %v1965 = vshll.u32 %v826, 16
      %v1967 = vrot.slane %v1965, 1
      %v1968 = vsel %vm384, %v1963, %v1967
      %v1969 = vshrl.u32 %v1811, 16
      %v1971 = vshll.u32 %v1811, 16
      %v1973 = vrot.slane %v1971, 1
      %v1974 = vor.u32 %v1969, %v1973
      %v1975 = vshll.u32 %v1813, 16
      %v1977 = vrot.slane %v1975, 1
      %v1978 = vsel %vm384, %v1974, %v1977
      %v1980 = vshrl.u32 %v944, 16
      %v1982 = vshll.u32 %v944, 16
      %v1984 = vrot.slane %v1982, 1
      %v1985 = vor.u32 %v1980, %v1984
      %v1987 = vshll.u32 %v941, 16
      %v1989 = vrot.slane %v1987, 1
      %v1990 = vsel %vm384, %v1985, %v1989
      %v1991 = vshrl.u32 %v1815, 16
      %v1993 = vshll.u32 %v1815, 16
      %v1995 = vrot.slane %v1993, 1
      %v1996 = vor.u32 %v1991, %v1995
      %v1997 = vshll.u32 %v1817, 16
      %v1999 = vrot.slane %v1997, 1
      %v2000 = vsel %vm384, %v1996, %v1999
      %v2002 = vshrl.u32 %v1408, 16
      %v2004 = vshll.u32 %v1408, 16
      %v2006 = vrot.slane %v2004, 1
      %v2007 = vor.u32 %v2002, %v2006
      %v2009 = vshll.u32 %v1405, 16
      %v2011 = vrot.slane %v2009, 1
      %v2012 = vsel %vm384, %v2007, %v2011
      %v2013 = vshrl.u32 %v1819, 16
      %v2015 = vshll.u32 %v1819, 16
      %v2017 = vrot.slane %v2015, 1
      %v2018 = vor.u32 %v2013, %v2017
      %v2019 = vshll.u32 %v1821, 16
      %v2021 = vrot.slane %v2019, 1
      %v2022 = vsel %vm384, %v2018, %v2021
      %v2024 = vshrl.u32 %v1604, 16
      %v2026 = vshll.u32 %v1604, 16
      %v2028 = vrot.slane %v2026, 1
      %v2029 = vor.u32 %v2024, %v2028
      %v2031 = vshll.u32 %v1601, 16
      %v2033 = vrot.slane %v2031, 1
      %v2034 = vsel %vm384, %v2029, %v2033
      %v2045 = vld [vmem:[%s1] sm:$0xf]
      %v2046 = vld [vmem:[%s1 + $0x4] sm:$0xf]
      %v2047 = vld [vmem:[%s1 + $0x8] sm:$0xf]
      %v2048 = vld [vmem:[%s1 + $0xc] sm:$0xf]
      %v2049 = vld [vmem:[%s1 + $0x10] sm:$0xf]
      %v2050 = vld [vmem:[%s1 + $0x14] sm:$0xf]
      %v2051 = vld [vmem:[%s1 + $0x18] sm:$0xf]
      %v2052 = vld [vmem:[%s1 + $0x1c] sm:$0xf]
      %v2053 = vld [vmem:[%s1 + $0x20] sm:$0xf]
      %v2054 = vld [vmem:[%s1 + $0x24] sm:$0xf]
      %v2055 = vld [vmem:[%s1 + $0x28] sm:$0xf]
      %v2056 = vld [vmem:[%s1 + $0x2c] sm:$0xf]
      %v2057 = vld [vmem:[%s1 + $0x30] sm:$0xf]
      %v2058 = vld [vmem:[%s1 + $0x34] sm:$0xf]
      %v2059 = vld [vmem:[%s1 + $0x38] sm:$0xf]
      %v2060 = vld [vmem:[%s1 + $0x3c] sm:$0xf]
      %v2061 = vld [vmem:[%s1 + $0x40] sm:$0xf]
      %v2062 = vld [vmem:[%s1 + $0x44] sm:$0xf]
      %v2063 = vld [vmem:[%s1 + $0x48] sm:$0xf]
      %v2064 = vld [vmem:[%s1 + $0x4c] sm:$0xf]
      %v2065 = vld [vmem:[%s1 + $0x50] sm:$0xf]
      %v2066 = vld [vmem:[%s1 + $0x54] sm:$0xf]
      %v2067 = vld [vmem:[%s1 + $0x58] sm:$0xf]
      %v2068 = vld [vmem:[%s1 + $0x5c] sm:$0xf]
      %v2069 = vld [vmem:[%s1 + $0x60] sm:$0xf]
      %v2070 = vld [vmem:[%s1 + $0x64] sm:$0xf]
      %v2071 = vld [vmem:[%s1 + $0x68] sm:$0xf]
      %v2072 = vld [vmem:[%s1 + $0x6c] sm:$0xf]
      %v2073 = vld [vmem:[%s1 + $0x70] sm:$0xf]
      %v2074 = vld [vmem:[%s1 + $0x74] sm:$0xf]
      %v2075 = vld [vmem:[%s1 + $0x78] sm:$0xf]
      %v2076 = vld [vmem:[%s1 + $0x7c] sm:$0xf]
      %v2077 = vld [vmem:[%s1 + $0x80] sm:$0xf]
      %v2078 = vld [vmem:[%s1 + $0x84] sm:$0xf]
      %v2079 = vld [vmem:[%s1 + $0x88] sm:$0xf]
      %v2080 = vld [vmem:[%s1 + $0x8c] sm:$0xf]
      %v2081 = vld [vmem:[%s1 + $0x90] sm:$0xf]
      %v2082 = vld [vmem:[%s1 + $0x94] sm:$0xf]
      %v2083 = vld [vmem:[%s1 + $0x98] sm:$0xf]
      %v2084 = vld [vmem:[%s1 + $0x9c] sm:$0xf]
      %v2085 = vld [vmem:[%s1 + $0xa0] sm:$0xf]
      %v2086 = vld [vmem:[%s1 + $0xa4] sm:$0xf]
      %v2087 = vld [vmem:[%s1 + $0xa8] sm:$0xf]
      %v2088 = vld [vmem:[%s1 + $0xac] sm:$0xf]
      %v2089 = vld [vmem:[%s1 + $0xb0] sm:$0xf]
      %v2090 = vld [vmem:[%s1 + $0xb4] sm:$0xf]
      %v2091 = vld [vmem:[%s1 + $0xb8] sm:$0xf]
      %v2092 = vld [vmem:[%s1 + $0xbc] sm:$0xf]
      %v2093 = vld [vmem:[%s1 + $0xc0] sm:$0xf]
      %v2094 = vld [vmem:[%s1 + $0xc4] sm:$0xf]
      %v2095 = vld [vmem:[%s2] sm:$0x1]
      %v2097 = vlaneseq
      %v2098 = vshrl.u32 %v2097, 7
      %v2099 = vsub.s32 0, %v2098
      %v2100 = vrot.slane %v2095, %v2099
      %v2152 = vunpack.c.l.b16 %v2045
      %v2153 = vunpack.c.l.b16 %v2046
      %v2154 = vunpack.c.l.b16 %v2047
      %v2155 = vunpack.c.l.b16 %v2048
      %v2156 = vunpack.c.l.b16 %v2049
      %v2157 = vunpack.c.l.b16 %v2050
      %v2158 = vunpack.c.l.b16 %v2051
      %v2159 = vunpack.c.l.b16 %v2052
      %v2160 = vunpack.c.l.b16 %v2053
      %v2161 = vunpack.c.l.b16 %v2054
      %v2162 = vunpack.c.l.b16 %v2055
      %v2163 = vunpack.c.l.b16 %v2056
      %v2164 = vunpack.c.l.b16 %v2057
      %v2165 = vunpack.c.l.b16 %v2058
      %v2166 = vunpack.c.l.b16 %v2059
      %v2167 = vunpack.c.l.b16 %v2060
      %v2168 = vunpack.c.l.b16 %v2061
      %v2169 = vunpack.c.l.b16 %v2062
      %v2170 = vunpack.c.l.b16 %v2063
      %v2171 = vunpack.c.l.b16 %v2064
      %v2172 = vunpack.c.l.b16 %v2065
      %v2173 = vunpack.c.l.b16 %v2066
      %v2174 = vunpack.c.l.b16 %v2067
      %v2175 = vunpack.c.l.b16 %v2068
      %v2176 = vunpack.c.l.b16 %v2069
      %v2177 = vunpack.c.l.b16 %v2070
      %v2178 = vunpack.c.l.b16 %v2071
      %v2179 = vunpack.c.l.b16 %v2072
      %v2180 = vunpack.c.l.b16 %v2073
      %v2181 = vunpack.c.l.b16 %v2074
      %v2182 = vunpack.c.l.b16 %v2075
      %v2183 = vunpack.c.l.b16 %v2076
      %v2184 = vunpack.c.l.b16 %v2077
      %v2185 = vunpack.c.l.b16 %v2078
      %v2186 = vunpack.c.l.b16 %v2079
      %v2187 = vunpack.c.l.b16 %v2080
      %v2188 = vunpack.c.l.b16 %v2081
      %v2189 = vunpack.c.l.b16 %v2082
      %v2190 = vunpack.c.l.b16 %v2083
      %v2191 = vunpack.c.l.b16 %v2084
      %v2192 = vunpack.c.l.b16 %v2085
      %v2193 = vunpack.c.l.b16 %v2086
      %v2194 = vunpack.c.l.b16 %v2087
      %v2195 = vunpack.c.l.b16 %v2088
      %v2196 = vunpack.c.l.b16 %v2089
      %v2197 = vunpack.c.l.b16 %v2090
      %v2198 = vunpack.c.l.b16 %v2091
      %v2199 = vunpack.c.l.b16 %v2092
      %v2200 = vunpack.c.l.b16 %v2093
      %v2201 = vunpack.c.l.b16 %v2094
      %v2202 = vpack.c.b16 %v2153, %v2152
      %v2203 = vpack.c.b16 %v2155, %v2154
      %v2204 = vpack.c.b16 %v2157, %v2156
      %v2205 = vpack.c.b16 %v2159, %v2158
      %v2206 = vpack.c.b16 %v2161, %v2160
      %v2207 = vpack.c.b16 %v2163, %v2162
      %v2208 = vpack.c.b16 %v2165, %v2164
      %v2209 = vpack.c.b16 %v2167, %v2166
      %v2210 = vpack.c.b16 %v2169, %v2168
      %v2211 = vpack.c.b16 %v2171, %v2170
      %v2212 = vpack.c.b16 %v2173, %v2172
      %v2213 = vpack.c.b16 %v2175, %v2174
      %v2214 = vpack.c.b16 %v2177, %v2176
      %v2215 = vpack.c.b16 %v2179, %v2178
      %v2216 = vpack.c.b16 %v2181, %v2180
      %v2217 = vpack.c.b16 %v2183, %v2182
      %v2218 = vpack.c.b16 %v2185, %v2184
      %v2219 = vpack.c.b16 %v2187, %v2186
      %v2220 = vpack.c.b16 %v2189, %v2188
      %v2221 = vpack.c.b16 %v2191, %v2190
      %v2222 = vpack.c.b16 %v2193, %v2192
      %v2223 = vpack.c.b16 %v2195, %v2194
      %v2224 = vpack.c.b16 %v2197, %v2196
      %v2225 = vpack.c.b16 %v2199, %v2198
      %v2226 = vpack.c.b16 %v2201, %v2200
      %v2253 = vsel %vm1013, %v1842, 0
      %v2256 = vsel %vm1013, %v1863, 0
      %v2259 = vsel %vm1013, %v1884, 0
      %v2262 = vsel %vm1013, %v1905, 0
      %v2265 = vsel %vm1013, %v1926, 0
      %v2268 = vsel %vm1013, %v1947, 0
      %v2271 = vsel %vm1013, %v1968, 0
      %v2274 = vsel %vm1013, %v1990, 0
      %v2277 = vsel %vm1013, %v2012, 0
      %v2280 = vsel %vm1013, %v2034, 0
      %2282 = vmatprep.subr.bf16.mxu0 0
      %2283 = vmatpush1.bf16.msra.mxu0 %v2209
      %2284 = vmatprep.subr.bf16.mxu0 0
      %2285 = vmatpush1.bf16.msra.mxu0 %v2208
      %2286 = vmatprep.subr.bf16.mxu0 0
      %2287 = vmatpush1.bf16.msra.mxu0 %v2207
      %2288 = vmatprep.subr.bf16.mxu0 0
      %2289 = vmatpush1.bf16.msra.mxu0 %v2206
      %2290 = vmatprep.subr.bf16.mxu0 0
      %2291 = vmatpush1.bf16.msra.mxu0 %v2205
      %2292 = vmatprep.subr.bf16.mxu0 0
      %2293 = vmatpush1.bf16.msra.mxu0 %v2204
      %2294 = vmatprep.subr.bf16.mxu0 0
      %2295 = vmatpush1.bf16.msra.mxu0 %v2203
      %2296 = vmatprep.subr.bf16.mxu0 0
      %2297 = vmatpush1.bf16.msra.mxu0 %v2202
      %2298 = vmatprep.subr.bf16.mxu0 0
      %2299 = vmatpush2.bf16.msra.mxu0 %v2217
      %2300 = vmatprep.subr.bf16.mxu0 0
      %2301 = vmatpush2.bf16.msra.mxu0 %v2216
      %2302 = vmatprep.subr.bf16.mxu0 0
      %2303 = vmatpush2.bf16.msra.mxu0 %v2215
      %2304 = vmatprep.subr.bf16.mxu0 0
      %2305 = vmatpush2.bf16.msra.mxu0 %v2214
      %2306 = vmatprep.subr.bf16.mxu0 0
      %2307 = vmatpush2.bf16.msra.mxu0 %v2213
      %2308 = vmatprep.subr.bf16.mxu0 0
      %2309 = vmatpush2.bf16.msra.mxu0 %v2212
      %2310 = vmatprep.subr.bf16.mxu0 0
      %2311 = vmatpush2.bf16.msra.mxu0 %v2211
      %2312 = vmatprep.subr.bf16.mxu0 0
      %2313 = vmatpush2.bf16.msra.mxu0 %v2210
      %2314 = vmatprep.mubr.bf16.mxu0 %v1301
      %2315 = vmatmul.mubr.bf16.gmra.mxu0 %v1141
      %v2316 = vpop.f32.mrf.mxu0
      %v2317 = vadd.f32 %v2100, %v2316
      %v2318 = vpop.f32.mrf.mxu0
      %v2319 = vpop.f32.mrf.mxu0
      %v2320 = vadd.f32 %v2100, %v2319
      %v2321 = vpop.f32.mrf.mxu0
      %2322 = vmatprep.mubr.bf16.mxu0 %v1304
      %2323 = vmatmul.mubr.bf16.gmra.mxu0 %v1144
      %v2324 = vpop.f32.mrf.mxu0
      %v2325 = vadd.f32 %v2100, %v2324
      %v2326 = vpop.f32.mrf.mxu0
      %v2327 = vpop.f32.mrf.mxu0
      %v2328 = vadd.f32 %v2100, %v2327
      %v2329 = vpop.f32.mrf.mxu0
      %2330 = vmatprep.mubr.bf16.mxu0 %v1307
      %2331 = vmatmul.mubr.bf16.gmra.mxu0 %v1147
      %v2332 = vpop.f32.mrf.mxu0
      %v2333 = vadd.f32 %v2100, %v2332
      %v2334 = vpop.f32.mrf.mxu0
      %v2335 = vpop.f32.mrf.mxu0
      %v2336 = vadd.f32 %v2100, %v2335
      %v2337 = vpop.f32.mrf.mxu0
      %2338 = vmatprep.mubr.bf16.mxu0 %v1310
      %2339 = vmatmul.mubr.bf16.gmra.mxu0 %v1150
      %v2340 = vpop.f32.mrf.mxu0
      %v2341 = vadd.f32 %v2100, %v2340
      %v2342 = vpop.f32.mrf.mxu0
      %v2343 = vpop.f32.mrf.mxu0
      %v2344 = vadd.f32 %v2100, %v2343
      %v2345 = vpop.f32.mrf.mxu0
      %2346 = vmatprep.mubr.bf16.mxu0 %v1313
      %2347 = vmatmul.mubr.bf16.gmra.mxu0 %v1153
      %v2348 = vpop.f32.mrf.mxu0
      %v2349 = vadd.f32 %v2100, %v2348
      %v2350 = vpop.f32.mrf.mxu0
      %v2351 = vpop.f32.mrf.mxu0
      %v2352 = vadd.f32 %v2100, %v2351
      %v2353 = vpop.f32.mrf.mxu0
      %2354 = vmatprep.mubr.bf16.mxu0 %v1316
      %2355 = vmatmul.mubr.bf16.gmra.mxu0 %v1156
      %v2356 = vpop.f32.mrf.mxu0
      %v2357 = vadd.f32 %v2100, %v2356
      %v2358 = vpop.f32.mrf.mxu0
      %v2359 = vpop.f32.mrf.mxu0
      %v2360 = vadd.f32 %v2100, %v2359
      %v2361 = vpop.f32.mrf.mxu0
      %2362 = vmatprep.mubr.bf16.mxu0 %v1319
      %2363 = vmatmul.mubr.bf16.gmra.mxu0 %v1159
      %v2364 = vpop.f32.mrf.mxu0
      %v2365 = vadd.f32 %v2100, %v2364
      %v2366 = vpop.f32.mrf.mxu0
      %v2367 = vpop.f32.mrf.mxu0
      %v2368 = vadd.f32 %v2100, %v2367
      %v2369 = vpop.f32.mrf.mxu0
      %2370 = vmatprep.mubr.bf16.mxu0 %v1322
      %2371 = vmatmul.mubr.bf16.gmra.mxu0 %v1162
      %v2372 = vpop.f32.mrf.mxu0
      %v2373 = vadd.f32 %v2100, %v2372
      %v2374 = vpop.f32.mrf.mxu0
      %v2375 = vpop.f32.mrf.mxu0
      %v2376 = vadd.f32 %v2100, %v2375
      %v2377 = vpop.f32.mrf.mxu0
      %2378 = vmatprep.mubr.bf16.mxu0 %v1325
      %2379 = vmatmul.mubr.bf16.gmra.mxu0 %v1165
      %v2380 = vpop.f32.mrf.mxu0
      %v2381 = vadd.f32 %v2100, %v2380
      %v2382 = vpop.f32.mrf.mxu0
      %v2383 = vpop.f32.mrf.mxu0
      %v2384 = vadd.f32 %v2100, %v2383
      %v2385 = vpop.f32.mrf.mxu0
      %2386 = vmatprep.mubr.bf16.mxu0 %v1328
      %2387 = vmatmul.mubr.bf16.gmra.mxu0 %v1168
      %v2388 = vpop.f32.mrf.mxu0
      %v2389 = vadd.f32 %v2100, %v2388
      %v2390 = vpop.f32.mrf.mxu0
      %v2391 = vpop.f32.mrf.mxu0
      %v2392 = vadd.f32 %v2100, %v2391
      %v2393 = vpop.f32.mrf.mxu0
      %2394 = vdwg.mxu0
      %2395 = vmatprep.subr.bf16.mxu0 0
      %2396 = vmatpush1.bf16.msra.mxu0 %v2225
      %2397 = vmatprep.subr.bf16.mxu0 0
      %2398 = vmatpush1.bf16.msra.mxu0 %v2224
      %2399 = vmatprep.subr.bf16.mxu0 0
      %2400 = vmatpush1.bf16.msra.mxu0 %v2223
      %2401 = vmatprep.subr.bf16.mxu0 0
      %2402 = vmatpush1.bf16.msra.mxu0 %v2222
      %2403 = vmatprep.subr.bf16.mxu0 0
      %2404 = vmatpush1.bf16.msra.mxu0 %v2221
      %2405 = vmatprep.subr.bf16.mxu0 0
      %2406 = vmatpush1.bf16.msra.mxu0 %v2220
      %2407 = vmatprep.subr.bf16.mxu0 0
      %2408 = vmatpush1.bf16.msra.mxu0 %v2219
      %2409 = vmatprep.subr.bf16.mxu0 0
      %2410 = vmatpush1.bf16.msra.mxu0 %v2218
      %2411 = vmatprep.subr.bf16.mxu0 0
      %2412 = vmatpush2.bf16.msra.mxu0 0
      %2413 = vmatprep.subr.bf16.mxu0 0
      %2414 = vmatpush2.bf16.msra.mxu0 0
      %2415 = vmatprep.subr.bf16.mxu0 0
      %2416 = vmatpush2.bf16.msra.mxu0 0
      %2417 = vmatprep.subr.bf16.mxu0 0
      %2418 = vmatpush2.bf16.msra.mxu0 0
      %2419 = vmatprep.subr.bf16.mxu0 0
      %2420 = vmatpush2.bf16.msra.mxu0 0
      %2421 = vmatprep.subr.bf16.mxu0 0
      %2422 = vmatpush2.bf16.msra.mxu0 0
      %2423 = vmatprep.subr.bf16.mxu0 0
      %2424 = vmatpush2.bf16.msra.mxu0 0
      %2425 = vmatprep.subr.bf16.mxu0 0
      %2426 = vmatpush2.bf16.msra.mxu0 %v2226
      %2427 = vmatprep.mubr.bf16.mxu0 %v2253
      %2428 = vmatmul.mubr.bf16.gmra.mxu0 %v1831
      %v2429 = vpop.f32.mrf.mxu0
      %v2430 = vadd.f32 %v2317, %v2429
      %v2431 = vpop.f32.mrf.mxu0
      %v2432 = vpop.f32.mrf.mxu0
      %v2433 = vadd.f32 %v2320, %v2432
      %v2434 = vpop.f32.mrf.mxu0
      %2435 = vmatprep.mubr.bf16.mxu0 %v2256
      %2436 = vmatmul.mubr.bf16.gmra.mxu0 %v1852
      %v2437 = vpop.f32.mrf.mxu0
      %v2438 = vadd.f32 %v2325, %v2437
      %v2439 = vpop.f32.mrf.mxu0
      %v2440 = vpop.f32.mrf.mxu0
      %v2441 = vadd.f32 %v2328, %v2440
      %v2442 = vpop.f32.mrf.mxu0
      %2443 = vmatprep.mubr.bf16.mxu0 %v2259
      %2444 = vmatmul.mubr.bf16.gmra.mxu0 %v1873
      %v2445 = vpop.f32.mrf.mxu0
      %v2446 = vadd.f32 %v2333, %v2445
      %v2447 = vpop.f32.mrf.mxu0
      %v2448 = vpop.f32.mrf.mxu0
      %v2449 = vadd.f32 %v2336, %v2448
      %v2450 = vpop.f32.mrf.mxu0
      %2451 = vmatprep.mubr.bf16.mxu0 %v2262
      %2452 = vmatmul.mubr.bf16.gmra.mxu0 %v1894
      %v2453 = vpop.f32.mrf.mxu0
      %v2454 = vadd.f32 %v2341, %v2453
      %v2455 = vpop.f32.mrf.mxu0
      %v2456 = vpop.f32.mrf.mxu0
      %v2457 = vadd.f32 %v2344, %v2456
      %v2458 = vpop.f32.mrf.mxu0
      %2459 = vmatprep.mubr.bf16.mxu0 %v2265
      %2460 = vmatmul.mubr.bf16.gmra.mxu0 %v1915
      %v2461 = vpop.f32.mrf.mxu0
      %v2462 = vadd.f32 %v2349, %v2461
      %v2463 = vpop.f32.mrf.mxu0
      %v2464 = vpop.f32.mrf.mxu0
      %v2465 = vadd.f32 %v2352, %v2464
      %v2466 = vpop.f32.mrf.mxu0
      %2467 = vmatprep.mubr.bf16.mxu0 %v2268
      %2468 = vmatmul.mubr.bf16.gmra.mxu0 %v1936
      %v2469 = vpop.f32.mrf.mxu0
      %v2470 = vadd.f32 %v2357, %v2469
      %v2471 = vpop.f32.mrf.mxu0
      %v2472 = vpop.f32.mrf.mxu0
      %v2473 = vadd.f32 %v2360, %v2472
      %v2474 = vpop.f32.mrf.mxu0
      %2475 = vmatprep.mubr.bf16.mxu0 %v2271
      %2476 = vmatmul.mubr.bf16.gmra.mxu0 %v1957
      %v2477 = vpop.f32.mrf.mxu0
      %v2478 = vadd.f32 %v2365, %v2477
      %v2479 = vpop.f32.mrf.mxu0
      %v2480 = vpop.f32.mrf.mxu0
      %v2481 = vadd.f32 %v2368, %v2480
      %v2482 = vpop.f32.mrf.mxu0
      %2483 = vmatprep.mubr.bf16.mxu0 %v2274
      %2484 = vmatmul.mubr.bf16.gmra.mxu0 %v1978
      %v2485 = vpop.f32.mrf.mxu0
      %v2486 = vadd.f32 %v2373, %v2485
      %v2487 = vpop.f32.mrf.mxu0
      %v2488 = vpop.f32.mrf.mxu0
      %v2489 = vadd.f32 %v2376, %v2488
      %v2490 = vpop.f32.mrf.mxu0
      %2491 = vmatprep.mubr.bf16.mxu0 %v2277
      %2492 = vmatmul.mubr.bf16.gmra.mxu0 %v2000
      %v2493 = vpop.f32.mrf.mxu0
      %v2494 = vadd.f32 %v2381, %v2493
      %v2495 = vpop.f32.mrf.mxu0
      %v2496 = vpop.f32.mrf.mxu0
      %v2497 = vadd.f32 %v2384, %v2496
      %v2498 = vpop.f32.mrf.mxu0
      %2499 = vmatprep.mubr.bf16.mxu0 %v2280
      %2500 = vmatmul.mubr.bf16.gmra.mxu0 %v2022
      %v2501 = vpop.f32.mrf.mxu0
      %v2502 = vadd.f32 %v2389, %v2501
      %v2503 = vpop.f32.mrf.mxu0
      %v2504 = vpop.f32.mrf.mxu0
      %v2505 = vadd.f32 %v2392, %v2504
      %v2506 = vpop.f32.mrf.mxu0
      %2507 = vdwg.mxu0
      %v2508 = vlaneseq
      %v2509 = vshrl.u32 %v2508, 7
      %v2510 = vadd.s32 %v2509, 8
      %s2511 = smul.u32 %s21, 8
      %s2512 = ssub.s32 %s2511, 4
      %v2513 = vstv %s2512
      %v2514 = vadd.s32 %v2513, %v2509
      %v2515 = vadd.s32 %v2513, %v2510
      %vm2516 = vcmp.ge.s32.totalorder %v2514, 0
      %vm2517 = vcmp.ge.s32.totalorder %v2515, 0
      %vm2518 = vmand 0, %vm2516
      %vm2519 = vmand 0, %vm2517
      %vm2520 = vmand 1, %vm2516
      %vm2521 = vmand 1, %vm2517
      %vm2522 = vcmp.lt.s32.totalorder %v2514, 12
      %vm2523 = vcmp.lt.s32.totalorder %v2515, 12
      %vm2524 = vmand %vm2518, %vm2522
      %vm2525 = vmand %vm2519, %vm2523
      %vm2526 = vmand %vm2520, %vm2522
      %vm2527 = vmand %vm2521, %vm2523
      %v2528 = vsel %vm2524, 1, 0
      %v2529 = vsel %vm2525, 1, 0
      %v2530 = vsel %vm2526, 1, 0
      %v2531 = vsel %vm2527, 1, 0
      %vm2532 = vcmp.eq.s32.totalorder %v2528, 1
      %vm2533 = vcmp.eq.s32.totalorder %v2529, 1
      %vm2534 = vcmp.eq.s32.totalorder %v2530, 1
      %vm2535 = vcmp.eq.s32.totalorder %v2531, 1
      %v2536 = vsel %vm2532, %v2430, 0.0
      %v2537 = vsel %vm2533, %v2433, 0.0
      %v2538 = vsel %vm2534, %v2438, 0.0
      %v2539 = vsel %vm2535, %v2441, 0.0
      %v2540 = vsel %vm2534, %v2446, 0.0
      %v2541 = vsel %vm2535, %v2449, 0.0
      %v2542 = vsel %vm2534, %v2454, 0.0
      %v2543 = vsel %vm2535, %v2457, 0.0
      %v2544 = vsel %vm2534, %v2462, 0.0
      %v2545 = vsel %vm2535, %v2465, 0.0
      %v2546 = vsel %vm2534, %v2470, 0.0
      %v2547 = vsel %vm2535, %v2473, 0.0
      %v2548 = vsel %vm2534, %v2478, 0.0
      %v2549 = vsel %vm2535, %v2481, 0.0
      %v2550 = vsel %vm2534, %v2486, 0.0
      %v2551 = vsel %vm2535, %v2489, 0.0
      %v2552 = vsel %vm2534, %v2494, 0.0
      %v2553 = vsel %vm2535, %v2497, 0.0
      %v2554 = vsel %vm2532, %v2502, 0.0
      %v2555 = vsel %vm2533, %v2505, 0.0
      %v2556 = vpack.c.bf16 %v2537, %v2536
      %v2557 = vpack.c.bf16 %v2539, %v2538
      %v2558 = vpack.c.bf16 %v2541, %v2540
      %v2559 = vpack.c.bf16 %v2543, %v2542
      %v2560 = vpack.c.bf16 %v2545, %v2544
      %v2561 = vpack.c.bf16 %v2547, %v2546
      %v2562 = vpack.c.bf16 %v2549, %v2548
      %v2563 = vpack.c.bf16 %v2551, %v2550
      %v2564 = vpack.c.bf16 %v2553, %v2552
      %v2565 = vpack.c.bf16 %v2555, %v2554
      %2574 = vrot.lane.b32.xlu0 %v2556, 48
      %v2575 = vpop.permute.xlu0 %2574
      %2576 = vrot.lane.b32.xlu0 %v2557, 48
      %v2577 = vpop.permute.xlu0 %2576
      %2578 = vrot.lane.b32.xlu0 %v2558, 48
      %v2579 = vpop.permute.xlu0 %2578
      %2580 = vrot.lane.b32.xlu0 %v2559, 48
      %v2581 = vpop.permute.xlu0 %2580
      %2582 = vrot.lane.b32.xlu0 %v2560, 48
      %v2583 = vpop.permute.xlu0 %2582
      %2584 = vrot.lane.b32.xlu0 %v2561, 48
      %v2585 = vpop.permute.xlu0 %2584
      %2586 = vrot.lane.b32.xlu0 %v2562, 48
      %v2587 = vpop.permute.xlu0 %2586
      %2588 = vrot.lane.b32.xlu0 %v2563, 48
      %v2589 = vpop.permute.xlu0 %2588
      %v2591 = vshrl.u32 %v2556, 16
      %v2593 = vshll.u32 %v2556, 16
      %v2595 = vrot.slane %v2593, 1
      %v2596 = vor.u32 %v2591, %v2595
      %v2598 = vshrl.u32 %v2557, 16
      %v2600 = vshll.u32 %v2557, 16
      %v2602 = vrot.slane %v2600, 1
      %v2603 = vor.u32 %v2598, %v2602
      %v2605 = vshrl.u32 %v2558, 16
      %v2607 = vshll.u32 %v2558, 16
      %v2609 = vrot.slane %v2607, 1
      %v2610 = vor.u32 %v2605, %v2609
      %v2612 = vshrl.u32 %v2559, 16
      %v2614 = vshll.u32 %v2559, 16
      %v2616 = vrot.slane %v2614, 1
      %v2617 = vor.u32 %v2612, %v2616
      %v2619 = vshrl.u32 %v2560, 16
      %v2621 = vshll.u32 %v2560, 16
      %v2623 = vrot.slane %v2621, 1
      %v2624 = vor.u32 %v2619, %v2623
      %v2626 = vshrl.u32 %v2561, 16
      %v2628 = vshll.u32 %v2561, 16
      %v2630 = vrot.slane %v2628, 1
      %v2631 = vor.u32 %v2626, %v2630
      %v2633 = vshrl.u32 %v2562, 16
      %v2635 = vshll.u32 %v2562, 16
      %v2637 = vrot.slane %v2635, 1
      %v2638 = vor.u32 %v2633, %v2637
      %v2640 = vshrl.u32 %v2563, 16
      %v2642 = vshll.u32 %v2563, 16
      %v2644 = vrot.slane %v2642, 1
      %v2645 = vor.u32 %v2640, %v2644
      %2646 = vrot.lane.b32.xlu0 %v2596, 80
      %v2647 = vpop.permute.xlu0 %2646
      %2648 = vrot.lane.b32.xlu0 %v2603, 80
      %v2649 = vpop.permute.xlu0 %2648
      %2650 = vrot.lane.b32.xlu0 %v2610, 80
      %v2651 = vpop.permute.xlu0 %2650
      %2652 = vrot.lane.b32.xlu0 %v2617, 80
      %v2653 = vpop.permute.xlu0 %2652
      %2654 = vrot.lane.b32.xlu0 %v2624, 80
      %v2655 = vpop.permute.xlu0 %2654
      %2656 = vrot.lane.b32.xlu0 %v2631, 80
      %v2657 = vpop.permute.xlu0 %2656
      %2658 = vrot.lane.b32.xlu0 %v2638, 80
      %v2659 = vpop.permute.xlu0 %2658
      %2660 = vrot.lane.b32.xlu0 %v2645, 80
      %v2661 = vpop.permute.xlu0 %2660
      %2663 = vrot.lane.b32.xlu0 %v2557, 32
      %v2664 = vpop.permute.xlu0 %2663
      %2665 = vrot.lane.b32.xlu0 %v2558, 32
      %v2666 = vpop.permute.xlu0 %2665
      %2667 = vrot.lane.b32.xlu0 %v2559, 32
      %v2668 = vpop.permute.xlu0 %2667
      %2669 = vrot.lane.b32.xlu0 %v2560, 32
      %v2670 = vpop.permute.xlu0 %2669
      %2671 = vrot.lane.b32.xlu0 %v2561, 32
      %v2672 = vpop.permute.xlu0 %2671
      %2673 = vrot.lane.b32.xlu0 %v2562, 32
      %v2674 = vpop.permute.xlu0 %2673
      %2675 = vrot.lane.b32.xlu0 %v2563, 32
      %v2676 = vpop.permute.xlu0 %2675
      %2677 = vrot.lane.b32.xlu0 %v2564, 32
      %v2678 = vpop.permute.xlu0 %2677
      %v2680 = vshrl.u32 %v2564, 16
      %v2682 = vshll.u32 %v2564, 16
      %v2684 = vrot.slane %v2682, 1
      %v2685 = vor.u32 %v2680, %v2684
      %2686 = vrot.lane.b32.xlu0 %v2603, 64
      %v2687 = vpop.permute.xlu0 %2686
      %2688 = vrot.lane.b32.xlu0 %v2610, 64
      %v2689 = vpop.permute.xlu0 %2688
      %2690 = vrot.lane.b32.xlu0 %v2617, 64
      %v2691 = vpop.permute.xlu0 %2690
      %2692 = vrot.lane.b32.xlu0 %v2624, 64
      %v2693 = vpop.permute.xlu0 %2692
      %2694 = vrot.lane.b32.xlu0 %v2631, 64
      %v2695 = vpop.permute.xlu0 %2694
      %2696 = vrot.lane.b32.xlu0 %v2638, 64
      %v2697 = vpop.permute.xlu0 %2696
      %2698 = vrot.lane.b32.xlu0 %v2645, 64
      %v2699 = vpop.permute.xlu0 %2698
      %2700 = vrot.lane.b32.xlu0 %v2685, 64
      %v2701 = vpop.permute.xlu0 %2700
      %2702 = vrot.lane.b32.xlu0 %v2564, 48
      %v2703 = vpop.permute.xlu0 %2702
      %2704 = vrot.lane.b32.xlu0 %v2685, 80
      %v2705 = vpop.permute.xlu0 %2704
      %v2708 = vsel %vm1013, %v2575, %v2647
      %v2711 = vsel %vm1013, %v2577, %v2649
      %v2714 = vsel %vm1013, %v2579, %v2651
      %v2717 = vsel %vm1013, %v2581, %v2653
      %v2720 = vsel %vm1013, %v2583, %v2655
      %v2723 = vsel %vm1013, %v2585, %v2657
      %v2726 = vsel %vm1013, %v2587, %v2659
      %v2729 = vsel %vm1013, %v2589, %v2661
      %v2730 = vsel %vm1034, %v2708, %v2647
      %v2731 = vsel %vm1034, %v2711, %v2649
      %v2732 = vsel %vm1034, %v2714, %v2651
      %v2733 = vsel %vm1034, %v2717, %v2653
      %v2734 = vsel %vm1034, %v2720, %v2655
      %v2735 = vsel %vm1034, %v2723, %v2657
      %v2736 = vsel %vm1034, %v2726, %v2659
      %v2737 = vsel %vm1034, %v2729, %v2661
      %v2739 = vsel %vm1055, %v2730, %v2664
      %v2741 = vsel %vm1055, %v2731, %v2666
      %v2743 = vsel %vm1055, %v2732, %v2668
      %v2745 = vsel %vm1055, %v2733, %v2670
      %v2747 = vsel %vm1055, %v2734, %v2672
      %v2749 = vsel %vm1055, %v2735, %v2674
      %v2751 = vsel %vm1055, %v2736, %v2676
      %v2753 = vsel %vm1055, %v2737, %v2678
      %v2755 = vsel %vm1076, %v2739, %v2687
      %v2757 = vsel %vm1076, %v2741, %v2689
      %v2759 = vsel %vm1076, %v2743, %v2691
      %v2761 = vsel %vm1076, %v2745, %v2693
      %v2763 = vsel %vm1076, %v2747, %v2695
      %v2765 = vsel %vm1076, %v2749, %v2697
      %v2767 = vsel %vm1076, %v2751, %v2699
      %v2769 = vsel %vm1076, %v2753, %v2701
      %v2770 = vsel %vm1097, %v2755, %v2687
      %v2771 = vsel %vm1097, %v2757, %v2689
      %v2772 = vsel %vm1097, %v2759, %v2691
      %v2773 = vsel %vm1097, %v2761, %v2693
      %v2774 = vsel %vm1097, %v2763, %v2695
      %v2775 = vsel %vm1097, %v2765, %v2697
      %v2776 = vsel %vm1097, %v2767, %v2699
      %v2777 = vsel %vm1097, %v2769, %v2701
      %v2778 = vsel %vm1118, %v2770, %v2577
      %v2779 = vsel %vm1118, %v2771, %v2579
      %v2780 = vsel %vm1118, %v2772, %v2581
      %v2781 = vsel %vm1118, %v2773, %v2583
      %v2782 = vsel %vm1118, %v2774, %v2585
      %v2783 = vsel %vm1118, %v2775, %v2587
      %v2784 = vsel %vm1118, %v2776, %v2589
      %v2786 = vsel %vm1118, %v2777, %v2703
      %v2787 = vsel %vm1139, %v2778, %v2649
      %v2788 = vsel %vm1139, %v2779, %v2651
      %v2789 = vsel %vm1139, %v2780, %v2653
      %v2790 = vsel %vm1139, %v2781, %v2655
      %v2791 = vsel %vm1139, %v2782, %v2657
      %v2792 = vsel %vm1139, %v2783, %v2659
      %v2793 = vsel %vm1139, %v2784, %v2661
      %v2795 = vsel %vm1139, %v2786, %v2705
      %v2804 = vunpack.c.l.b16 %v2787
      %v2805 = vunpack.c.l.b16 %v2649
      %v2806 = vunpack.c.h.b16 %v2787
      %v2807 = vunpack.c.h.b16 %v2649
      %v2808 = vunpack.c.l.b16 %v2788
      %v2809 = vunpack.c.l.b16 %v2651
      %v2810 = vunpack.c.h.b16 %v2788
      %v2811 = vunpack.c.h.b16 %v2651
      %v2812 = vunpack.c.l.b16 %v2789
      %v2813 = vunpack.c.l.b16 %v2653
      %v2814 = vunpack.c.h.b16 %v2789
      %v2815 = vunpack.c.h.b16 %v2653
      %v2816 = vunpack.c.l.b16 %v2790
      %v2817 = vunpack.c.l.b16 %v2655
      %v2818 = vunpack.c.h.b16 %v2790
      %v2819 = vunpack.c.h.b16 %v2655
      %v2820 = vunpack.c.l.b16 %v2791
      %v2821 = vunpack.c.l.b16 %v2657
      %v2822 = vunpack.c.h.b16 %v2791
      %v2823 = vunpack.c.h.b16 %v2657
      %v2824 = vunpack.c.l.b16 %v2792
      %v2825 = vunpack.c.l.b16 %v2659
      %v2826 = vunpack.c.h.b16 %v2792
      %v2827 = vunpack.c.h.b16 %v2659
      %v2828 = vunpack.c.l.b16 %v2793
      %v2829 = vunpack.c.l.b16 %v2661
      %v2830 = vunpack.c.h.b16 %v2793
      %v2831 = vunpack.c.h.b16 %v2661
      %v2832 = vunpack.c.l.b16 %v2795
      %v2833 = vunpack.c.l.b16 %v2705
      %v2834 = vunpack.c.h.b16 %v2795
      %v2835 = vunpack.c.h.b16 %v2705
      %v2836 = vpack.c.b16 %v2805, %v2804
      %v2837 = vpack.c.b16 %v2807, %v2806
      %v2838 = vpack.c.b16 %v2809, %v2808
      %v2839 = vpack.c.b16 %v2811, %v2810
      %v2840 = vpack.c.b16 %v2813, %v2812
      %v2841 = vpack.c.b16 %v2815, %v2814
      %v2842 = vpack.c.b16 %v2817, %v2816
      %v2843 = vpack.c.b16 %v2819, %v2818
      %v2844 = vpack.c.b16 %v2821, %v2820
      %v2845 = vpack.c.b16 %v2823, %v2822
      %v2846 = vpack.c.b16 %v2825, %v2824
      %v2847 = vpack.c.b16 %v2827, %v2826
      %v2848 = vpack.c.b16 %v2829, %v2828
      %v2849 = vpack.c.b16 %v2831, %v2830
      %v2850 = vpack.c.b16 %v2833, %v2832
      %v2851 = vpack.c.b16 %v2835, %v2834
      %vm2852 = vsmask.f32 2304
      %vm2853 = vsmask.f32 6416
      %vm2854 = vmor %vm2852, %vm2853
      %v2856 = vshrl.u32 %v2836, 16
      %v2858 = vrot.slane %v2856, 5
      %v2859 = vshll.u32 %v2836, 16
      %v2861 = vrot.slane %v2859, 6
      %v2862 = vor.u32 %v2858, %v2861
      %v2863 = vrot.slane %v2862, 4
      %v2865 = vshrl.u32 %v2837, 16
      %v2867 = vrot.slane %v2865, 5
      %v2868 = vshll.u32 %v2837, 16
      %v2870 = vrot.slane %v2868, 6
      %v2871 = vor.u32 %v2867, %v2870
      %v2872 = vsel %vm2854, %v2863, %v2871
      %v2874 = vshrl.u32 %v2838, 16
      %v2876 = vrot.slane %v2874, 5
      %v2877 = vshll.u32 %v2838, 16
      %v2879 = vrot.slane %v2877, 6
      %v2880 = vor.u32 %v2876, %v2879
      %v2881 = vrot.slane %v2880, 4
      %v2883 = vshrl.u32 %v2839, 16
      %v2885 = vrot.slane %v2883, 5
      %v2886 = vshll.u32 %v2839, 16
      %v2888 = vrot.slane %v2886, 6
      %v2889 = vor.u32 %v2885, %v2888
      %v2890 = vsel %vm2854, %v2881, %v2889
      %v2892 = vshrl.u32 %v2840, 16
      %v2894 = vrot.slane %v2892, 5
      %v2895 = vshll.u32 %v2840, 16
      %v2897 = vrot.slane %v2895, 6
      %v2898 = vor.u32 %v2894, %v2897
      %v2899 = vrot.slane %v2898, 4
      %v2901 = vshrl.u32 %v2841, 16
      %v2903 = vrot.slane %v2901, 5
      %v2904 = vshll.u32 %v2841, 16
      %v2906 = vrot.slane %v2904, 6
      %v2907 = vor.u32 %v2903, %v2906
      %v2908 = vsel %vm2854, %v2899, %v2907
      %v2910 = vshrl.u32 %v2842, 16
      %v2912 = vrot.slane %v2910, 5
      %v2913 = vshll.u32 %v2842, 16
      %v2915 = vrot.slane %v2913, 6
      %v2916 = vor.u32 %v2912, %v2915
      %v2917 = vrot.slane %v2916, 4
      %v2919 = vshrl.u32 %v2843, 16
      %v2921 = vrot.slane %v2919, 5
      %v2922 = vshll.u32 %v2843, 16
      %v2924 = vrot.slane %v2922, 6
      %v2925 = vor.u32 %v2921, %v2924
      %v2926 = vsel %vm2854, %v2917, %v2925
      %v2928 = vshrl.u32 %v2844, 16
      %v2930 = vrot.slane %v2928, 5
      %v2931 = vshll.u32 %v2844, 16
      %v2933 = vrot.slane %v2931, 6
      %v2934 = vor.u32 %v2930, %v2933
      %v2935 = vrot.slane %v2934, 4
      %v2937 = vshrl.u32 %v2845, 16
      %v2939 = vrot.slane %v2937, 5
      %v2940 = vshll.u32 %v2845, 16
      %v2942 = vrot.slane %v2940, 6
      %v2943 = vor.u32 %v2939, %v2942
      %v2944 = vsel %vm2854, %v2935, %v2943
      %v2946 = vshrl.u32 %v2846, 16
      %v2948 = vrot.slane %v2946, 5
      %v2949 = vshll.u32 %v2846, 16
      %v2951 = vrot.slane %v2949, 6
      %v2952 = vor.u32 %v2948, %v2951
      %v2953 = vrot.slane %v2952, 4
      %v2955 = vshrl.u32 %v2847, 16
      %v2957 = vrot.slane %v2955, 5
      %v2958 = vshll.u32 %v2847, 16
      %v2960 = vrot.slane %v2958, 6
      %v2961 = vor.u32 %v2957, %v2960
      %v2962 = vsel %vm2854, %v2953, %v2961
      %v2964 = vshrl.u32 %v2848, 16
      %v2966 = vrot.slane %v2964, 5
      %v2967 = vshll.u32 %v2848, 16
      %v2969 = vrot.slane %v2967, 6
      %v2970 = vor.u32 %v2966, %v2969
      %v2971 = vrot.slane %v2970, 4
      %v2973 = vshrl.u32 %v2849, 16
      %v2975 = vrot.slane %v2973, 5
      %v2976 = vshll.u32 %v2849, 16
      %v2978 = vrot.slane %v2976, 6
      %v2979 = vor.u32 %v2975, %v2978
      %v2980 = vsel %vm2854, %v2971, %v2979
      %v2982 = vshrl.u32 %v2850, 16
      %v2984 = vrot.slane %v2982, 5
      %v2985 = vshll.u32 %v2850, 16
      %v2987 = vrot.slane %v2985, 6
      %v2988 = vor.u32 %v2984, %v2987
      %v2989 = vrot.slane %v2988, 4
      %v2991 = vshrl.u32 %v2851, 16
      %v2993 = vrot.slane %v2991, 5
      %v2994 = vshll.u32 %v2851, 16
      %v2996 = vrot.slane %v2994, 6
      %v2997 = vor.u32 %v2993, %v2996
      %v2998 = vsel %vm2854, %v2989, %v2997
      %v2999 = vld [vmem:[%s3] sm:$0xf]
      %v3000 = vld [vmem:[%s3 + $0x4] sm:$0xf]
      %v3001 = vld [vmem:[%s3 + $0x8] sm:$0xf]
      %v3002 = vld [vmem:[%s3 + $0xc] sm:$0xf]
      %v3003 = vld [vmem:[%s3 + $0x10] sm:$0xf]
      %v3004 = vld [vmem:[%s3 + $0x14] sm:$0xf]
      %v3005 = vld [vmem:[%s3 + $0x18] sm:$0xf]
      %v3006 = vld [vmem:[%s3 + $0x1c] sm:$0xf]
      %v3007 = vld [vmem:[%s3 + $0x20] sm:$0xf]
      %v3008 = vld [vmem:[%s3 + $0x24] sm:$0xf]
      %v3009 = vld [vmem:[%s3 + $0x28] sm:$0xf]
      %v3010 = vld [vmem:[%s3 + $0x2c] sm:$0xf]
      %v3011 = vld [vmem:[%s3 + $0x30] sm:$0xf]
      %v3012 = vld [vmem:[%s3 + $0x34] sm:$0xf]
      %v3013 = vld [vmem:[%s3 + $0x38] sm:$0xf]
      %v3014 = vld [vmem:[%s3 + $0x3c] sm:$0xf]
      %v3015 = vld [vmem:[%s3 + $0x40] sm:$0xf]
      %v3016 = vld [vmem:[%s3 + $0x44] sm:$0xf]
      %v3017 = vld [vmem:[%s4] sm:$0x1]
      %v3019 = vlaneseq
      %v3020 = vshrl.u32 %v3019, 7
      %v3021 = vsub.s32 0, %v3020
      %v3022 = vrot.slane %v3017, %v3021
      %v3024 = vunpack.c.l.b16 %v2872
      %v3025 = vunpack.c.h.b16 %v2872
      %v3026 = vunpack.c.l.b16 %v2890
      %v3027 = vunpack.c.h.b16 %v2890
      %v3028 = vunpack.c.l.b16 %v2908
      %v3029 = vunpack.c.h.b16 %v2908
      %v3030 = vunpack.c.l.b16 %v2926
      %v3031 = vunpack.c.h.b16 %v2926
      %v3032 = vunpack.c.l.b16 %v2944
      %v3033 = vunpack.c.h.b16 %v2944
      %v3034 = vunpack.c.l.b16 %v2962
      %v3035 = vunpack.c.h.b16 %v2962
      %v3036 = vunpack.c.l.b16 %v2980
      %v3037 = vunpack.c.h.b16 %v2980
      %v3038 = vunpack.c.l.b16 %v2998
      %v3039 = vunpack.c.h.b16 %v2998
      %v3040 = vpack.c.b16 %v3026, %v3024
      %v3041 = vpack.c.b16 %v3027, %v3025
      %v3042 = vpack.c.b16 %v3030, %v3028
      %v3043 = vpack.c.b16 %v3031, %v3029
      %v3044 = vpack.c.b16 %v3034, %v3032
      %v3045 = vpack.c.b16 %v3035, %v3033
      %v3046 = vpack.c.b16 %v3038, %v3036
      %v3047 = vpack.c.b16 %v3039, %v3037
      %v3070 = vunpack.c.l.b16 %v2999
      %v3071 = vunpack.c.l.b16 %v3000
      %v3072 = vunpack.c.l.b16 %v3001
      %v3073 = vunpack.c.l.b16 %v3002
      %v3074 = vunpack.c.l.b16 %v3003
      %v3075 = vunpack.c.l.b16 %v3004
      %v3076 = vunpack.c.l.b16 %v3005
      %v3077 = vunpack.c.l.b16 %v3006
      %v3078 = vunpack.c.l.b16 %v3007
      %v3079 = vunpack.c.l.b16 %v3008
      %v3080 = vunpack.c.l.b16 %v3009
      %v3081 = vunpack.c.l.b16 %v3010
      %v3082 = vunpack.c.l.b16 %v3011
      %v3083 = vunpack.c.l.b16 %v3012
      %v3084 = vunpack.c.l.b16 %v3013
      %v3085 = vunpack.c.l.b16 %v3014
      %v3086 = vunpack.c.l.b16 %v3015
      %v3087 = vunpack.c.l.b16 %v3016
      %v3088 = vpack.c.b16 %v3071, %v3070
      %v3089 = vpack.c.b16 %v3073, %v3072
      %v3090 = vpack.c.b16 %v3075, %v3074
      %v3091 = vpack.c.b16 %v3077, %v3076
      %v3092 = vpack.c.b16 %v3079, %v3078
      %v3093 = vpack.c.b16 %v3081, %v3080
      %v3094 = vpack.c.b16 %v3083, %v3082
      %v3095 = vpack.c.b16 %v3085, %v3084
      %v3096 = vpack.c.b16 %v3087, %v3086
      %v3107 = vsel %vm1013, %v3041, 0
      %v3110 = vsel %vm1013, %v3043, 0
      %v3113 = vsel %vm1013, %v3045, 0
      %v3116 = vsel %vm1013, %v3047, 0
      %3118 = vmatprep.subr.bf16.mxu0 0
      %3119 = vmatpush1.bf16.msra.mxu0 %v3095
      %3120 = vmatprep.subr.bf16.mxu0 0
      %3121 = vmatpush1.bf16.msra.mxu0 %v3094
      %3122 = vmatprep.subr.bf16.mxu0 0
      %3123 = vmatpush1.bf16.msra.mxu0 %v3093
      %3124 = vmatprep.subr.bf16.mxu0 0
      %3125 = vmatpush1.bf16.msra.mxu0 %v3092
      %3126 = vmatprep.subr.bf16.mxu0 0
      %3127 = vmatpush1.bf16.msra.mxu0 %v3091
      %3128 = vmatprep.subr.bf16.mxu0 0
      %3129 = vmatpush1.bf16.msra.mxu0 %v3090
      %3130 = vmatprep.subr.bf16.mxu0 0
      %3131 = vmatpush1.bf16.msra.mxu0 %v3089
      %3132 = vmatprep.subr.bf16.mxu0 0
      %3133 = vmatpush1.bf16.msra.mxu0 %v3088
      %3134 = vmatprep.subr.bf16.mxu0 0
      %3135 = vmatpush2.bf16.msra.mxu0 0
      %3136 = vmatprep.subr.bf16.mxu0 0
      %3137 = vmatpush2.bf16.msra.mxu0 0
      %3138 = vmatprep.subr.bf16.mxu0 0
      %3139 = vmatpush2.bf16.msra.mxu0 0
      %3140 = vmatprep.subr.bf16.mxu0 0
      %3141 = vmatpush2.bf16.msra.mxu0 0
      %3142 = vmatprep.subr.bf16.mxu0 0
      %3143 = vmatpush2.bf16.msra.mxu0 0
      %3144 = vmatprep.subr.bf16.mxu0 0
      %3145 = vmatpush2.bf16.msra.mxu0 0
      %3146 = vmatprep.subr.bf16.mxu0 0
      %3147 = vmatpush2.bf16.msra.mxu0 0
      %3148 = vmatprep.subr.bf16.mxu0 0
      %3149 = vmatpush2.bf16.msra.mxu0 %v3096
      %3150 = vmatprep.mubr.bf16.mxu0 %v3107
      %3151 = vmatmul.mubr.bf16.gmra.mxu0 %v3040
      %v3152 = vpop.f32.mrf.mxu0
      %v3153 = vadd.f32 %v3022, %v3152
      %v3154 = vpop.f32.mrf.mxu0
      %v3155 = vpop.f32.mrf.mxu0
      %v3156 = vadd.f32 %v3022, %v3155
      %v3157 = vpop.f32.mrf.mxu0
      %3158 = vmatprep.mubr.bf16.mxu0 %v3110
      %3159 = vmatmul.mubr.bf16.gmra.mxu0 %v3042
      %v3160 = vpop.f32.mrf.mxu0
      %v3161 = vadd.f32 %v3022, %v3160
      %v3162 = vpop.f32.mrf.mxu0
      %v3163 = vpop.f32.mrf.mxu0
      %v3164 = vadd.f32 %v3022, %v3163
      %v3165 = vpop.f32.mrf.mxu0
      %3166 = vmatprep.mubr.bf16.mxu0 %v3113
      %3167 = vmatmul.mubr.bf16.gmra.mxu0 %v3044
      %v3168 = vpop.f32.mrf.mxu0
      %v3169 = vadd.f32 %v3022, %v3168
      %v3170 = vpop.f32.mrf.mxu0
      %v3171 = vpop.f32.mrf.mxu0
      %v3172 = vadd.f32 %v3022, %v3171
      %v3173 = vpop.f32.mrf.mxu0
      %3174 = vmatprep.mubr.bf16.mxu0 %v3116
      %3175 = vmatmul.mubr.bf16.gmra.mxu0 %v3046
      %v3176 = vpop.f32.mrf.mxu0
      %v3177 = vadd.f32 %v3022, %v3176
      %v3178 = vpop.f32.mrf.mxu0
      %v3179 = vpop.f32.mrf.mxu0
      %v3180 = vadd.f32 %v3022, %v3179
      %v3181 = vpop.f32.mrf.mxu0
      %3182 = vdwg.mxu0
      %vm3183 = vcmask 15360
      %3184 = vst.msk [vmem:[%s260] sm:$0xff] %vm3183, %v3153
      %3185 = vst.msk [vmem:[%s260 + $0x8] sm:$0xff] %vm3183, %v3156
      %3186 = vst.msk [vmem:[%s260 + $0x10] sm:$0xff] %vm3183, %v3161
      %3187 = vst.msk [vmem:[%s260 + $0x18] sm:$0xff] %vm3183, %v3164
      %3188 = vst.msk [vmem:[%s260 + $0x20] sm:$0xff] %vm3183, %v3169
      %3189 = vst.msk [vmem:[%s260 + $0x28] sm:$0xff] %vm3183, %v3172
      %3190 = vst.msk [vmem:[%s260 + $0x30] sm:$0xff] %vm3183, %v3177
      %3191 = vst.msk [vmem:[%s260 + $0x38] sm:$0xff] %vm3183, %v3180
      %3192 = vrot.lane.b32.xlu0 %v2556, 64
      %v3193 = vpop.permute.xlu0 %3192
      %3194 = vrot.lane.b32.xlu0 %v2557, 64
      %v3195 = vpop.permute.xlu0 %3194
      %3196 = vrot.lane.b32.xlu0 %v2558, 64
      %v3197 = vpop.permute.xlu0 %3196
      %3198 = vrot.lane.b32.xlu0 %v2559, 64
      %v3199 = vpop.permute.xlu0 %3198
      %3200 = vrot.lane.b32.xlu0 %v2560, 64
      %v3201 = vpop.permute.xlu0 %3200
      %3202 = vrot.lane.b32.xlu0 %v2561, 64
      %v3203 = vpop.permute.xlu0 %3202
      %3204 = vrot.lane.b32.xlu0 %v2562, 64
      %v3205 = vpop.permute.xlu0 %3204
      %3206 = vrot.lane.b32.xlu0 %v2563, 64
      %v3207 = vpop.permute.xlu0 %3206
      %3208 = vrot.lane.b32.xlu0 %v2596, 96
      %v3209 = vpop.permute.xlu0 %3208
      %3210 = vrot.lane.b32.xlu0 %v2603, 96
      %v3211 = vpop.permute.xlu0 %3210
      %3212 = vrot.lane.b32.xlu0 %v2610, 96
      %v3213 = vpop.permute.xlu0 %3212
      %3214 = vrot.lane.b32.xlu0 %v2617, 96
      %v3215 = vpop.permute.xlu0 %3214
      %3216 = vrot.lane.b32.xlu0 %v2624, 96
      %v3217 = vpop.permute.xlu0 %3216
      %3218 = vrot.lane.b32.xlu0 %v2631, 96
      %v3219 = vpop.permute.xlu0 %3218
      %3220 = vrot.lane.b32.xlu0 %v2638, 96
      %v3221 = vpop.permute.xlu0 %3220
      %3222 = vrot.lane.b32.xlu0 %v2645, 96
      %v3223 = vpop.permute.xlu0 %3222
      %3224 = vrot.lane.b32.xlu0 %v2564, 64
      %v3225 = vpop.permute.xlu0 %3224
      %3226 = vrot.lane.b32.xlu0 %v2685, 96
      %v3227 = vpop.permute.xlu0 %3226
      %v3237 = vsel %vm1034, %v3193, %v3209
      %v3239 = vsel %vm1034, %v3195, %v3211
      %v3241 = vsel %vm1034, %v3197, %v3213
      %v3243 = vsel %vm1034, %v3199, %v3215
      %v3245 = vsel %vm1034, %v3201, %v3217
      %v3247 = vsel %vm1034, %v3203, %v3219
      %v3249 = vsel %vm1034, %v3205, %v3221
      %v3251 = vsel %vm1034, %v3207, %v3223
      %v3252 = vsel %vm1055, %v3237, %v2577
      %v3253 = vsel %vm1055, %v3239, %v2579
      %v3254 = vsel %vm1055, %v3241, %v2581
      %v3255 = vsel %vm1055, %v3243, %v2583
      %v3256 = vsel %vm1055, %v3245, %v2585
      %v3257 = vsel %vm1055, %v3247, %v2587
      %v3258 = vsel %vm1055, %v3249, %v2589
      %v3259 = vsel %vm1055, %v3251, %v2703
      %v3260 = vsel %vm1076, %v3252, %v2577
      %v3261 = vsel %vm1076, %v3253, %v2579
      %v3262 = vsel %vm1076, %v3254, %v2581
      %v3263 = vsel %vm1076, %v3255, %v2583
      %v3264 = vsel %vm1076, %v3256, %v2585
      %v3265 = vsel %vm1076, %v3257, %v2587
      %v3266 = vsel %vm1076, %v3258, %v2589
      %v3267 = vsel %vm1076, %v3259, %v2703
      %v3268 = vsel %vm1097, %v3260, %v2649
      %v3269 = vsel %vm1097, %v3261, %v2651
      %v3270 = vsel %vm1097, %v3262, %v2653
      %v3271 = vsel %vm1097, %v3263, %v2655
      %v3272 = vsel %vm1097, %v3264, %v2657
      %v3273 = vsel %vm1097, %v3265, %v2659
      %v3274 = vsel %vm1097, %v3266, %v2661
      %v3275 = vsel %vm1097, %v3267, %v2705
      %v3276 = vsel %vm1118, %v3268, %v3195
      %v3277 = vsel %vm1118, %v3269, %v3197
      %v3278 = vsel %vm1118, %v3270, %v3199
      %v3279 = vsel %vm1118, %v3271, %v3201
      %v3280 = vsel %vm1118, %v3272, %v3203
      %v3281 = vsel %vm1118, %v3273, %v3205
      %v3282 = vsel %vm1118, %v3274, %v3207
      %v3284 = vsel %vm1118, %v3275, %v3225
      %v3285 = vsel %vm1139, %v3276, %v3195
      %v3286 = vsel %vm1139, %v3277, %v3197
      %v3287 = vsel %vm1139, %v3278, %v3199
      %v3288 = vsel %vm1139, %v3279, %v3201
      %v3289 = vsel %vm1139, %v3280, %v3203
      %v3290 = vsel %vm1139, %v3281, %v3205
      %v3291 = vsel %vm1139, %v3282, %v3207
      %v3292 = vsel %vm1139, %v3284, %v3225
      %v3301 = vunpack.c.l.b16 %v3285
      %v3302 = vunpack.c.l.b16 %v3211
      %v3303 = vunpack.c.h.b16 %v3285
      %v3304 = vunpack.c.h.b16 %v3211
      %v3305 = vunpack.c.l.b16 %v3286
      %v3306 = vunpack.c.l.b16 %v3213
      %v3307 = vunpack.c.h.b16 %v3286
      %v3308 = vunpack.c.h.b16 %v3213
      %v3309 = vunpack.c.l.b16 %v3287
      %v3310 = vunpack.c.l.b16 %v3215
      %v3311 = vunpack.c.h.b16 %v3287
      %v3312 = vunpack.c.h.b16 %v3215
      %v3313 = vunpack.c.l.b16 %v3288
      %v3314 = vunpack.c.l.b16 %v3217
      %v3315 = vunpack.c.h.b16 %v3288
      %v3316 = vunpack.c.h.b16 %v3217
      %v3317 = vunpack.c.l.b16 %v3289
      %v3318 = vunpack.c.l.b16 %v3219
      %v3319 = vunpack.c.h.b16 %v3289
      %v3320 = vunpack.c.h.b16 %v3219
      %v3321 = vunpack.c.l.b16 %v3290
      %v3322 = vunpack.c.l.b16 %v3221
      %v3323 = vunpack.c.h.b16 %v3290
      %v3324 = vunpack.c.h.b16 %v3221
      %v3325 = vunpack.c.l.b16 %v3291
      %v3326 = vunpack.c.l.b16 %v3223
      %v3327 = vunpack.c.h.b16 %v3291
      %v3328 = vunpack.c.h.b16 %v3223
      %v3329 = vunpack.c.l.b16 %v3292
      %v3330 = vunpack.c.l.b16 %v3227
      %v3331 = vunpack.c.h.b16 %v3292
      %v3332 = vunpack.c.h.b16 %v3227
      %v3333 = vpack.c.b16 %v3302, %v3301
      %v3334 = vpack.c.b16 %v3304, %v3303
      %v3335 = vpack.c.b16 %v3306, %v3305
      %v3336 = vpack.c.b16 %v3308, %v3307
      %v3337 = vpack.c.b16 %v3310, %v3309
      %v3338 = vpack.c.b16 %v3312, %v3311
      %v3339 = vpack.c.b16 %v3314, %v3313
      %v3340 = vpack.c.b16 %v3316, %v3315
      %v3341 = vpack.c.b16 %v3318, %v3317
      %v3342 = vpack.c.b16 %v3320, %v3319
      %v3343 = vpack.c.b16 %v3322, %v3321
      %v3344 = vpack.c.b16 %v3324, %v3323
      %v3345 = vpack.c.b16 %v3326, %v3325
      %v3346 = vpack.c.b16 %v3328, %v3327
      %v3347 = vpack.c.b16 %v3330, %v3329
      %v3348 = vpack.c.b16 %v3332, %v3331
      %vm3349 = vcmask 1041408
      %vm3350 = vcmask 1045508
      %vm3351 = vmor %vm3349, %vm3350
      %v3352 = vrot.slane %v3333, 6
      %v3353 = vrot.slane %v3352, 4
      %v3354 = vrot.slane %v3334, 6
      %v3355 = vsel %vm3351, %v3353, %v3354
      %v3356 = vrot.slane %v3335, 6
      %v3357 = vrot.slane %v3356, 4
      %v3358 = vrot.slane %v3336, 6
      %v3359 = vsel %vm3351, %v3357, %v3358
      %v3360 = vrot.slane %v3337, 6
      %v3361 = vrot.slane %v3360, 4
      %v3362 = vrot.slane %v3338, 6
      %v3363 = vsel %vm3351, %v3361, %v3362
      %v3364 = vrot.slane %v3339, 6
      %v3365 = vrot.slane %v3364, 4
      %v3366 = vrot.slane %v3340, 6
      %v3367 = vsel %vm3351, %v3365, %v3366
      %v3368 = vrot.slane %v3341, 6
      %v3369 = vrot.slane %v3368, 4
      %v3370 = vrot.slane %v3342, 6
      %v3371 = vsel %vm3351, %v3369, %v3370
      %v3372 = vrot.slane %v3343, 6
      %v3373 = vrot.slane %v3372, 4
      %v3374 = vrot.slane %v3344, 6
      %v3375 = vsel %vm3351, %v3373, %v3374
      %v3376 = vrot.slane %v3345, 6
      %v3377 = vrot.slane %v3376, 4
      %v3378 = vrot.slane %v3346, 6
      %v3379 = vsel %vm3351, %v3377, %v3378
      %v3380 = vrot.slane %v3347, 6
      %v3381 = vrot.slane %v3380, 4
      %v3382 = vrot.slane %v3348, 6
      %v3383 = vsel %vm3351, %v3381, %v3382
      %v3384 = vld [vmem:[%s3] sm:$0xf]
      %v3385 = vld [vmem:[%s3 + $0x4] sm:$0xf]
      %v3386 = vld [vmem:[%s3 + $0x8] sm:$0xf]
      %v3387 = vld [vmem:[%s3 + $0xc] sm:$0xf]
      %v3388 = vld [vmem:[%s3 + $0x10] sm:$0xf]
      %v3389 = vld [vmem:[%s3 + $0x14] sm:$0xf]
      %v3390 = vld [vmem:[%s3 + $0x18] sm:$0xf]
      %v3391 = vld [vmem:[%s3 + $0x1c] sm:$0xf]
      %v3392 = vld [vmem:[%s3 + $0x20] sm:$0xf]
      %v3393 = vld [vmem:[%s3 + $0x24] sm:$0xf]
      %v3394 = vld [vmem:[%s3 + $0x28] sm:$0xf]
      %v3395 = vld [vmem:[%s3 + $0x2c] sm:$0xf]
      %v3396 = vld [vmem:[%s3 + $0x30] sm:$0xf]
      %v3397 = vld [vmem:[%s3 + $0x34] sm:$0xf]
      %v3398 = vld [vmem:[%s3 + $0x38] sm:$0xf]
      %v3399 = vld [vmem:[%s3 + $0x3c] sm:$0xf]
      %v3400 = vld [vmem:[%s3 + $0x40] sm:$0xf]
      %v3401 = vld [vmem:[%s3 + $0x44] sm:$0xf]
      %v3402 = vld [vmem:[%s4] sm:$0x1]
      %v3404 = vlaneseq
      %v3405 = vshrl.u32 %v3404, 7
      %v3406 = vsub.s32 0, %v3405
      %v3407 = vrot.slane %v3402, %v3406
      %v3409 = vunpack.c.l.b16 %v3355
      %v3410 = vunpack.c.h.b16 %v3355
      %v3411 = vunpack.c.l.b16 %v3359
      %v3412 = vunpack.c.h.b16 %v3359
      %v3413 = vunpack.c.l.b16 %v3363
      %v3414 = vunpack.c.h.b16 %v3363
      %v3415 = vunpack.c.l.b16 %v3367
      %v3416 = vunpack.c.h.b16 %v3367
      %v3417 = vunpack.c.l.b16 %v3371
      %v3418 = vunpack.c.h.b16 %v3371
      %v3419 = vunpack.c.l.b16 %v3375
      %v3420 = vunpack.c.h.b16 %v3375
      %v3421 = vunpack.c.l.b16 %v3379
      %v3422 = vunpack.c.h.b16 %v3379
      %v3423 = vunpack.c.l.b16 %v3383
      %v3424 = vunpack.c.h.b16 %v3383
      %v3425 = vpack.c.b16 %v3411, %v3409
      %v3426 = vpack.c.b16 %v3412, %v3410
      %v3427 = vpack.c.b16 %v3415, %v3413
      %v3428 = vpack.c.b16 %v3416, %v3414
      %v3429 = vpack.c.b16 %v3419, %v3417
      %v3430 = vpack.c.b16 %v3420, %v3418
      %v3431 = vpack.c.b16 %v3423, %v3421
      %v3432 = vpack.c.b16 %v3424, %v3422
      %v3455 = vunpack.c.l.b16 %v3384
      %v3456 = vunpack.c.l.b16 %v3385
      %v3457 = vunpack.c.l.b16 %v3386
      %v3458 = vunpack.c.l.b16 %v3387
      %v3459 = vunpack.c.l.b16 %v3388
      %v3460 = vunpack.c.l.b16 %v3389
      %v3461 = vunpack.c.l.b16 %v3390
      %v3462 = vunpack.c.l.b16 %v3391
      %v3463 = vunpack.c.l.b16 %v3392
      %v3464 = vunpack.c.l.b16 %v3393
      %v3465 = vunpack.c.l.b16 %v3394
      %v3466 = vunpack.c.l.b16 %v3395
      %v3467 = vunpack.c.l.b16 %v3396
      %v3468 = vunpack.c.l.b16 %v3397
      %v3469 = vunpack.c.l.b16 %v3398
      %v3470 = vunpack.c.l.b16 %v3399
      %v3471 = vunpack.c.l.b16 %v3400
      %v3472 = vunpack.c.l.b16 %v3401
      %v3473 = vpack.c.b16 %v3456, %v3455
      %v3474 = vpack.c.b16 %v3458, %v3457
      %v3475 = vpack.c.b16 %v3460, %v3459
      %v3476 = vpack.c.b16 %v3462, %v3461
      %v3477 = vpack.c.b16 %v3464, %v3463
      %v3478 = vpack.c.b16 %v3466, %v3465
      %v3479 = vpack.c.b16 %v3468, %v3467
      %v3480 = vpack.c.b16 %v3470, %v3469
      %v3481 = vpack.c.b16 %v3472, %v3471
      %v3492 = vsel %vm1013, %v3426, 0
      %v3495 = vsel %vm1013, %v3428, 0
      %v3498 = vsel %vm1013, %v3430, 0
      %v3501 = vsel %vm1013, %v3432, 0
      %3503 = vmatprep.subr.bf16.mxu0 0
      %3504 = vmatpush1.bf16.msra.mxu0 %v3480
      %3505 = vmatprep.subr.bf16.mxu0 0
      %3506 = vmatpush1.bf16.msra.mxu0 %v3479
      %3507 = vmatprep.subr.bf16.mxu0 0
      %3508 = vmatpush1.bf16.msra.mxu0 %v3478
      %3509 = vmatprep.subr.bf16.mxu0 0
      %3510 = vmatpush1.bf16.msra.mxu0 %v3477
      %3511 = vmatprep.subr.bf16.mxu0 0
      %3512 = vmatpush1.bf16.msra.mxu0 %v3476
      %3513 = vmatprep.subr.bf16.mxu0 0
      %3514 = vmatpush1.bf16.msra.mxu0 %v3475
      %3515 = vmatprep.subr.bf16.mxu0 0
      %3516 = vmatpush1.bf16.msra.mxu0 %v3474
      %3517 = vmatprep.subr.bf16.mxu0 0
      %3518 = vmatpush1.bf16.msra.mxu0 %v3473
      %3519 = vmatprep.subr.bf16.mxu0 0
      %3520 = vmatpush2.bf16.msra.mxu0 0
      %3521 = vmatprep.subr.bf16.mxu0 0
      %3522 = vmatpush2.bf16.msra.mxu0 0
      %3523 = vmatprep.subr.bf16.mxu0 0
      %3524 = vmatpush2.bf16.msra.mxu0 0
      %3525 = vmatprep.subr.bf16.mxu0 0
      %3526 = vmatpush2.bf16.msra.mxu0 0
      %3527 = vmatprep.subr.bf16.mxu0 0
      %3528 = vmatpush2.bf16.msra.mxu0 0
      %3529 = vmatprep.subr.bf16.mxu0 0
      %3530 = vmatpush2.bf16.msra.mxu0 0
      %3531 = vmatprep.subr.bf16.mxu0 0
      %3532 = vmatpush2.bf16.msra.mxu0 0
      %3533 = vmatprep.subr.bf16.mxu0 0
      %3534 = vmatpush2.bf16.msra.mxu0 %v3481
      %3535 = vmatprep.mubr.bf16.mxu0 %v3492
      %3536 = vmatmul.mubr.bf16.gmra.mxu0 %v3425
      %v3537 = vpop.f32.mrf.mxu0
      %v3538 = vadd.f32 %v3407, %v3537
      %v3539 = vpop.f32.mrf.mxu0
      %v3540 = vpop.f32.mrf.mxu0
      %v3541 = vadd.f32 %v3407, %v3540
      %v3542 = vpop.f32.mrf.mxu0
      %3543 = vmatprep.mubr.bf16.mxu0 %v3495
      %3544 = vmatmul.mubr.bf16.gmra.mxu0 %v3427
      %v3545 = vpop.f32.mrf.mxu0
      %v3546 = vadd.f32 %v3407, %v3545
      %v3547 = vpop.f32.mrf.mxu0
      %v3548 = vpop.f32.mrf.mxu0
      %v3549 = vadd.f32 %v3407, %v3548
      %v3550 = vpop.f32.mrf.mxu0
      %3551 = vmatprep.mubr.bf16.mxu0 %v3498
      %3552 = vmatmul.mubr.bf16.gmra.mxu0 %v3429
      %v3553 = vpop.f32.mrf.mxu0
      %v3554 = vadd.f32 %v3407, %v3553
      %v3555 = vpop.f32.mrf.mxu0
      %v3556 = vpop.f32.mrf.mxu0
      %v3557 = vadd.f32 %v3407, %v3556
      %v3558 = vpop.f32.mrf.mxu0
      %3559 = vmatprep.mubr.bf16.mxu0 %v3501
      %3560 = vmatmul.mubr.bf16.gmra.mxu0 %v3431
      %v3561 = vpop.f32.mrf.mxu0
      %v3562 = vadd.f32 %v3407, %v3561
      %v3563 = vpop.f32.mrf.mxu0
      %v3564 = vpop.f32.mrf.mxu0
      %v3565 = vadd.f32 %v3407, %v3564
      %v3566 = vpop.f32.mrf.mxu0
      %3567 = vdwg.mxu0
      %s3568 = scalar_lea.vmem %s260, 64
      %3569 = vst.msk [vmem:[%s3568] sm:$0xff] %vm3183, %v3538
      %3570 = vst.msk [vmem:[%s3568 + $0x8] sm:$0xff] %vm3183, %v3541
      %3571 = vst.msk [vmem:[%s3568 + $0x10] sm:$0xff] %vm3183, %v3546
      %3572 = vst.msk [vmem:[%s3568 + $0x18] sm:$0xff] %vm3183, %v3549
      %3573 = vst.msk [vmem:[%s3568 + $0x20] sm:$0xff] %vm3183, %v3554
      %3574 = vst.msk [vmem:[%s3568 + $0x28] sm:$0xff] %vm3183, %v3557
      %3575 = vst.msk [vmem:[%s3568 + $0x30] sm:$0xff] %vm3183, %v3562
      %3576 = vst.msk [vmem:[%s3568 + $0x38] sm:$0xff] %vm3183, %v3565
      %3577 = vrot.lane.b32.xlu0 %v2557, 112
      %v3578 = vpop.permute.xlu0 %3577
      %3579 = vrot.lane.b32.xlu0 %v2558, 112
      %v3580 = vpop.permute.xlu0 %3579
      %3581 = vrot.lane.b32.xlu0 %v2559, 112
      %v3582 = vpop.permute.xlu0 %3581
      %3583 = vrot.lane.b32.xlu0 %v2560, 112
      %v3584 = vpop.permute.xlu0 %3583
      %3585 = vrot.lane.b32.xlu0 %v2561, 112
      %v3586 = vpop.permute.xlu0 %3585
      %3587 = vrot.lane.b32.xlu0 %v2562, 112
      %v3588 = vpop.permute.xlu0 %3587
      %3589 = vrot.lane.b32.xlu0 %v2563, 112
      %v3590 = vpop.permute.xlu0 %3589
      %3591 = vrot.lane.b32.xlu0 %v2564, 112
      %v3592 = vpop.permute.xlu0 %3591
      %3593 = vrot.lane.b32.xlu0 %v2603, 16
      %v3594 = vpop.permute.xlu0 %3593
      %3595 = vrot.lane.b32.xlu0 %v2610, 16
      %v3596 = vpop.permute.xlu0 %3595
      %3597 = vrot.lane.b32.xlu0 %v2617, 16
      %v3598 = vpop.permute.xlu0 %3597
      %3599 = vrot.lane.b32.xlu0 %v2624, 16
      %v3600 = vpop.permute.xlu0 %3599
      %3601 = vrot.lane.b32.xlu0 %v2631, 16
      %v3602 = vpop.permute.xlu0 %3601
      %3603 = vrot.lane.b32.xlu0 %v2638, 16
      %v3604 = vpop.permute.xlu0 %3603
      %3605 = vrot.lane.b32.xlu0 %v2645, 16
      %v3606 = vpop.permute.xlu0 %3605
      %3607 = vrot.lane.b32.xlu0 %v2685, 16
      %v3608 = vpop.permute.xlu0 %3607
      %3609 = vrot.lane.b32.xlu0 %v2603, 32
      %v3610 = vpop.permute.xlu0 %3609
      %3611 = vrot.lane.b32.xlu0 %v2610, 32
      %v3612 = vpop.permute.xlu0 %3611
      %3613 = vrot.lane.b32.xlu0 %v2617, 32
      %v3614 = vpop.permute.xlu0 %3613
      %3615 = vrot.lane.b32.xlu0 %v2624, 32
      %v3616 = vpop.permute.xlu0 %3615
      %3617 = vrot.lane.b32.xlu0 %v2631, 32
      %v3618 = vpop.permute.xlu0 %3617
      %3619 = vrot.lane.b32.xlu0 %v2638, 32
      %v3620 = vpop.permute.xlu0 %3619
      %3621 = vrot.lane.b32.xlu0 %v2645, 32
      %v3622 = vpop.permute.xlu0 %3621
      %3623 = vrot.lane.b32.xlu0 %v2685, 32
      %v3624 = vpop.permute.xlu0 %3623
      %3625 = vrot.lane.b32.xlu0 %v2557, 16
      %v3626 = vpop.permute.xlu0 %3625
      %3627 = vrot.lane.b32.xlu0 %v2558, 16
      %v3628 = vpop.permute.xlu0 %3627
      %3629 = vrot.lane.b32.xlu0 %v2559, 16
      %v3630 = vpop.permute.xlu0 %3629
      %3631 = vrot.lane.b32.xlu0 %v2560, 16
      %v3632 = vpop.permute.xlu0 %3631
      %3633 = vrot.lane.b32.xlu0 %v2561, 16
      %v3634 = vpop.permute.xlu0 %3633
      %3635 = vrot.lane.b32.xlu0 %v2562, 16
      %v3636 = vpop.permute.xlu0 %3635
      %3637 = vrot.lane.b32.xlu0 %v2563, 16
      %v3638 = vpop.permute.xlu0 %3637
      %3639 = vrot.lane.b32.xlu0 %v2564, 16
      %v3640 = vpop.permute.xlu0 %3639
      %3641 = vrot.lane.b32.xlu0 %v2603, 48
      %v3642 = vpop.permute.xlu0 %3641
      %3643 = vrot.lane.b32.xlu0 %v2610, 48
      %v3644 = vpop.permute.xlu0 %3643
      %3645 = vrot.lane.b32.xlu0 %v2617, 48
      %v3646 = vpop.permute.xlu0 %3645
      %3647 = vrot.lane.b32.xlu0 %v2624, 48
      %v3648 = vpop.permute.xlu0 %3647
      %3649 = vrot.lane.b32.xlu0 %v2631, 48
      %v3650 = vpop.permute.xlu0 %3649
      %3651 = vrot.lane.b32.xlu0 %v2638, 48
      %v3652 = vpop.permute.xlu0 %3651
      %3653 = vrot.lane.b32.xlu0 %v2645, 48
      %v3654 = vpop.permute.xlu0 %3653
      %3655 = vrot.lane.b32.xlu0 %v2685, 48
      %v3656 = vpop.permute.xlu0 %3655
      %v3659 = vsel %vm1013, %v3578, %v3594
      %v3662 = vsel %vm1013, %v3580, %v3596
      %v3665 = vsel %vm1013, %v3582, %v3598
      %v3668 = vsel %vm1013, %v3584, %v3600
      %v3671 = vsel %vm1013, %v3586, %v3602
      %v3674 = vsel %vm1013, %v3588, %v3604
      %v3677 = vsel %vm1013, %v3590, %v3606
      %v3680 = vsel %vm1013, %v3592, %v3608
      %v3681 = vsel %vm1034, %v3659, %v3594
      %v3682 = vsel %vm1034, %v3662, %v3596
      %v3683 = vsel %vm1034, %v3665, %v3598
      %v3684 = vsel %vm1034, %v3668, %v3600
      %v3685 = vsel %vm1034, %v3671, %v3602
      %v3686 = vsel %vm1034, %v3674, %v3604
      %v3687 = vsel %vm1034, %v3677, %v3606
      %v3688 = vsel %vm1034, %v3680, %v3608
      %v3689 = vsel %vm1055, %v3681, %v2557
      %v3690 = vsel %vm1055, %v3682, %v2558
      %v3691 = vsel %vm1055, %v3683, %v2559
      %v3692 = vsel %vm1055, %v3684, %v2560
      %v3693 = vsel %vm1055, %v3685, %v2561
      %v3694 = vsel %vm1055, %v3686, %v2562
      %v3695 = vsel %vm1055, %v3687, %v2563
      %v3696 = vsel %vm1055, %v3688, %v2564
      %v3698 = vsel %vm1076, %v3689, %v3610
      %v3700 = vsel %vm1076, %v3690, %v3612
      %v3702 = vsel %vm1076, %v3691, %v3614
      %v3704 = vsel %vm1076, %v3692, %v3616
      %v3706 = vsel %vm1076, %v3693, %v3618
      %v3708 = vsel %vm1076, %v3694, %v3620
      %v3710 = vsel %vm1076, %v3695, %v3622
      %v3712 = vsel %vm1076, %v3696, %v3624
      %v3713 = vsel %vm1097, %v3698, %v3610
      %v3714 = vsel %vm1097, %v3700, %v3612
      %v3715 = vsel %vm1097, %v3702, %v3614
      %v3716 = vsel %vm1097, %v3704, %v3616
      %v3717 = vsel %vm1097, %v3706, %v3618
      %v3718 = vsel %vm1097, %v3708, %v3620
      %v3719 = vsel %vm1097, %v3710, %v3622
      %v3720 = vsel %vm1097, %v3712, %v3624
      %v3722 = vsel %vm1118, %v3713, %v3626
      %v3724 = vsel %vm1118, %v3714, %v3628
      %v3726 = vsel %vm1118, %v3715, %v3630
      %v3728 = vsel %vm1118, %v3716, %v3632
      %v3730 = vsel %vm1118, %v3717, %v3634
      %v3732 = vsel %vm1118, %v3718, %v3636
      %v3734 = vsel %vm1118, %v3719, %v3638
      %v3736 = vsel %vm1118, %v3720, %v3640
      %v3738 = vsel %vm1139, %v3722, %v3642
      %v3740 = vsel %vm1139, %v3724, %v3644
      %v3742 = vsel %vm1139, %v3726, %v3646
      %v3744 = vsel %vm1139, %v3728, %v3648
      %v3746 = vsel %vm1139, %v3730, %v3650
      %v3748 = vsel %vm1139, %v3732, %v3652
      %v3750 = vsel %vm1139, %v3734, %v3654
      %v3752 = vsel %vm1139, %v3736, %v3656
      %v3761 = vunpack.c.l.b16 %v3738
      %v3762 = vunpack.c.l.b16 %v3642
      %v3763 = vunpack.c.h.b16 %v3738
      %v3764 = vunpack.c.h.b16 %v3642
      %v3765 = vunpack.c.l.b16 %v3740
      %v3766 = vunpack.c.l.b16 %v3644
      %v3767 = vunpack.c.h.b16 %v3740
      %v3768 = vunpack.c.h.b16 %v3644
      %v3769 = vunpack.c.l.b16 %v3742
      %v3770 = vunpack.c.l.b16 %v3646
      %v3771 = vunpack.c.h.b16 %v3742
      %v3772 = vunpack.c.h.b16 %v3646
      %v3773 = vunpack.c.l.b16 %v3744
      %v3774 = vunpack.c.l.b16 %v3648
      %v3775 = vunpack.c.h.b16 %v3744
      %v3776 = vunpack.c.h.b16 %v3648
      %v3777 = vunpack.c.l.b16 %v3746
      %v3778 = vunpack.c.l.b16 %v3650
      %v3779 = vunpack.c.h.b16 %v3746
      %v3780 = vunpack.c.h.b16 %v3650
      %v3781 = vunpack.c.l.b16 %v3748
      %v3782 = vunpack.c.l.b16 %v3652
      %v3783 = vunpack.c.h.b16 %v3748
      %v3784 = vunpack.c.h.b16 %v3652
      %v3785 = vunpack.c.l.b16 %v3750
      %v3786 = vunpack.c.l.b16 %v3654
      %v3787 = vunpack.c.h.b16 %v3750
      %v3788 = vunpack.c.h.b16 %v3654
      %v3789 = vunpack.c.l.b16 %v3752
      %v3790 = vunpack.c.l.b16 %v3656
      %v3791 = vunpack.c.h.b16 %v3752
      %v3792 = vunpack.c.h.b16 %v3656
      %v3793 = vpack.c.b16 %v3762, %v3761
      %v3794 = vpack.c.b16 %v3764, %v3763
      %v3795 = vpack.c.b16 %v3766, %v3765
      %v3796 = vpack.c.b16 %v3768, %v3767
      %v3797 = vpack.c.b16 %v3770, %v3769
      %v3798 = vpack.c.b16 %v3772, %v3771
      %v3799 = vpack.c.b16 %v3774, %v3773
      %v3800 = vpack.c.b16 %v3776, %v3775
      %v3801 = vpack.c.b16 %v3778, %v3777
      %v3802 = vpack.c.b16 %v3780, %v3779
      %v3803 = vpack.c.b16 %v3782, %v3781
      %v3804 = vpack.c.b16 %v3784, %v3783
      %v3805 = vpack.c.b16 %v3786, %v3785
      %v3806 = vpack.c.b16 %v3788, %v3787
      %v3807 = vpack.c.b16 %v3790, %v3789
      %v3808 = vpack.c.b16 %v3792, %v3791
      %v3810 = vshrl.u32 %v3793, 16
      %v3812 = vrot.slane %v3810, 5
      %v3813 = vshll.u32 %v3793, 16
      %v3815 = vrot.slane %v3813, 6
      %v3816 = vor.u32 %v3812, %v3815
      %v3817 = vrot.slane %v3816, 4
      %v3819 = vshrl.u32 %v3794, 16
      %v3821 = vrot.slane %v3819, 5
      %v3822 = vshll.u32 %v3794, 16
      %v3824 = vrot.slane %v3822, 6
      %v3825 = vor.u32 %v3821, %v3824
      %v3826 = vsel %vm2854, %v3817, %v3825
      %v3828 = vshrl.u32 %v3795, 16
      %v3830 = vrot.slane %v3828, 5
      %v3831 = vshll.u32 %v3795, 16
      %v3833 = vrot.slane %v3831, 6
      %v3834 = vor.u32 %v3830, %v3833
      %v3835 = vrot.slane %v3834, 4
      %v3837 = vshrl.u32 %v3796, 16
      %v3839 = vrot.slane %v3837, 5
      %v3840 = vshll.u32 %v3796, 16
      %v3842 = vrot.slane %v3840, 6
      %v3843 = vor.u32 %v3839, %v3842
      %v3844 = vsel %vm2854, %v3835, %v3843
      %v3846 = vshrl.u32 %v3797, 16
      %v3848 = vrot.slane %v3846, 5
      %v3849 = vshll.u32 %v3797, 16
      %v3851 = vrot.slane %v3849, 6
      %v3852 = vor.u32 %v3848, %v3851
      %v3853 = vrot.slane %v3852, 4
      %v3855 = vshrl.u32 %v3798, 16
      %v3857 = vrot.slane %v3855, 5
      %v3858 = vshll.u32 %v3798, 16
      %v3860 = vrot.slane %v3858, 6
      %v3861 = vor.u32 %v3857, %v3860
      %v3862 = vsel %vm2854, %v3853, %v3861
      %v3864 = vshrl.u32 %v3799, 16
      %v3866 = vrot.slane %v3864, 5
      %v3867 = vshll.u32 %v3799, 16
      %v3869 = vrot.slane %v3867, 6
      %v3870 = vor.u32 %v3866, %v3869
      %v3871 = vrot.slane %v3870, 4
      %v3873 = vshrl.u32 %v3800, 16
      %v3875 = vrot.slane %v3873, 5
      %v3876 = vshll.u32 %v3800, 16
      %v3878 = vrot.slane %v3876, 6
      %v3879 = vor.u32 %v3875, %v3878
      %v3880 = vsel %vm2854, %v3871, %v3879
      %v3882 = vshrl.u32 %v3801, 16
      %v3884 = vrot.slane %v3882, 5
      %v3885 = vshll.u32 %v3801, 16
      %v3887 = vrot.slane %v3885, 6
      %v3888 = vor.u32 %v3884, %v3887
      %v3889 = vrot.slane %v3888, 4
      %v3891 = vshrl.u32 %v3802, 16
      %v3893 = vrot.slane %v3891, 5
      %v3894 = vshll.u32 %v3802, 16
      %v3896 = vrot.slane %v3894, 6
      %v3897 = vor.u32 %v3893, %v3896
      %v3898 = vsel %vm2854, %v3889, %v3897
      %v3900 = vshrl.u32 %v3803, 16
      %v3902 = vrot.slane %v3900, 5
      %v3903 = vshll.u32 %v3803, 16
      %v3905 = vrot.slane %v3903, 6
      %v3906 = vor.u32 %v3902, %v3905
      %v3907 = vrot.slane %v3906, 4
      %v3909 = vshrl.u32 %v3804, 16
      %v3911 = vrot.slane %v3909, 5
      %v3912 = vshll.u32 %v3804, 16
      %v3914 = vrot.slane %v3912, 6
      %v3915 = vor.u32 %v3911, %v3914
      %v3916 = vsel %vm2854, %v3907, %v3915
      %v3918 = vshrl.u32 %v3805, 16
      %v3920 = vrot.slane %v3918, 5
      %v3921 = vshll.u32 %v3805, 16
      %v3923 = vrot.slane %v3921, 6
      %v3924 = vor.u32 %v3920, %v3923
      %v3925 = vrot.slane %v3924, 4
      %v3927 = vshrl.u32 %v3806, 16
      %v3929 = vrot.slane %v3927, 5
      %v3930 = vshll.u32 %v3806, 16
      %v3932 = vrot.slane %v3930, 6
      %v3933 = vor.u32 %v3929, %v3932
      %v3934 = vsel %vm2854, %v3925, %v3933
      %v3936 = vshrl.u32 %v3807, 16
      %v3938 = vrot.slane %v3936, 5
      %v3939 = vshll.u32 %v3807, 16
      %v3941 = vrot.slane %v3939, 6
      %v3942 = vor.u32 %v3938, %v3941
      %v3943 = vrot.slane %v3942, 4
      %v3945 = vshrl.u32 %v3808, 16
      %v3947 = vrot.slane %v3945, 5
      %v3948 = vshll.u32 %v3808, 16
      %v3950 = vrot.slane %v3948, 6
      %v3951 = vor.u32 %v3947, %v3950
      %v3952 = vsel %vm2854, %v3943, %v3951
      %v3953 = vld [vmem:[%s3] sm:$0xf]
      %v3954 = vld [vmem:[%s3 + $0x4] sm:$0xf]
      %v3955 = vld [vmem:[%s3 + $0x8] sm:$0xf]
      %v3956 = vld [vmem:[%s3 + $0xc] sm:$0xf]
      %v3957 = vld [vmem:[%s3 + $0x10] sm:$0xf]
      %v3958 = vld [vmem:[%s3 + $0x14] sm:$0xf]
      %v3959 = vld [vmem:[%s3 + $0x18] sm:$0xf]
      %v3960 = vld [vmem:[%s3 + $0x1c] sm:$0xf]
      %v3961 = vld [vmem:[%s3 + $0x20] sm:$0xf]
      %v3962 = vld [vmem:[%s3 + $0x24] sm:$0xf]
      %v3963 = vld [vmem:[%s3 + $0x28] sm:$0xf]
      %v3964 = vld [vmem:[%s3 + $0x2c] sm:$0xf]
      %v3965 = vld [vmem:[%s3 + $0x30] sm:$0xf]
      %v3966 = vld [vmem:[%s3 + $0x34] sm:$0xf]
      %v3967 = vld [vmem:[%s3 + $0x38] sm:$0xf]
      %v3968 = vld [vmem:[%s3 + $0x3c] sm:$0xf]
      %v3969 = vld [vmem:[%s3 + $0x40] sm:$0xf]
      %v3970 = vld [vmem:[%s3 + $0x44] sm:$0xf]
      %v3971 = vld [vmem:[%s4] sm:$0x1]
      %v3973 = vlaneseq
      %v3974 = vshrl.u32 %v3973, 7
      %v3975 = vsub.s32 0, %v3974
      %v3976 = vrot.slane %v3971, %v3975
      %v3978 = vunpack.c.l.b16 %v3826
      %v3979 = vunpack.c.h.b16 %v3826
      %v3980 = vunpack.c.l.b16 %v3844
      %v3981 = vunpack.c.h.b16 %v3844
      %v3982 = vunpack.c.l.b16 %v3862
      %v3983 = vunpack.c.h.b16 %v3862
      %v3984 = vunpack.c.l.b16 %v3880
      %v3985 = vunpack.c.h.b16 %v3880
      %v3986 = vunpack.c.l.b16 %v3898
      %v3987 = vunpack.c.h.b16 %v3898
      %v3988 = vunpack.c.l.b16 %v3916
      %v3989 = vunpack.c.h.b16 %v3916
      %v3990 = vunpack.c.l.b16 %v3934
      %v3991 = vunpack.c.h.b16 %v3934
      %v3992 = vunpack.c.l.b16 %v3952
      %v3993 = vunpack.c.h.b16 %v3952
      %v3994 = vpack.c.b16 %v3980, %v3978
      %v3995 = vpack.c.b16 %v3981, %v3979
      %v3996 = vpack.c.b16 %v3984, %v3982
      %v3997 = vpack.c.b16 %v3985, %v3983
      %v3998 = vpack.c.b16 %v3988, %v3986
      %v3999 = vpack.c.b16 %v3989, %v3987
      %v4000 = vpack.c.b16 %v3992, %v3990
      %v4001 = vpack.c.b16 %v3993, %v3991
      %v4024 = vunpack.c.l.b16 %v3953
      %v4025 = vunpack.c.l.b16 %v3954
      %v4026 = vunpack.c.l.b16 %v3955
      %v4027 = vunpack.c.l.b16 %v3956
      %v4028 = vunpack.c.l.b16 %v3957
      %v4029 = vunpack.c.l.b16 %v3958
      %v4030 = vunpack.c.l.b16 %v3959
      %v4031 = vunpack.c.l.b16 %v3960
      %v4032 = vunpack.c.l.b16 %v3961
      %v4033 = vunpack.c.l.b16 %v3962
      %v4034 = vunpack.c.l.b16 %v3963
      %v4035 = vunpack.c.l.b16 %v3964
      %v4036 = vunpack.c.l.b16 %v3965
      %v4037 = vunpack.c.l.b16 %v3966
      %v4038 = vunpack.c.l.b16 %v3967
      %v4039 = vunpack.c.l.b16 %v3968
      %v4040 = vunpack.c.l.b16 %v3969
      %v4041 = vunpack.c.l.b16 %v3970
      %v4042 = vpack.c.b16 %v4025, %v4024
      %v4043 = vpack.c.b16 %v4027, %v4026
      %v4044 = vpack.c.b16 %v4029, %v4028
      %v4045 = vpack.c.b16 %v4031, %v4030
      %v4046 = vpack.c.b16 %v4033, %v4032
      %v4047 = vpack.c.b16 %v4035, %v4034
      %v4048 = vpack.c.b16 %v4037, %v4036
      %v4049 = vpack.c.b16 %v4039, %v4038
      %v4050 = vpack.c.b16 %v4041, %v4040
      %v4061 = vsel %vm1013, %v3995, 0
      %v4064 = vsel %vm1013, %v3997, 0
      %v4067 = vsel %vm1013, %v3999, 0
      %v4070 = vsel %vm1013, %v4001, 0
      %4072 = vmatprep.subr.bf16.mxu0 0
      %4073 = vmatpush1.bf16.msra.mxu0 %v4049
      %4074 = vmatprep.subr.bf16.mxu0 0
      %4075 = vmatpush1.bf16.msra.mxu0 %v4048
      %4076 = vmatprep.subr.bf16.mxu0 0
      %4077 = vmatpush1.bf16.msra.mxu0 %v4047
      %4078 = vmatprep.subr.bf16.mxu0 0
      %4079 = vmatpush1.bf16.msra.mxu0 %v4046
      %4080 = vmatprep.subr.bf16.mxu0 0
      %4081 = vmatpush1.bf16.msra.mxu0 %v4045
      %4082 = vmatprep.subr.bf16.mxu0 0
      %4083 = vmatpush1.bf16.msra.mxu0 %v4044
      %4084 = vmatprep.subr.bf16.mxu0 0
      %4085 = vmatpush1.bf16.msra.mxu0 %v4043
      %4086 = vmatprep.subr.bf16.mxu0 0
      %4087 = vmatpush1.bf16.msra.mxu0 %v4042
      %4088 = vmatprep.subr.bf16.mxu0 0
      %4089 = vmatpush2.bf16.msra.mxu0 0
      %4090 = vmatprep.subr.bf16.mxu0 0
      %4091 = vmatpush2.bf16.msra.mxu0 0
      %4092 = vmatprep.subr.bf16.mxu0 0
      %4093 = vmatpush2.bf16.msra.mxu0 0
      %4094 = vmatprep.subr.bf16.mxu0 0
      %4095 = vmatpush2.bf16.msra.mxu0 0
      %4096 = vmatprep.subr.bf16.mxu0 0
      %4097 = vmatpush2.bf16.msra.mxu0 0
      %4098 = vmatprep.subr.bf16.mxu0 0
      %4099 = vmatpush2.bf16.msra.mxu0 0
      %4100 = vmatprep.subr.bf16.mxu0 0
      %4101 = vmatpush2.bf16.msra.mxu0 0
      %4102 = vmatprep.subr.bf16.mxu0 0
      %4103 = vmatpush2.bf16.msra.mxu0 %v4050
      %4104 = vmatprep.mubr.bf16.mxu0 %v4061
      %4105 = vmatmul.mubr.bf16.gmra.mxu0 %v3994
      %v4106 = vpop.f32.mrf.mxu0
      %v4107 = vadd.f32 %v3976, %v4106
      %v4108 = vpop.f32.mrf.mxu0
      %v4109 = vpop.f32.mrf.mxu0
      %v4110 = vadd.f32 %v3976, %v4109
      %v4111 = vpop.f32.mrf.mxu0
      %4112 = vmatprep.mubr.bf16.mxu0 %v4064
      %4113 = vmatmul.mubr.bf16.gmra.mxu0 %v3996
      %v4114 = vpop.f32.mrf.mxu0
      %v4115 = vadd.f32 %v3976, %v4114
      %v4116 = vpop.f32.mrf.mxu0
      %v4117 = vpop.f32.mrf.mxu0
      %v4118 = vadd.f32 %v3976, %v4117
      %v4119 = vpop.f32.mrf.mxu0
      %4120 = vmatprep.mubr.bf16.mxu0 %v4067
      %4121 = vmatmul.mubr.bf16.gmra.mxu0 %v3998
      %v4122 = vpop.f32.mrf.mxu0
      %v4123 = vadd.f32 %v3976, %v4122
      %v4124 = vpop.f32.mrf.mxu0
      %v4125 = vpop.f32.mrf.mxu0
      %v4126 = vadd.f32 %v3976, %v4125
      %v4127 = vpop.f32.mrf.mxu0
      %4128 = vmatprep.mubr.bf16.mxu0 %v4070
      %4129 = vmatmul.mubr.bf16.gmra.mxu0 %v4000
      %v4130 = vpop.f32.mrf.mxu0
      %v4131 = vadd.f32 %v3976, %v4130
      %v4132 = vpop.f32.mrf.mxu0
      %v4133 = vpop.f32.mrf.mxu0
      %v4134 = vadd.f32 %v3976, %v4133
      %v4135 = vpop.f32.mrf.mxu0
      %4136 = vdwg.mxu0
      %s4137 = scalar_lea.vmem %s260, 128
      %4138 = vst.msk [vmem:[%s4137] sm:$0xff] %vm3183, %v4107
      %4139 = vst.msk [vmem:[%s4137 + $0x8] sm:$0xff] %vm3183, %v4110
      %4140 = vst.msk [vmem:[%s4137 + $0x10] sm:$0xff] %vm3183, %v4115
      %4141 = vst.msk [vmem:[%s4137 + $0x18] sm:$0xff] %vm3183, %v4118
      %4142 = vst.msk [vmem:[%s4137 + $0x20] sm:$0xff] %vm3183, %v4123
      %4143 = vst.msk [vmem:[%s4137 + $0x28] sm:$0xff] %vm3183, %v4126
      %4144 = vst.msk [vmem:[%s4137 + $0x30] sm:$0xff] %vm3183, %v4131
      %4145 = vst.msk [vmem:[%s4137 + $0x38] sm:$0xff] %vm3183, %v4134
      %v4146 = vsel %vm1034, %v2557, %v3610
      %v4147 = vsel %vm1034, %v2558, %v3612
      %v4148 = vsel %vm1034, %v2559, %v3614
      %v4149 = vsel %vm1034, %v2560, %v3616
      %v4150 = vsel %vm1034, %v2561, %v3618
      %v4151 = vsel %vm1034, %v2562, %v3620
      %v4152 = vsel %vm1034, %v2563, %v3622
      %v4153 = vsel %vm1034, %v2564, %v3624
      %v4154 = vsel %vm1055, %v4146, %v3626
      %v4155 = vsel %vm1055, %v4147, %v3628
      %v4156 = vsel %vm1055, %v4148, %v3630
      %v4157 = vsel %vm1055, %v4149, %v3632
      %v4158 = vsel %vm1055, %v4150, %v3634
      %v4159 = vsel %vm1055, %v4151, %v3636
      %v4160 = vsel %vm1055, %v4152, %v3638
      %v4161 = vsel %vm1055, %v4153, %v3640
      %v4162 = vsel %vm1076, %v4154, %v3626
      %v4163 = vsel %vm1076, %v4155, %v3628
      %v4164 = vsel %vm1076, %v4156, %v3630
      %v4165 = vsel %vm1076, %v4157, %v3632
      %v4166 = vsel %vm1076, %v4158, %v3634
      %v4167 = vsel %vm1076, %v4159, %v3636
      %v4168 = vsel %vm1076, %v4160, %v3638
      %v4169 = vsel %vm1076, %v4161, %v3640
      %v4170 = vsel %vm1097, %v4162, %v3642
      %v4171 = vsel %vm1097, %v4163, %v3644
      %v4172 = vsel %vm1097, %v4164, %v3646
      %v4173 = vsel %vm1097, %v4165, %v3648
      %v4174 = vsel %vm1097, %v4166, %v3650
      %v4175 = vsel %vm1097, %v4167, %v3652
      %v4176 = vsel %vm1097, %v4168, %v3654
      %v4177 = vsel %vm1097, %v4169, %v3656
      %v4178 = vsel %vm1118, %v4170, %v2664
      %v4179 = vsel %vm1118, %v4171, %v2666
      %v4180 = vsel %vm1118, %v4172, %v2668
      %v4181 = vsel %vm1118, %v4173, %v2670
      %v4182 = vsel %vm1118, %v4174, %v2672
      %v4183 = vsel %vm1118, %v4175, %v2674
      %v4184 = vsel %vm1118, %v4176, %v2676
      %v4185 = vsel %vm1118, %v4177, %v2678
      %v4186 = vsel %vm1139, %v4178, %v2664
      %v4187 = vsel %vm1139, %v4179, %v2666
      %v4188 = vsel %vm1139, %v4180, %v2668
      %v4189 = vsel %vm1139, %v4181, %v2670
      %v4190 = vsel %vm1139, %v4182, %v2672
      %v4191 = vsel %vm1139, %v4183, %v2674
      %v4192 = vsel %vm1139, %v4184, %v2676
      %v4193 = vsel %vm1139, %v4185, %v2678
      %v4202 = vunpack.c.l.b16 %v4186
      %v4203 = vunpack.c.l.b16 %v2687
      %v4204 = vunpack.c.h.b16 %v4186
      %v4205 = vunpack.c.h.b16 %v2687
      %v4206 = vunpack.c.l.b16 %v4187
      %v4207 = vunpack.c.l.b16 %v2689
      %v4208 = vunpack.c.h.b16 %v4187
      %v4209 = vunpack.c.h.b16 %v2689
      %v4210 = vunpack.c.l.b16 %v4188
      %v4211 = vunpack.c.l.b16 %v2691
      %v4212 = vunpack.c.h.b16 %v4188
      %v4213 = vunpack.c.h.b16 %v2691
      %v4214 = vunpack.c.l.b16 %v4189
      %v4215 = vunpack.c.l.b16 %v2693
      %v4216 = vunpack.c.h.b16 %v4189
      %v4217 = vunpack.c.h.b16 %v2693
      %v4218 = vunpack.c.l.b16 %v4190
      %v4219 = vunpack.c.l.b16 %v2695
      %v4220 = vunpack.c.h.b16 %v4190
      %v4221 = vunpack.c.h.b16 %v2695
      %v4222 = vunpack.c.l.b16 %v4191
      %v4223 = vunpack.c.l.b16 %v2697
      %v4224 = vunpack.c.h.b16 %v4191
      %v4225 = vunpack.c.h.b16 %v2697
      %v4226 = vunpack.c.l.b16 %v4192
      %v4227 = vunpack.c.l.b16 %v2699
      %v4228 = vunpack.c.h.b16 %v4192
      %v4229 = vunpack.c.h.b16 %v2699
      %v4230 = vunpack.c.l.b16 %v4193
      %v4231 = vunpack.c.l.b16 %v2701
      %v4232 = vunpack.c.h.b16 %v4193
      %v4233 = vunpack.c.h.b16 %v2701
      %v4234 = vpack.c.b16 %v4203, %v4202
      %v4235 = vpack.c.b16 %v4205, %v4204
      %v4236 = vpack.c.b16 %v4207, %v4206
      %v4237 = vpack.c.b16 %v4209, %v4208
      %v4238 = vpack.c.b16 %v4211, %v4210
      %v4239 = vpack.c.b16 %v4213, %v4212
      %v4240 = vpack.c.b16 %v4215, %v4214
      %v4241 = vpack.c.b16 %v4217, %v4216
      %v4242 = vpack.c.b16 %v4219, %v4218
      %v4243 = vpack.c.b16 %v4221, %v4220
      %v4244 = vpack.c.b16 %v4223, %v4222
      %v4245 = vpack.c.b16 %v4225, %v4224
      %v4246 = vpack.c.b16 %v4227, %v4226
      %v4247 = vpack.c.b16 %v4229, %v4228
      %v4248 = vpack.c.b16 %v4231, %v4230
      %v4249 = vpack.c.b16 %v4233, %v4232
      %v4250 = vrot.slane %v4234, 6
      %v4251 = vrot.slane %v4250, 4
      %v4252 = vrot.slane %v4235, 6
      %v4253 = vsel %vm3351, %v4251, %v4252
      %v4254 = vrot.slane %v4236, 6
      %v4255 = vrot.slane %v4254, 4
      %v4256 = vrot.slane %v4237, 6
      %v4257 = vsel %vm3351, %v4255, %v4256
      %v4258 = vrot.slane %v4238, 6
      %v4259 = vrot.slane %v4258, 4
      %v4260 = vrot.slane %v4239, 6
      %v4261 = vsel %vm3351, %v4259, %v4260
      %v4262 = vrot.slane %v4240, 6
      %v4263 = vrot.slane %v4262, 4
      %v4264 = vrot.slane %v4241, 6
      %v4265 = vsel %vm3351, %v4263, %v4264
      %v4266 = vrot.slane %v4242, 6
      %v4267 = vrot.slane %v4266, 4
      %v4268 = vrot.slane %v4243, 6
      %v4269 = vsel %vm3351, %v4267, %v4268
      %v4270 = vrot.slane %v4244, 6
      %v4271 = vrot.slane %v4270, 4
      %v4272 = vrot.slane %v4245, 6
      %v4273 = vsel %vm3351, %v4271, %v4272
      %v4274 = vrot.slane %v4246, 6
      %v4275 = vrot.slane %v4274, 4
      %v4276 = vrot.slane %v4247, 6
      %v4277 = vsel %vm3351, %v4275, %v4276
      %v4278 = vrot.slane %v4248, 6
      %v4279 = vrot.slane %v4278, 4
      %v4280 = vrot.slane %v4249, 6
      %v4281 = vsel %vm3351, %v4279, %v4280
      %v4282 = vld [vmem:[%s3] sm:$0xf]
      %v4283 = vld [vmem:[%s3 + $0x4] sm:$0xf]
      %v4284 = vld [vmem:[%s3 + $0x8] sm:$0xf]
      %v4285 = vld [vmem:[%s3 + $0xc] sm:$0xf]
      %v4286 = vld [vmem:[%s3 + $0x10] sm:$0xf]
      %v4287 = vld [vmem:[%s3 + $0x14] sm:$0xf]
      %v4288 = vld [vmem:[%s3 + $0x18] sm:$0xf]
      %v4289 = vld [vmem:[%s3 + $0x1c] sm:$0xf]
      %v4290 = vld [vmem:[%s3 + $0x20] sm:$0xf]
      %v4291 = vld [vmem:[%s3 + $0x24] sm:$0xf]
      %v4292 = vld [vmem:[%s3 + $0x28] sm:$0xf]
      %v4293 = vld [vmem:[%s3 + $0x2c] sm:$0xf]
      %v4294 = vld [vmem:[%s3 + $0x30] sm:$0xf]
      %v4295 = vld [vmem:[%s3 + $0x34] sm:$0xf]
      %v4296 = vld [vmem:[%s3 + $0x38] sm:$0xf]
      %v4297 = vld [vmem:[%s3 + $0x3c] sm:$0xf]
      %v4298 = vld [vmem:[%s3 + $0x40] sm:$0xf]
      %v4299 = vld [vmem:[%s3 + $0x44] sm:$0xf]
      %v4300 = vld [vmem:[%s4] sm:$0x1]
      %v4302 = vlaneseq
      %v4303 = vshrl.u32 %v4302, 7
      %v4304 = vsub.s32 0, %v4303
      %v4305 = vrot.slane %v4300, %v4304
      %v4307 = vunpack.c.l.b16 %v4253
      %v4308 = vunpack.c.h.b16 %v4253
      %v4309 = vunpack.c.l.b16 %v4257
      %v4310 = vunpack.c.h.b16 %v4257
      %v4311 = vunpack.c.l.b16 %v4261
      %v4312 = vunpack.c.h.b16 %v4261
      %v4313 = vunpack.c.l.b16 %v4265
      %v4314 = vunpack.c.h.b16 %v4265
      %v4315 = vunpack.c.l.b16 %v4269
      %v4316 = vunpack.c.h.b16 %v4269
      %v4317 = vunpack.c.l.b16 %v4273
      %v4318 = vunpack.c.h.b16 %v4273
      %v4319 = vunpack.c.l.b16 %v4277
      %v4320 = vunpack.c.h.b16 %v4277
      %v4321 = vunpack.c.l.b16 %v4281
      %v4322 = vunpack.c.h.b16 %v4281
      %v4323 = vpack.c.b16 %v4309, %v4307
      %v4324 = vpack.c.b16 %v4310, %v4308
      %v4325 = vpack.c.b16 %v4313, %v4311
      %v4326 = vpack.c.b16 %v4314, %v4312
      %v4327 = vpack.c.b16 %v4317, %v4315
      %v4328 = vpack.c.b16 %v4318, %v4316
      %v4329 = vpack.c.b16 %v4321, %v4319
      %v4330 = vpack.c.b16 %v4322, %v4320
      %v4353 = vunpack.c.l.b16 %v4282
      %v4354 = vunpack.c.l.b16 %v4283
      %v4355 = vunpack.c.l.b16 %v4284
      %v4356 = vunpack.c.l.b16 %v4285
      %v4357 = vunpack.c.l.b16 %v4286
      %v4358 = vunpack.c.l.b16 %v4287
      %v4359 = vunpack.c.l.b16 %v4288
      %v4360 = vunpack.c.l.b16 %v4289
      %v4361 = vunpack.c.l.b16 %v4290
      %v4362 = vunpack.c.l.b16 %v4291
      %v4363 = vunpack.c.l.b16 %v4292
      %v4364 = vunpack.c.l.b16 %v4293
      %v4365 = vunpack.c.l.b16 %v4294
      %v4366 = vunpack.c.l.b16 %v4295
      %v4367 = vunpack.c.l.b16 %v4296
      %v4368 = vunpack.c.l.b16 %v4297
      %v4369 = vunpack.c.l.b16 %v4298
      %v4370 = vunpack.c.l.b16 %v4299
      %v4371 = vpack.c.b16 %v4354, %v4353
      %v4372 = vpack.c.b16 %v4356, %v4355
      %v4373 = vpack.c.b16 %v4358, %v4357
      %v4374 = vpack.c.b16 %v4360, %v4359
      %v4375 = vpack.c.b16 %v4362, %v4361
      %v4376 = vpack.c.b16 %v4364, %v4363
      %v4377 = vpack.c.b16 %v4366, %v4365
      %v4378 = vpack.c.b16 %v4368, %v4367
      %v4379 = vpack.c.b16 %v4370, %v4369
      %v4390 = vsel %vm1013, %v4324, 0
      %v4393 = vsel %vm1013, %v4326, 0
      %v4396 = vsel %vm1013, %v4328, 0
      %v4399 = vsel %vm1013, %v4330, 0
      %4401 = vmatprep.subr.bf16.mxu0 0
      %4402 = vmatpush1.bf16.msra.mxu0 %v4378
      %4403 = vmatprep.subr.bf16.mxu0 0
      %4404 = vmatpush1.bf16.msra.mxu0 %v4377
      %4405 = vmatprep.subr.bf16.mxu0 0
      %4406 = vmatpush1.bf16.msra.mxu0 %v4376
      %4407 = vmatprep.subr.bf16.mxu0 0
      %4408 = vmatpush1.bf16.msra.mxu0 %v4375
      %4409 = vmatprep.subr.bf16.mxu0 0
      %4410 = vmatpush1.bf16.msra.mxu0 %v4374
      %4411 = vmatprep.subr.bf16.mxu0 0
      %4412 = vmatpush1.bf16.msra.mxu0 %v4373
      %4413 = vmatprep.subr.bf16.mxu0 0
      %4414 = vmatpush1.bf16.msra.mxu0 %v4372
      %4415 = vmatprep.subr.bf16.mxu0 0
      %4416 = vmatpush1.bf16.msra.mxu0 %v4371
      %4417 = vmatprep.subr.bf16.mxu0 0
      %4418 = vmatpush2.bf16.msra.mxu0 0
      %4419 = vmatprep.subr.bf16.mxu0 0
      %4420 = vmatpush2.bf16.msra.mxu0 0
      %4421 = vmatprep.subr.bf16.mxu0 0
      %4422 = vmatpush2.bf16.msra.mxu0 0
      %4423 = vmatprep.subr.bf16.mxu0 0
      %4424 = vmatpush2.bf16.msra.mxu0 0
      %4425 = vmatprep.subr.bf16.mxu0 0
      %4426 = vmatpush2.bf16.msra.mxu0 0
      %4427 = vmatprep.subr.bf16.mxu0 0
      %4428 = vmatpush2.bf16.msra.mxu0 0
      %4429 = vmatprep.subr.bf16.mxu0 0
      %4430 = vmatpush2.bf16.msra.mxu0 0
      %4431 = vmatprep.subr.bf16.mxu0 0
      %4432 = vmatpush2.bf16.msra.mxu0 %v4379
      %4433 = vmatprep.mubr.bf16.mxu0 %v4390
      %4434 = vmatmul.mubr.bf16.gmra.mxu0 %v4323
      %v4435 = vpop.f32.mrf.mxu0
      %v4436 = vadd.f32 %v4305, %v4435
      %v4437 = vpop.f32.mrf.mxu0
      %v4438 = vpop.f32.mrf.mxu0
      %v4439 = vadd.f32 %v4305, %v4438
      %v4440 = vpop.f32.mrf.mxu0
      %4441 = vmatprep.mubr.bf16.mxu0 %v4393
      %4442 = vmatmul.mubr.bf16.gmra.mxu0 %v4325
      %v4443 = vpop.f32.mrf.mxu0
      %v4444 = vadd.f32 %v4305, %v4443
      %v4445 = vpop.f32.mrf.mxu0
      %v4446 = vpop.f32.mrf.mxu0
      %v4447 = vadd.f32 %v4305, %v4446
      %v4448 = vpop.f32.mrf.mxu0
      %4449 = vmatprep.mubr.bf16.mxu0 %v4396
      %4450 = vmatmul.mubr.bf16.gmra.mxu0 %v4327
      %v4451 = vpop.f32.mrf.mxu0
      %v4452 = vadd.f32 %v4305, %v4451
      %v4453 = vpop.f32.mrf.mxu0
      %v4454 = vpop.f32.mrf.mxu0
      %v4455 = vadd.f32 %v4305, %v4454
      %v4456 = vpop.f32.mrf.mxu0
      %4457 = vmatprep.mubr.bf16.mxu0 %v4399
      %4458 = vmatmul.mubr.bf16.gmra.mxu0 %v4329
      %v4459 = vpop.f32.mrf.mxu0
      %v4460 = vadd.f32 %v4305, %v4459
      %v4461 = vpop.f32.mrf.mxu0
      %v4462 = vpop.f32.mrf.mxu0
      %v4463 = vadd.f32 %v4305, %v4462
      %v4464 = vpop.f32.mrf.mxu0
      %4465 = vdwg.mxu0
      %s4466 = scalar_lea.vmem %s260, 192
      %4467 = vst.msk [vmem:[%s4466] sm:$0xff] %vm3183, %v4436
      %4468 = vst.msk [vmem:[%s4466 + $0x8] sm:$0xff] %vm3183, %v4439
      %4469 = vst.msk [vmem:[%s4466 + $0x10] sm:$0xff] %vm3183, %v4444
      %4470 = vst.msk [vmem:[%s4466 + $0x18] sm:$0xff] %vm3183, %v4447
      %4471 = vst.msk [vmem:[%s4466 + $0x20] sm:$0xff] %vm3183, %v4452
      %4472 = vst.msk [vmem:[%s4466 + $0x28] sm:$0xff] %vm3183, %v4455
      %4473 = vst.msk [vmem:[%s4466 + $0x30] sm:$0xff] %vm3183, %v4460
      %4474 = vst.msk [vmem:[%s4466 + $0x38] sm:$0xff] %vm3183, %v4463
      %4475 = vrot.lane.b32.xlu0 %v2557, 80
      %v4476 = vpop.permute.xlu0 %4475
      %4477 = vrot.lane.b32.xlu0 %v2558, 80
      %v4478 = vpop.permute.xlu0 %4477
      %4479 = vrot.lane.b32.xlu0 %v2559, 80
      %v4480 = vpop.permute.xlu0 %4479
      %4481 = vrot.lane.b32.xlu0 %v2560, 80
      %v4482 = vpop.permute.xlu0 %4481
      %4483 = vrot.lane.b32.xlu0 %v2561, 80
      %v4484 = vpop.permute.xlu0 %4483
      %4485 = vrot.lane.b32.xlu0 %v2562, 80
      %v4486 = vpop.permute.xlu0 %4485
      %4487 = vrot.lane.b32.xlu0 %v2563, 80
      %v4488 = vpop.permute.xlu0 %4487
      %4489 = vrot.lane.b32.xlu0 %v2564, 80
      %v4490 = vpop.permute.xlu0 %4489
      %4491 = vrot.lane.b32.xlu0 %v2603, 112
      %v4492 = vpop.permute.xlu0 %4491
      %4493 = vrot.lane.b32.xlu0 %v2610, 112
      %v4494 = vpop.permute.xlu0 %4493
      %4495 = vrot.lane.b32.xlu0 %v2617, 112
      %v4496 = vpop.permute.xlu0 %4495
      %4497 = vrot.lane.b32.xlu0 %v2624, 112
      %v4498 = vpop.permute.xlu0 %4497
      %4499 = vrot.lane.b32.xlu0 %v2631, 112
      %v4500 = vpop.permute.xlu0 %4499
      %4501 = vrot.lane.b32.xlu0 %v2638, 112
      %v4502 = vpop.permute.xlu0 %4501
      %4503 = vrot.lane.b32.xlu0 %v2645, 112
      %v4504 = vpop.permute.xlu0 %4503
      %4505 = vrot.lane.b32.xlu0 %v2685, 112
      %v4506 = vpop.permute.xlu0 %4505
      %4507 = vrot.lane.b32.xlu0 %v2557, 96
      %v4508 = vpop.permute.xlu0 %4507
      %4509 = vrot.lane.b32.xlu0 %v2558, 96
      %v4510 = vpop.permute.xlu0 %4509
      %4511 = vrot.lane.b32.xlu0 %v2559, 96
      %v4512 = vpop.permute.xlu0 %4511
      %4513 = vrot.lane.b32.xlu0 %v2560, 96
      %v4514 = vpop.permute.xlu0 %4513
      %4515 = vrot.lane.b32.xlu0 %v2561, 96
      %v4516 = vpop.permute.xlu0 %4515
      %4517 = vrot.lane.b32.xlu0 %v2562, 96
      %v4518 = vpop.permute.xlu0 %4517
      %4519 = vrot.lane.b32.xlu0 %v2563, 96
      %v4520 = vpop.permute.xlu0 %4519
      %4521 = vrot.lane.b32.xlu0 %v2564, 96
      %v4522 = vpop.permute.xlu0 %4521
      %4524 = vrot.lane.b32.xlu0 %v2565, 80
      %v4525 = vpop.permute.xlu0 %4524
      %v4527 = vshrl.u32 %v2565, 16
      %v4529 = vshll.u32 %v2565, 16
      %v4531 = vrot.slane %v4529, 1
      %v4532 = vor.u32 %v4527, %v4531
      %4533 = vrot.lane.b32.xlu0 %v4532, 112
      %v4534 = vpop.permute.xlu0 %4533
      %v4537 = vsel %vm1013, %v4476, %v4492
      %v4540 = vsel %vm1013, %v4478, %v4494
      %v4543 = vsel %vm1013, %v4480, %v4496
      %v4546 = vsel %vm1013, %v4482, %v4498
      %v4549 = vsel %vm1013, %v4484, %v4500
      %v4552 = vsel %vm1013, %v4486, %v4502
      %v4555 = vsel %vm1013, %v4488, %v4504
      %v4558 = vsel %vm1013, %v4490, %v4506
      %v4559 = vsel %vm1034, %v4537, %v4492
      %v4560 = vsel %vm1034, %v4540, %v4494
      %v4561 = vsel %vm1034, %v4543, %v4496
      %v4562 = vsel %vm1034, %v4546, %v4498
      %v4563 = vsel %vm1034, %v4549, %v4500
      %v4564 = vsel %vm1034, %v4552, %v4502
      %v4565 = vsel %vm1034, %v4555, %v4504
      %v4566 = vsel %vm1034, %v4558, %v4506
      %v4568 = vsel %vm1055, %v4559, %v4508
      %v4570 = vsel %vm1055, %v4560, %v4510
      %v4572 = vsel %vm1055, %v4561, %v4512
      %v4574 = vsel %vm1055, %v4562, %v4514
      %v4576 = vsel %vm1055, %v4563, %v4516
      %v4578 = vsel %vm1055, %v4564, %v4518
      %v4580 = vsel %vm1055, %v4565, %v4520
      %v4582 = vsel %vm1055, %v4566, %v4522
      %v4584 = vsel %vm1076, %v4568, %v2603
      %v4586 = vsel %vm1076, %v4570, %v2610
      %v4588 = vsel %vm1076, %v4572, %v2617
      %v4590 = vsel %vm1076, %v4574, %v2624
      %v4592 = vsel %vm1076, %v4576, %v2631
      %v4594 = vsel %vm1076, %v4578, %v2638
      %v4596 = vsel %vm1076, %v4580, %v2645
      %v4598 = vsel %vm1076, %v4582, %v2685
      %v4599 = vsel %vm1097, %v4584, %v2603
      %v4600 = vsel %vm1097, %v4586, %v2610
      %v4601 = vsel %vm1097, %v4588, %v2617
      %v4602 = vsel %vm1097, %v4590, %v2624
      %v4603 = vsel %vm1097, %v4592, %v2631
      %v4604 = vsel %vm1097, %v4594, %v2638
      %v4605 = vsel %vm1097, %v4596, %v2645
      %v4606 = vsel %vm1097, %v4598, %v2685
      %v4607 = vsel %vm1118, %v4599, %v4478
      %v4608 = vsel %vm1118, %v4600, %v4480
      %v4609 = vsel %vm1118, %v4601, %v4482
      %v4610 = vsel %vm1118, %v4602, %v4484
      %v4611 = vsel %vm1118, %v4603, %v4486
      %v4612 = vsel %vm1118, %v4604, %v4488
      %v4613 = vsel %vm1118, %v4605, %v4490
      %v4615 = vsel %vm1118, %v4606, %v4525
      %v4616 = vsel %vm1139, %v4607, %v4494
      %v4617 = vsel %vm1139, %v4608, %v4496
      %v4618 = vsel %vm1139, %v4609, %v4498
      %v4619 = vsel %vm1139, %v4610, %v4500
      %v4620 = vsel %vm1139, %v4611, %v4502
      %v4621 = vsel %vm1139, %v4612, %v4504
      %v4622 = vsel %vm1139, %v4613, %v4506
      %v4624 = vsel %vm1139, %v4615, %v4534
      %v4633 = vunpack.c.l.b16 %v4616
      %v4634 = vunpack.c.l.b16 %v4494
      %v4635 = vunpack.c.h.b16 %v4616
      %v4636 = vunpack.c.h.b16 %v4494
      %v4637 = vunpack.c.l.b16 %v4617
      %v4638 = vunpack.c.l.b16 %v4496
      %v4639 = vunpack.c.h.b16 %v4617
      %v4640 = vunpack.c.h.b16 %v4496
      %v4641 = vunpack.c.l.b16 %v4618
      %v4642 = vunpack.c.l.b16 %v4498
      %v4643 = vunpack.c.h.b16 %v4618
      %v4644 = vunpack.c.h.b16 %v4498
      %v4645 = vunpack.c.l.b16 %v4619
      %v4646 = vunpack.c.l.b16 %v4500
      %v4647 = vunpack.c.h.b16 %v4619
      %v4648 = vunpack.c.h.b16 %v4500
      %v4649 = vunpack.c.l.b16 %v4620
      %v4650 = vunpack.c.l.b16 %v4502
      %v4651 = vunpack.c.h.b16 %v4620
      %v4652 = vunpack.c.h.b16 %v4502
      %v4653 = vunpack.c.l.b16 %v4621
      %v4654 = vunpack.c.l.b16 %v4504
      %v4655 = vunpack.c.h.b16 %v4621
      %v4656 = vunpack.c.h.b16 %v4504
      %v4657 = vunpack.c.l.b16 %v4622
      %v4658 = vunpack.c.l.b16 %v4506
      %v4659 = vunpack.c.h.b16 %v4622
      %v4660 = vunpack.c.h.b16 %v4506
      %v4661 = vunpack.c.l.b16 %v4624
      %v4662 = vunpack.c.l.b16 %v4534
      %v4663 = vunpack.c.h.b16 %v4624
      %v4664 = vunpack.c.h.b16 %v4534
      %v4665 = vpack.c.b16 %v4634, %v4633
      %v4666 = vpack.c.b16 %v4636, %v4635
      %v4667 = vpack.c.b16 %v4638, %v4637
      %v4668 = vpack.c.b16 %v4640, %v4639
      %v4669 = vpack.c.b16 %v4642, %v4641
      %v4670 = vpack.c.b16 %v4644, %v4643
      %v4671 = vpack.c.b16 %v4646, %v4645
      %v4672 = vpack.c.b16 %v4648, %v4647
      %v4673 = vpack.c.b16 %v4650, %v4649
      %v4674 = vpack.c.b16 %v4652, %v4651
      %v4675 = vpack.c.b16 %v4654, %v4653
      %v4676 = vpack.c.b16 %v4656, %v4655
      %v4677 = vpack.c.b16 %v4658, %v4657
      %v4678 = vpack.c.b16 %v4660, %v4659
      %v4679 = vpack.c.b16 %v4662, %v4661
      %v4680 = vpack.c.b16 %v4664, %v4663
      %v4682 = vshrl.u32 %v4665, 16
      %v4684 = vrot.slane %v4682, 5
      %v4685 = vshll.u32 %v4665, 16
      %v4687 = vrot.slane %v4685, 6
      %v4688 = vor.u32 %v4684, %v4687
      %v4689 = vrot.slane %v4688, 4
      %v4691 = vshrl.u32 %v4666, 16
      %v4693 = vrot.slane %v4691, 5
      %v4694 = vshll.u32 %v4666, 16
      %v4696 = vrot.slane %v4694, 6
      %v4697 = vor.u32 %v4693, %v4696
      %v4698 = vsel %vm2854, %v4689, %v4697
      %v4700 = vshrl.u32 %v4667, 16
      %v4702 = vrot.slane %v4700, 5
      %v4703 = vshll.u32 %v4667, 16
      %v4705 = vrot.slane %v4703, 6
      %v4706 = vor.u32 %v4702, %v4705
      %v4707 = vrot.slane %v4706, 4
      %v4709 = vshrl.u32 %v4668, 16
      %v4711 = vrot.slane %v4709, 5
      %v4712 = vshll.u32 %v4668, 16
      %v4714 = vrot.slane %v4712, 6
      %v4715 = vor.u32 %v4711, %v4714
      %v4716 = vsel %vm2854, %v4707, %v4715
      %v4718 = vshrl.u32 %v4669, 16
      %v4720 = vrot.slane %v4718, 5
      %v4721 = vshll.u32 %v4669, 16
      %v4723 = vrot.slane %v4721, 6
      %v4724 = vor.u32 %v4720, %v4723
      %v4725 = vrot.slane %v4724, 4
      %v4727 = vshrl.u32 %v4670, 16
      %v4729 = vrot.slane %v4727, 5
      %v4730 = vshll.u32 %v4670, 16
      %v4732 = vrot.slane %v4730, 6
      %v4733 = vor.u32 %v4729, %v4732
      %v4734 = vsel %vm2854, %v4725, %v4733
      %v4736 = vshrl.u32 %v4671, 16
      %v4738 = vrot.slane %v4736, 5
      %v4739 = vshll.u32 %v4671, 16
      %v4741 = vrot.slane %v4739, 6
      %v4742 = vor.u32 %v4738, %v4741
      %v4743 = vrot.slane %v4742, 4
      %v4745 = vshrl.u32 %v4672, 16
      %v4747 = vrot.slane %v4745, 5
      %v4748 = vshll.u32 %v4672, 16
      %v4750 = vrot.slane %v4748, 6
      %v4751 = vor.u32 %v4747, %v4750
      %v4752 = vsel %vm2854, %v4743, %v4751
      %v4754 = vshrl.u32 %v4673, 16
      %v4756 = vrot.slane %v4754, 5
      %v4757 = vshll.u32 %v4673, 16
      %v4759 = vrot.slane %v4757, 6
      %v4760 = vor.u32 %v4756, %v4759
      %v4761 = vrot.slane %v4760, 4
      %v4763 = vshrl.u32 %v4674, 16
      %v4765 = vrot.slane %v4763, 5
      %v4766 = vshll.u32 %v4674, 16
      %v4768 = vrot.slane %v4766, 6
      %v4769 = vor.u32 %v4765, %v4768
      %v4770 = vsel %vm2854, %v4761, %v4769
      %v4772 = vshrl.u32 %v4675, 16
      %v4774 = vrot.slane %v4772, 5
      %v4775 = vshll.u32 %v4675, 16
      %v4777 = vrot.slane %v4775, 6
      %v4778 = vor.u32 %v4774, %v4777
      %v4779 = vrot.slane %v4778, 4
      %v4781 = vshrl.u32 %v4676, 16
      %v4783 = vrot.slane %v4781, 5
      %v4784 = vshll.u32 %v4676, 16
      %v4786 = vrot.slane %v4784, 6
      %v4787 = vor.u32 %v4783, %v4786
      %v4788 = vsel %vm2854, %v4779, %v4787
      %v4790 = vshrl.u32 %v4677, 16
      %v4792 = vrot.slane %v4790, 5
      %v4793 = vshll.u32 %v4677, 16
      %v4795 = vrot.slane %v4793, 6
      %v4796 = vor.u32 %v4792, %v4795
      %v4797 = vrot.slane %v4796, 4
      %v4799 = vshrl.u32 %v4678, 16
      %v4801 = vrot.slane %v4799, 5
      %v4802 = vshll.u32 %v4678, 16
      %v4804 = vrot.slane %v4802, 6
      %v4805 = vor.u32 %v4801, %v4804
      %v4806 = vsel %vm2854, %v4797, %v4805
      %v4808 = vshrl.u32 %v4679, 16
      %v4810 = vrot.slane %v4808, 5
      %v4811 = vshll.u32 %v4679, 16
      %v4813 = vrot.slane %v4811, 6
      %v4814 = vor.u32 %v4810, %v4813
      %v4815 = vrot.slane %v4814, 4
      %v4817 = vshrl.u32 %v4680, 16
      %v4819 = vrot.slane %v4817, 5
      %v4820 = vshll.u32 %v4680, 16
      %v4822 = vrot.slane %v4820, 6
      %v4823 = vor.u32 %v4819, %v4822
      %v4824 = vsel %vm2854, %v4815, %v4823
      %v4825 = vld [vmem:[%s3] sm:$0xf]
      %v4826 = vld [vmem:[%s3 + $0x4] sm:$0xf]
      %v4827 = vld [vmem:[%s3 + $0x8] sm:$0xf]
      %v4828 = vld [vmem:[%s3 + $0xc] sm:$0xf]
      %v4829 = vld [vmem:[%s3 + $0x10] sm:$0xf]
      %v4830 = vld [vmem:[%s3 + $0x14] sm:$0xf]
      %v4831 = vld [vmem:[%s3 + $0x18] sm:$0xf]
      %v4832 = vld [vmem:[%s3 + $0x1c] sm:$0xf]
      %v4833 = vld [vmem:[%s3 + $0x20] sm:$0xf]
      %v4834 = vld [vmem:[%s3 + $0x24] sm:$0xf]
      %v4835 = vld [vmem:[%s3 + $0x28] sm:$0xf]
      %v4836 = vld [vmem:[%s3 + $0x2c] sm:$0xf]
      %v4837 = vld [vmem:[%s3 + $0x30] sm:$0xf]
      %v4838 = vld [vmem:[%s3 + $0x34] sm:$0xf]
      %v4839 = vld [vmem:[%s3 + $0x38] sm:$0xf]
      %v4840 = vld [vmem:[%s3 + $0x3c] sm:$0xf]
      %v4841 = vld [vmem:[%s3 + $0x40] sm:$0xf]
      %v4842 = vld [vmem:[%s3 + $0x44] sm:$0xf]
      %v4843 = vld [vmem:[%s4] sm:$0x1]
      %v4845 = vlaneseq
      %v4846 = vshrl.u32 %v4845, 7
      %v4847 = vsub.s32 0, %v4846
      %v4848 = vrot.slane %v4843, %v4847
      %v4850 = vunpack.c.l.b16 %v4698
      %v4851 = vunpack.c.h.b16 %v4698
      %v4852 = vunpack.c.l.b16 %v4716
      %v4853 = vunpack.c.h.b16 %v4716
      %v4854 = vunpack.c.l.b16 %v4734
      %v4855 = vunpack.c.h.b16 %v4734
      %v4856 = vunpack.c.l.b16 %v4752
      %v4857 = vunpack.c.h.b16 %v4752
      %v4858 = vunpack.c.l.b16 %v4770
      %v4859 = vunpack.c.h.b16 %v4770
      %v4860 = vunpack.c.l.b16 %v4788
      %v4861 = vunpack.c.h.b16 %v4788
      %v4862 = vunpack.c.l.b16 %v4806
      %v4863 = vunpack.c.h.b16 %v4806
      %v4864 = vunpack.c.l.b16 %v4824
      %v4865 = vunpack.c.h.b16 %v4824
      %v4866 = vpack.c.b16 %v4852, %v4850
      %v4867 = vpack.c.b16 %v4853, %v4851
      %v4868 = vpack.c.b16 %v4856, %v4854
      %v4869 = vpack.c.b16 %v4857, %v4855
      %v4870 = vpack.c.b16 %v4860, %v4858
      %v4871 = vpack.c.b16 %v4861, %v4859
      %v4872 = vpack.c.b16 %v4864, %v4862
      %v4873 = vpack.c.b16 %v4865, %v4863
      %v4896 = vunpack.c.l.b16 %v4825
      %v4897 = vunpack.c.l.b16 %v4826
      %v4898 = vunpack.c.l.b16 %v4827
      %v4899 = vunpack.c.l.b16 %v4828
      %v4900 = vunpack.c.l.b16 %v4829
      %v4901 = vunpack.c.l.b16 %v4830
      %v4902 = vunpack.c.l.b16 %v4831
      %v4903 = vunpack.c.l.b16 %v4832
      %v4904 = vunpack.c.l.b16 %v4833
      %v4905 = vunpack.c.l.b16 %v4834
      %v4906 = vunpack.c.l.b16 %v4835
      %v4907 = vunpack.c.l.b16 %v4836
      %v4908 = vunpack.c.l.b16 %v4837
      %v4909 = vunpack.c.l.b16 %v4838
      %v4910 = vunpack.c.l.b16 %v4839
      %v4911 = vunpack.c.l.b16 %v4840
      %v4912 = vunpack.c.l.b16 %v4841
      %v4913 = vunpack.c.l.b16 %v4842
      %v4914 = vpack.c.b16 %v4897, %v4896
      %v4915 = vpack.c.b16 %v4899, %v4898
      %v4916 = vpack.c.b16 %v4901, %v4900
      %v4917 = vpack.c.b16 %v4903, %v4902
      %v4918 = vpack.c.b16 %v4905, %v4904
      %v4919 = vpack.c.b16 %v4907, %v4906
      %v4920 = vpack.c.b16 %v4909, %v4908
      %v4921 = vpack.c.b16 %v4911, %v4910
      %v4922 = vpack.c.b16 %v4913, %v4912
      %v4933 = vsel %vm1013, %v4867, 0
      %v4936 = vsel %vm1013, %v4869, 0
      %v4939 = vsel %vm1013, %v4871, 0
      %v4942 = vsel %vm1013, %v4873, 0
      %4944 = vmatprep.subr.bf16.mxu0 0
      %4945 = vmatpush1.bf16.msra.mxu0 %v4921
      %4946 = vmatprep.subr.bf16.mxu0 0
      %4947 = vmatpush1.bf16.msra.mxu0 %v4920
      %4948 = vmatprep.subr.bf16.mxu0 0
      %4949 = vmatpush1.bf16.msra.mxu0 %v4919
      %4950 = vmatprep.subr.bf16.mxu0 0
      %4951 = vmatpush1.bf16.msra.mxu0 %v4918
      %4952 = vmatprep.subr.bf16.mxu0 0
      %4953 = vmatpush1.bf16.msra.mxu0 %v4917
      %4954 = vmatprep.subr.bf16.mxu0 0
      %4955 = vmatpush1.bf16.msra.mxu0 %v4916
      %4956 = vmatprep.subr.bf16.mxu0 0
      %4957 = vmatpush1.bf16.msra.mxu0 %v4915
      %4958 = vmatprep.subr.bf16.mxu0 0
      %4959 = vmatpush1.bf16.msra.mxu0 %v4914
      %4960 = vmatprep.subr.bf16.mxu0 0
      %4961 = vmatpush2.bf16.msra.mxu0 0
      %4962 = vmatprep.subr.bf16.mxu0 0
      %4963 = vmatpush2.bf16.msra.mxu0 0
      %4964 = vmatprep.subr.bf16.mxu0 0
      %4965 = vmatpush2.bf16.msra.mxu0 0
      %4966 = vmatprep.subr.bf16.mxu0 0
      %4967 = vmatpush2.bf16.msra.mxu0 0
      %4968 = vmatprep.subr.bf16.mxu0 0
      %4969 = vmatpush2.bf16.msra.mxu0 0
      %4970 = vmatprep.subr.bf16.mxu0 0
      %4971 = vmatpush2.bf16.msra.mxu0 0
      %4972 = vmatprep.subr.bf16.mxu0 0
      %4973 = vmatpush2.bf16.msra.mxu0 0
      %4974 = vmatprep.subr.bf16.mxu0 0
      %4975 = vmatpush2.bf16.msra.mxu0 %v4922
      %4976 = vmatprep.mubr.bf16.mxu0 %v4933
      %4977 = vmatmul.mubr.bf16.gmra.mxu0 %v4866
      %v4978 = vpop.f32.mrf.mxu0
      %v4979 = vadd.f32 %v4848, %v4978
      %v4980 = vpop.f32.mrf.mxu0
      %v4981 = vpop.f32.mrf.mxu0
      %v4982 = vadd.f32 %v4848, %v4981
      %v4983 = vpop.f32.mrf.mxu0
      %4984 = vmatprep.mubr.bf16.mxu0 %v4936
      %4985 = vmatmul.mubr.bf16.gmra.mxu0 %v4868
      %v4986 = vpop.f32.mrf.mxu0
      %v4987 = vadd.f32 %v4848, %v4986
      %v4988 = vpop.f32.mrf.mxu0
      %v4989 = vpop.f32.mrf.mxu0
      %v4990 = vadd.f32 %v4848, %v4989
      %v4991 = vpop.f32.mrf.mxu0
      %4992 = vmatprep.mubr.bf16.mxu0 %v4939
      %4993 = vmatmul.mubr.bf16.gmra.mxu0 %v4870
      %v4994 = vpop.f32.mrf.mxu0
      %v4995 = vadd.f32 %v4848, %v4994
      %v4996 = vpop.f32.mrf.mxu0
      %v4997 = vpop.f32.mrf.mxu0
      %v4998 = vadd.f32 %v4848, %v4997
      %v4999 = vpop.f32.mrf.mxu0
      %5000 = vmatprep.mubr.bf16.mxu0 %v4942
      %5001 = vmatmul.mubr.bf16.gmra.mxu0 %v4872
      %v5002 = vpop.f32.mrf.mxu0
      %v5003 = vadd.f32 %v4848, %v5002
      %v5004 = vpop.f32.mrf.mxu0
      %v5005 = vpop.f32.mrf.mxu0
      %v5006 = vadd.f32 %v4848, %v5005
      %v5007 = vpop.f32.mrf.mxu0
      %5008 = vdwg.mxu0
      %s5009 = scalar_lea.vmem %s260, 256
      %5010 = vst.msk [vmem:[%s5009] sm:$0xff] %vm3183, %v4979
      %5011 = vst.msk [vmem:[%s5009 + $0x8] sm:$0xff] %vm3183, %v4982
      %5012 = vst.msk [vmem:[%s5009 + $0x10] sm:$0xff] %vm3183, %v4987
      %5013 = vst.msk [vmem:[%s5009 + $0x18] sm:$0xff] %vm3183, %v4990
      %5014 = vst.msk [vmem:[%s5009 + $0x20] sm:$0xff] %vm3183, %v4995
      %5015 = vst.msk [vmem:[%s5009 + $0x28] sm:$0xff] %vm3183, %v4998
      %5016 = vst.msk [vmem:[%s5009 + $0x30] sm:$0xff] %vm3183, %v5003
      %5017 = vst.msk [vmem:[%s5009 + $0x38] sm:$0xff] %vm3183, %v5006
      %5018 = vrot.lane.b32.xlu0 %v2565, 96
      %v5019 = vpop.permute.xlu0 %5018
      %v5020 = vsel %vm1034, %v4508, %v2603
      %v5021 = vsel %vm1034, %v4510, %v2610
      %v5022 = vsel %vm1034, %v4512, %v2617
      %v5023 = vsel %vm1034, %v4514, %v2624
      %v5024 = vsel %vm1034, %v4516, %v2631
      %v5025 = vsel %vm1034, %v4518, %v2638
      %v5026 = vsel %vm1034, %v4520, %v2645
      %v5027 = vsel %vm1034, %v4522, %v2685
      %v5028 = vsel %vm1055, %v5020, %v3578
      %v5029 = vsel %vm1055, %v5021, %v3580
      %v5030 = vsel %vm1055, %v5022, %v3582
      %v5031 = vsel %vm1055, %v5023, %v3584
      %v5032 = vsel %vm1055, %v5024, %v3586
      %v5033 = vsel %vm1055, %v5025, %v3588
      %v5034 = vsel %vm1055, %v5026, %v3590
      %v5035 = vsel %vm1055, %v5027, %v3592
      %v5036 = vsel %vm1076, %v5028, %v3578
      %v5037 = vsel %vm1076, %v5029, %v3580
      %v5038 = vsel %vm1076, %v5030, %v3582
      %v5039 = vsel %vm1076, %v5031, %v3584
      %v5040 = vsel %vm1076, %v5032, %v3586
      %v5041 = vsel %vm1076, %v5033, %v3588
      %v5042 = vsel %vm1076, %v5034, %v3590
      %v5043 = vsel %vm1076, %v5035, %v3592
      %v5044 = vsel %vm1097, %v5036, %v3594
      %v5045 = vsel %vm1097, %v5037, %v3596
      %v5046 = vsel %vm1097, %v5038, %v3598
      %v5047 = vsel %vm1097, %v5039, %v3600
      %v5048 = vsel %vm1097, %v5040, %v3602
      %v5049 = vsel %vm1097, %v5041, %v3604
      %v5050 = vsel %vm1097, %v5042, %v3606
      %v5051 = vsel %vm1097, %v5043, %v3608
      %v5052 = vsel %vm1118, %v5044, %v4510
      %v5053 = vsel %vm1118, %v5045, %v4512
      %v5054 = vsel %vm1118, %v5046, %v4514
      %v5055 = vsel %vm1118, %v5047, %v4516
      %v5056 = vsel %vm1118, %v5048, %v4518
      %v5057 = vsel %vm1118, %v5049, %v4520
      %v5058 = vsel %vm1118, %v5050, %v4522
      %v5060 = vsel %vm1118, %v5051, %v5019
      %v5061 = vsel %vm1139, %v5052, %v4510
      %v5062 = vsel %vm1139, %v5053, %v4512
      %v5063 = vsel %vm1139, %v5054, %v4514
      %v5064 = vsel %vm1139, %v5055, %v4516
      %v5065 = vsel %vm1139, %v5056, %v4518
      %v5066 = vsel %vm1139, %v5057, %v4520
      %v5067 = vsel %vm1139, %v5058, %v4522
      %v5068 = vsel %vm1139, %v5060, %v5019
      %v5077 = vunpack.c.l.b16 %v5061
      %v5078 = vunpack.c.l.b16 %v2610
      %v5079 = vunpack.c.h.b16 %v5061
      %v5080 = vunpack.c.h.b16 %v2610
      %v5081 = vunpack.c.l.b16 %v5062
      %v5082 = vunpack.c.l.b16 %v2617
      %v5083 = vunpack.c.h.b16 %v5062
      %v5084 = vunpack.c.h.b16 %v2617
      %v5085 = vunpack.c.l.b16 %v5063
      %v5086 = vunpack.c.l.b16 %v2624
      %v5087 = vunpack.c.h.b16 %v5063
      %v5088 = vunpack.c.h.b16 %v2624
      %v5089 = vunpack.c.l.b16 %v5064
      %v5090 = vunpack.c.l.b16 %v2631
      %v5091 = vunpack.c.h.b16 %v5064
      %v5092 = vunpack.c.h.b16 %v2631
      %v5093 = vunpack.c.l.b16 %v5065
      %v5094 = vunpack.c.l.b16 %v2638
      %v5095 = vunpack.c.h.b16 %v5065
      %v5096 = vunpack.c.h.b16 %v2638
      %v5097 = vunpack.c.l.b16 %v5066
      %v5098 = vunpack.c.l.b16 %v2645
      %v5099 = vunpack.c.h.b16 %v5066
      %v5100 = vunpack.c.h.b16 %v2645
      %v5101 = vunpack.c.l.b16 %v5067
      %v5102 = vunpack.c.l.b16 %v2685
      %v5103 = vunpack.c.h.b16 %v5067
      %v5104 = vunpack.c.h.b16 %v2685
      %v5105 = vunpack.c.l.b16 %v5068
      %v5106 = vunpack.c.l.b16 %v4532
      %v5107 = vunpack.c.h.b16 %v5068
      %v5108 = vunpack.c.h.b16 %v4532
      %v5109 = vpack.c.b16 %v5078, %v5077
      %v5110 = vpack.c.b16 %v5080, %v5079
      %v5111 = vpack.c.b16 %v5082, %v5081
      %v5112 = vpack.c.b16 %v5084, %v5083
      %v5113 = vpack.c.b16 %v5086, %v5085
      %v5114 = vpack.c.b16 %v5088, %v5087
      %v5115 = vpack.c.b16 %v5090, %v5089
      %v5116 = vpack.c.b16 %v5092, %v5091
      %v5117 = vpack.c.b16 %v5094, %v5093
      %v5118 = vpack.c.b16 %v5096, %v5095
      %v5119 = vpack.c.b16 %v5098, %v5097
      %v5120 = vpack.c.b16 %v5100, %v5099
      %v5121 = vpack.c.b16 %v5102, %v5101
      %v5122 = vpack.c.b16 %v5104, %v5103
      %v5123 = vpack.c.b16 %v5106, %v5105
      %v5124 = vpack.c.b16 %v5108, %v5107
      %v5125 = vrot.slane %v5109, 6
      %v5126 = vrot.slane %v5125, 4
      %v5127 = vrot.slane %v5110, 6
      %v5128 = vsel %vm3351, %v5126, %v5127
      %v5129 = vrot.slane %v5111, 6
      %v5130 = vrot.slane %v5129, 4
      %v5131 = vrot.slane %v5112, 6
      %v5132 = vsel %vm3351, %v5130, %v5131
      %v5133 = vrot.slane %v5113, 6
      %v5134 = vrot.slane %v5133, 4
      %v5135 = vrot.slane %v5114, 6
      %v5136 = vsel %vm3351, %v5134, %v5135
      %v5137 = vrot.slane %v5115, 6
      %v5138 = vrot.slane %v5137, 4
      %v5139 = vrot.slane %v5116, 6
      %v5140 = vsel %vm3351, %v5138, %v5139
      %v5141 = vrot.slane %v5117, 6
      %v5142 = vrot.slane %v5141, 4
      %v5143 = vrot.slane %v5118, 6
      %v5144 = vsel %vm3351, %v5142, %v5143
      %v5145 = vrot.slane %v5119, 6
      %v5146 = vrot.slane %v5145, 4
      %v5147 = vrot.slane %v5120, 6
      %v5148 = vsel %vm3351, %v5146, %v5147
      %v5149 = vrot.slane %v5121, 6
      %v5150 = vrot.slane %v5149, 4
      %v5151 = vrot.slane %v5122, 6
      %v5152 = vsel %vm3351, %v5150, %v5151
      %v5153 = vrot.slane %v5123, 6
      %v5154 = vrot.slane %v5153, 4
      %v5155 = vrot.slane %v5124, 6
      %v5156 = vsel %vm3351, %v5154, %v5155
      %v5157 = vld [vmem:[%s3] sm:$0xf]
      %v5158 = vld [vmem:[%s3 + $0x4] sm:$0xf]
      %v5159 = vld [vmem:[%s3 + $0x8] sm:$0xf]
      %v5160 = vld [vmem:[%s3 + $0xc] sm:$0xf]
      %v5161 = vld [vmem:[%s3 + $0x10] sm:$0xf]
      %v5162 = vld [vmem:[%s3 + $0x14] sm:$0xf]
      %v5163 = vld [vmem:[%s3 + $0x18] sm:$0xf]
      %v5164 = vld [vmem:[%s3 + $0x1c] sm:$0xf]
      %v5165 = vld [vmem:[%s3 + $0x20] sm:$0xf]
      %v5166 = vld [vmem:[%s3 + $0x24] sm:$0xf]
      %v5167 = vld [vmem:[%s3 + $0x28] sm:$0xf]
      %v5168 = vld [vmem:[%s3 + $0x2c] sm:$0xf]
      %v5169 = vld [vmem:[%s3 + $0x30] sm:$0xf]
      %v5170 = vld [vmem:[%s3 + $0x34] sm:$0xf]
      %v5171 = vld [vmem:[%s3 + $0x38] sm:$0xf]
      %v5172 = vld [vmem:[%s3 + $0x3c] sm:$0xf]
      %v5173 = vld [vmem:[%s3 + $0x40] sm:$0xf]
      %v5174 = vld [vmem:[%s3 + $0x44] sm:$0xf]
      %v5175 = vld [vmem:[%s4] sm:$0x1]
      %v5177 = vlaneseq
      %v5178 = vshrl.u32 %v5177, 7
      %v5179 = vsub.s32 0, %v5178
      %v5180 = vrot.slane %v5175, %v5179
      %v5182 = vunpack.c.l.b16 %v5128
      %v5183 = vunpack.c.h.b16 %v5128
      %v5184 = vunpack.c.l.b16 %v5132
      %v5185 = vunpack.c.h.b16 %v5132
      %v5186 = vunpack.c.l.b16 %v5136
      %v5187 = vunpack.c.h.b16 %v5136
      %v5188 = vunpack.c.l.b16 %v5140
      %v5189 = vunpack.c.h.b16 %v5140
      %v5190 = vunpack.c.l.b16 %v5144
      %v5191 = vunpack.c.h.b16 %v5144
      %v5192 = vunpack.c.l.b16 %v5148
      %v5193 = vunpack.c.h.b16 %v5148
      %v5194 = vunpack.c.l.b16 %v5152
      %v5195 = vunpack.c.h.b16 %v5152
      %v5196 = vunpack.c.l.b16 %v5156
      %v5197 = vunpack.c.h.b16 %v5156
      %v5198 = vpack.c.b16 %v5184, %v5182
      %v5199 = vpack.c.b16 %v5185, %v5183
      %v5200 = vpack.c.b16 %v5188, %v5186
      %v5201 = vpack.c.b16 %v5189, %v5187
      %v5202 = vpack.c.b16 %v5192, %v5190
      %v5203 = vpack.c.b16 %v5193, %v5191
      %v5204 = vpack.c.b16 %v5196, %v5194
      %v5205 = vpack.c.b16 %v5197, %v5195
      %v5228 = vunpack.c.l.b16 %v5157
      %v5229 = vunpack.c.l.b16 %v5158
      %v5230 = vunpack.c.l.b16 %v5159
      %v5231 = vunpack.c.l.b16 %v5160
      %v5232 = vunpack.c.l.b16 %v5161
      %v5233 = vunpack.c.l.b16 %v5162
      %v5234 = vunpack.c.l.b16 %v5163
      %v5235 = vunpack.c.l.b16 %v5164
      %v5236 = vunpack.c.l.b16 %v5165
      %v5237 = vunpack.c.l.b16 %v5166
      %v5238 = vunpack.c.l.b16 %v5167
      %v5239 = vunpack.c.l.b16 %v5168
      %v5240 = vunpack.c.l.b16 %v5169
      %v5241 = vunpack.c.l.b16 %v5170
      %v5242 = vunpack.c.l.b16 %v5171
      %v5243 = vunpack.c.l.b16 %v5172
      %v5244 = vunpack.c.l.b16 %v5173
      %v5245 = vunpack.c.l.b16 %v5174
      %v5246 = vpack.c.b16 %v5229, %v5228
      %v5247 = vpack.c.b16 %v5231, %v5230
      %v5248 = vpack.c.b16 %v5233, %v5232
      %v5249 = vpack.c.b16 %v5235, %v5234
      %v5250 = vpack.c.b16 %v5237, %v5236
      %v5251 = vpack.c.b16 %v5239, %v5238
      %v5252 = vpack.c.b16 %v5241, %v5240
      %v5253 = vpack.c.b16 %v5243, %v5242
      %v5254 = vpack.c.b16 %v5245, %v5244
      %v5265 = vsel %vm1013, %v5199, 0
      %v5268 = vsel %vm1013, %v5201, 0
      %v5271 = vsel %vm1013, %v5203, 0
      %v5274 = vsel %vm1013, %v5205, 0
      %5276 = vmatprep.subr.bf16.mxu0 0
      %5277 = vmatpush1.bf16.msra.mxu0 %v5253
      %5278 = vmatprep.subr.bf16.mxu0 0
      %5279 = vmatpush1.bf16.msra.mxu0 %v5252
      %5280 = vmatprep.subr.bf16.mxu0 0
      %5281 = vmatpush1.bf16.msra.mxu0 %v5251
      %5282 = vmatprep.subr.bf16.mxu0 0
      %5283 = vmatpush1.bf16.msra.mxu0 %v5250
      %5284 = vmatprep.subr.bf16.mxu0 0
      %5285 = vmatpush1.bf16.msra.mxu0 %v5249
      %5286 = vmatprep.subr.bf16.mxu0 0
      %5287 = vmatpush1.bf16.msra.mxu0 %v5248
      %5288 = vmatprep.subr.bf16.mxu0 0
      %5289 = vmatpush1.bf16.msra.mxu0 %v5247
      %5290 = vmatprep.subr.bf16.mxu0 0
      %5291 = vmatpush1.bf16.msra.mxu0 %v5246
      %5292 = vmatprep.subr.bf16.mxu0 0
      %5293 = vmatpush2.bf16.msra.mxu0 0
      %5294 = vmatprep.subr.bf16.mxu0 0
      %5295 = vmatpush2.bf16.msra.mxu0 0
      %5296 = vmatprep.subr.bf16.mxu0 0
      %5297 = vmatpush2.bf16.msra.mxu0 0
      %5298 = vmatprep.subr.bf16.mxu0 0
      %5299 = vmatpush2.bf16.msra.mxu0 0
      %5300 = vmatprep.subr.bf16.mxu0 0
      %5301 = vmatpush2.bf16.msra.mxu0 0
      %5302 = vmatprep.subr.bf16.mxu0 0
      %5303 = vmatpush2.bf16.msra.mxu0 0
      %5304 = vmatprep.subr.bf16.mxu0 0
      %5305 = vmatpush2.bf16.msra.mxu0 0
      %5306 = vmatprep.subr.bf16.mxu0 0
      %5307 = vmatpush2.bf16.msra.mxu0 %v5254
      %5308 = vmatprep.mubr.bf16.mxu0 %v5265
      %5309 = vmatmul.mubr.bf16.gmra.mxu0 %v5198
      %v5310 = vpop.f32.mrf.mxu0
      %v5311 = vadd.f32 %v5180, %v5310
      %v5312 = vpop.f32.mrf.mxu0
      %v5313 = vpop.f32.mrf.mxu0
      %v5314 = vadd.f32 %v5180, %v5313
      %v5315 = vpop.f32.mrf.mxu0
      %5316 = vmatprep.mubr.bf16.mxu0 %v5268
      %5317 = vmatmul.mubr.bf16.gmra.mxu0 %v5200
      %v5318 = vpop.f32.mrf.mxu0
      %v5319 = vadd.f32 %v5180, %v5318
      %v5320 = vpop.f32.mrf.mxu0
      %v5321 = vpop.f32.mrf.mxu0
      %v5322 = vadd.f32 %v5180, %v5321
      %v5323 = vpop.f32.mrf.mxu0
      %5324 = vmatprep.mubr.bf16.mxu0 %v5271
      %5325 = vmatmul.mubr.bf16.gmra.mxu0 %v5202
      %v5326 = vpop.f32.mrf.mxu0
      %v5327 = vadd.f32 %v5180, %v5326
      %v5328 = vpop.f32.mrf.mxu0
      %v5329 = vpop.f32.mrf.mxu0
      %v5330 = vadd.f32 %v5180, %v5329
      %v5331 = vpop.f32.mrf.mxu0
      %5332 = vmatprep.mubr.bf16.mxu0 %v5274
      %5333 = vmatmul.mubr.bf16.gmra.mxu0 %v5204
      %v5334 = vpop.f32.mrf.mxu0
      %v5335 = vadd.f32 %v5180, %v5334
      %v5336 = vpop.f32.mrf.mxu0
      %v5337 = vpop.f32.mrf.mxu0
      %v5338 = vadd.f32 %v5180, %v5337
      %v5339 = vpop.f32.mrf.mxu0
      %5340 = vdwg.mxu0
      %s5341 = scalar_lea.vmem %s260, 320
      %5342 = vst.msk [vmem:[%s5341] sm:$0xff] %vm3183, %v5311
      %5343 = vst.msk [vmem:[%s5341 + $0x8] sm:$0xff] %vm3183, %v5314
      %5344 = vst.msk [vmem:[%s5341 + $0x10] sm:$0xff] %vm3183, %v5319
      %5345 = vst.msk [vmem:[%s5341 + $0x18] sm:$0xff] %vm3183, %v5322
      %5346 = vst.msk [vmem:[%s5341 + $0x20] sm:$0xff] %vm3183, %v5327
      %5347 = vst.msk [vmem:[%s5341 + $0x28] sm:$0xff] %vm3183, %v5330
      %5348 = vst.msk [vmem:[%s5341 + $0x30] sm:$0xff] %vm3183, %v5335
      %5349 = vst.msk [vmem:[%s5341 + $0x38] sm:$0xff] %vm3183, %v5338
      %p5350 = scmp.lt.s32.totalorder %s20, 1
      %s5351 = scalar_select %p5350, %s20, 1
      %p5352 = scmp.lt.s32.totalorder %s21, 1
      %s5353 = scalar_select %p5352, %s21, 1
      %s5354 = smul.addr %s5353, 48
      %s5355 = smul.addr %s5351, 96
      %s5356 = sadd.s32 %s5354, %s5355
      %s5357 = smul.addr %s5356, 8
      %s5358 = scalar_lea.vmem %s5, %s5357
      // Predicated region
      $region41: #{patch_de_embed_forward.1} parent=39 // pred_check
        %p5359 = pneg %p160
      $region42: #{patch_de_embed_forward.1} parent=39 // pred_check_branch
        %5361 = sbr.rel (%p5359) target = $region44
      $region43: #{patch_de_embed_forward.1} parent=39 // pred_region
        _
      $region44: #{patch_de_embed_forward.1} parent=39 // pred_fallthru
        _
    $region40: #{patch_de_embed_forward.1} parent=5 // pred_fallthru
      _
    %p5362 = scmp.le.s32.totalorder 2, %s11
    // Predicated region
    $region45: #{patch_de_embed_forward.1} parent=5 // pred_check
      %p5363 = pneg %p5362
    $region46: #{patch_de_embed_forward.1} parent=5 // pred_check_branch
      %5365 = sbr.rel (%p5363) target = $region48
    $region47: #{patch_de_embed_forward.1} parent=5 // pred_region
      %s5366 = ssub.s32 %s11, 2
      // Predicated region
      $region49: #{patch_de_embed_forward.1} parent=47 // pred_check
        %p5367 = pneg %p166
      $region50: #{patch_de_embed_forward.1} parent=47 // pred_check_branch
        %5369 = sbr.rel (%p5367) target = $region52
      $region51: #{patch_de_embed_forward.1} parent=47 // pred_region
        %p5370 = scmp.lt.s32.totalorder %s22, 1
        %s5371 = scalar_select %p5370, %s22, 1
        %p5372 = scmp.lt.s32.totalorder %s23, 1
        %s5373 = scalar_select %p5372, %s23, 1
        %s5374 = smul.addr %s5373, 48
        %s5375 = smul.addr %s5371, 96
        %s5376 = sadd.s32 %s5374, %s5375
        %s5377 = smul.addr %s5376, 8
        %s5378 = scalar_lea.vmem %s5, %s5377
      $region52: #{patch_de_embed_forward.1} parent=47 // pred_fallthru
        _
    $region48: #{patch_de_embed_forward.1} parent=5 // pred_fallthru
      _
  $region6: #{patch_de_embed_forward.1} parent=0 // loop_footer
    %s15 = sadd.s32 1, %s11
  $region7: #{patch_de_embed_forward.1} parent=0 // loop_footer_branch
    %10 = sbr.rel target = $region3
  $region8: #{patch_de_embed_forward.1} parent=0 // loop_exit
    _

</llo_original>
